<compile_context>
chip_gen: v6e
topology: v6e:2x2x1
jax: 0.10.0
libtpu: 0.0.40
codegen_flags: <defaults>
</compile_context>

<pallas_src>
import functools
import math

import jax
import jax.numpy as jnp
from jax.experimental import pallas as pl
from jax.experimental.pallas import tpu as pltpu


# ----------------------------- in-kernel helpers -----------------------------

def _layernorm(x, w, b, eps=1e-5):
    # x: (N, D); w, b broadcastable (1, D)
    mean = jnp.mean(x, axis=-1, keepdims=True)
    xc = x - mean
    var = jnp.mean(xc * xc, axis=-1, keepdims=True)   # biased, like nn.LayerNorm
    inv = jax.lax.rsqrt(var + eps)
    return xc * inv * w + b


def _gelu_exact(x):
    # nn.GELU() default = exact erf formulation
    return 0.5 * x * (1.0 + jax.lax.erf(x / math.sqrt(2.0)))


# ----------------------------- fused forward kernel ---------------------------

def _fused_kernel(x_ref,
                  wqkv_ref, bqkv_ref, wo_ref, bo_ref,
                  ln1w_ref, ln1b_ref,
                  w1_ref, b1_ref, w2_ref, b2_ref,
                  ln2w_ref, ln2b_ref,
                  lnfw_ref, lnfb_ref, whead_ref,
                  out_ref,
                  acc_ref,
                  *, bb, seq, n_heads, d_k, d_model):
    """Grid = (num_batch_blocks, num_layers).  Axis 0 parallel, axis 1 arbitrary.

    acc_ref holds the resident activation (rows, D) for the current batch block
    and is carried across the layer axis.
    """
    l = pl.program_id(1)
    D = d_model

    # Load embeddings into the resident accumulator at the first layer step.
    @pl.when(l == 0)
    def _load_x():
        acc_ref[...] = x_ref[...]

    x = acc_ref[...]                                           # (rows, D)

    # --- fused Q/K/V projection: one wide matmul ---
    qkv = jnp.dot(x, wqkv_ref[0],
                  preferred_element_type=jnp.float32) + bqkv_ref[0]   # (rows, 3D)

    q3 = qkv[:, 0 * D:1 * D].reshape(bb, seq, D)
    k3 = qkv[:, 1 * D:2 * D].reshape(bb, seq, D)
    v3 = qkv[:, 2 * D:3 * D].reshape(bb, seq, D)

    # --- multi-head attention, batched einsums over the whole (sub)batch ---
    scale = 1.0 / math.sqrt(d_k)
    head_outs = []
    for h in range(n_heads):                                   # static unroll
        sl = slice(h * d_k, (h + 1) * d_k)
        qs, ks, vs = q3[:, :, sl], k3[:, :, sl], v3[:, :, sl]  # (bb, T, d_k)
        s = jnp.einsum('bqd,bkd->bqk', qs, ks,
                       preferred_element_type=jnp.float32) * scale     # (bb, T, T)
        s = s - jnp.max(s, axis=-1, keepdims=True)
        p = jnp.exp(s)
        p = p / jnp.sum(p, axis=-1, keepdims=True)             # exact softmax
        head_outs.append(jnp.einsum('bqk,bkd->bqd', p, vs,
                                    preferred_element_type=jnp.float32))
    attn = jnp.concatenate(head_outs, axis=-1).reshape(bb * seq, D)
    attn = jnp.dot(attn, wo_ref[0],
                   preferred_element_type=jnp.float32) + bo_ref[0]

    # --- residual + layernorm 1 ---
    h1 = _layernorm(x + attn, ln1w_ref[0], ln1b_ref[0])

    # --- feed-forward ---
    ff = jnp.dot(h1, w1_ref[0], preferred_element_type=jnp.float32) + b1_ref[0]
    ff = _gelu_exact(ff)
    ff = jnp.dot(ff, w2_ref[0], preferred_element_type=jnp.float32) + b2_ref[0]

    # --- residual + layernorm 2 -> carry to next layer ---
    h2 = _layernorm(h1 + ff, ln2w_ref[0], ln2b_ref[0])
    acc_ref[...] = h2

    # --- final LN + LM head, only on the last layer step (lane-dense output) ---
    @pl.when(l == pl.num_programs(1) - 1)
    def _final():
        xf = _layernorm(h2, lnfw_ref[...], lnfb_ref[...])
        out_ref[...] = jnp.dot(xf, whead_ref[...],
                               preferred_element_type=jnp.float32)


def tiny_gpt_fused(x2d, params, *, batch, seq, n_heads, num_batch_blocks=1):
    """x2d: (B*T, D) embeddings.  Returns padded logits (B*T, V_pad)."""
    N, D = x2d.shape
    assert N == batch * seq
    assert batch % num_batch_blocks == 0
    bb = batch // num_batch_blocks
    rows = bb * seq

    wqkv = params["wqkv"]
    L = wqkv.shape[0]
    whead = params["head_p"]
    Vp = whead.shape[1]
    d_k = D // n_heads

    # Per-layer vectors reshaped to (L, 1, X) so block last-two dims == full dims.
    def vec(name):
        a = params[name]
        return a.reshape(L, 1, a.shape[-1])

    bqkv, bo, b1, b2 = vec("bqkv"), vec("bo"), vec("b1"), vec("b2")
    ln1w, ln1b = vec("ln1_w"), vec("ln1_b")
    ln2w, ln2b = vec("ln2_w"), vec("ln2_b")
    lnfw = params["ln_f_w"].reshape(1, D)
    lnfb = params["ln_f_b"].reshape(1, D)

    def per_layer(arr):
        shape = arr.shape
        return pl.BlockSpec((1,) + shape[1:],
                            lambda b, l: (l,) + (0,) * (len(shape) - 1))

    def const_spec(arr):
        shape = arr.shape
        return pl.BlockSpec(shape, lambda b, l: (0,) * len(shape))

    in_specs = [
        pl.BlockSpec((rows, D), lambda b, l: (b, 0)),          # embeddings
        per_layer(wqkv), per_layer(bqkv),
        per_layer(params["wo"]), per_layer(bo),
        per_layer(ln1w), per_layer(ln1b),
        per_layer(params["w1"]), per_layer(b1),
        per_layer(params["w2"]), per_layer(b2),
        per_layer(ln2w), per_layer(ln2b),
        const_spec(lnfw), const_spec(lnfb), const_spec(whead),
    ]

    kernel = functools.partial(_fused_kernel, bb=bb, seq=seq, n_heads=n_heads,
                               d_k=d_k, d_model=D)

    return pl.pallas_call(
        kernel,
        out_shape=jax.ShapeDtypeStruct((N, Vp), jnp.float32),
        grid_spec=pltpu.PrefetchScalarGridSpec(
            num_scalar_prefetch=0,
            grid=(num_batch_blocks, L),
            in_specs=in_specs,
            out_specs=pl.BlockSpec((rows, Vp), lambda b, l: (b, 0)),
            scratch_shapes=[pltpu.VMEM((rows, D), jnp.float32)],
        ),
        compiler_params=pltpu.CompilerParams(
            dimension_semantics=("parallel", "arbitrary")),
    )(x2d, wqkv, bqkv, params["wo"], bo, ln1w, ln1b,
      params["w1"], b1, params["w2"], b2, ln2w, ln2b, lnfw, lnfb, whead)


# ----------------------------- parameter init & forward -----------------------

def init_params(key, vocab_size, d_model, n_heads, num_layers, ff_hidden,
                max_seq_len, lane=128):
    L, D, F, V = num_layers, d_model, ff_hidden, vocab_size
    keys = jax.random.split(key, 9)

    def rnd(k, shape):
        return 0.02 * jax.random.normal(k, shape, dtype=jnp.float32)

    wq = rnd(keys[2], (L, D, D))
    wk = rnd(keys[3], (L, D, D))
    wv = rnd(keys[4], (L, D, D))

    head = rnd(keys[8], (D, V))                      # Linear(d_model, V, bias=False)
    Vp = pl.cdiv(V, lane) * lane
    head_p = jnp.pad(head, ((0, 0), (0, Vp - V)))    # lane-dense (pad to 128)

    params = {
        "token_embed": rnd(keys[0], (V, D)),
        "pos_embed": rnd(keys[1], (max_seq_len, D)),
        # stacked per-layer weights (leading L axis)
        "wqkv": jnp.concatenate([wq, wk, wv], axis=-1),      # (L, D, 3D)
        "bqkv": jnp.zeros((L, 3 * D), jnp.float32),
        "wo": rnd(keys[5], (L, D, D)), "bo": jnp.zeros((L, D), jnp.float32),
        "ln1_w": jnp.ones((L, D), jnp.float32), "ln1_b": jnp.zeros((L, D), jnp.float32),
        "w1": rnd(keys[6], (L, D, F)), "b1": jnp.zeros((L, F), jnp.float32),
        "w2": rnd(keys[7], (L, F, D)), "b2": jnp.zeros((L, D), jnp.float32),
        "ln2_w": jnp.ones((L, D), jnp.float32), "ln2_b": jnp.zeros((L, D), jnp.float32),
        # final LN + head
        "ln_f_w": jnp.ones((D,), jnp.float32), "ln_f_b": jnp.zeros((D,), jnp.float32),
        "head": head, "head_p": head_p,
    }
    return params


def tiny_gpt_forward(idx, params, n_heads, num_batch_blocks=1):
    B, T = idx.shape
    D = params["token_embed"].shape[1]
    V = params["head"].shape[1]
    # Embedding gathers stay in plain JAX (glue); dropout == identity (eval).
    tok = jnp.take(params["token_embed"], idx, axis=0)        # (B, T, D)
    pos = params["pos_embed"][:T][None, :, :]                 # (1, T, D)
    x = (tok + pos).reshape(B * T, D)
    logits_p = tiny_gpt_fused(x, params, batch=B, seq=T, n_heads=n_heads,
                              num_batch_blocks=num_batch_blocks)
    return logits_p[:, :V].reshape(B, T, V)


# ----------------------------- pure-JAX reference ------------------------------

def _ln_ref(x, w, b, eps=1e-5):
    m = jnp.mean(x, axis=-1, keepdims=True)
    v = jnp.mean((x - m) ** 2, axis=-1, keepdims=True)
    return (x - m) * jax.lax.rsqrt(v + eps) * w + b


def tiny_gpt_reference(idx, params, n_heads):
    B, T = idx.shape
    D = params["token_embed"].shape[1]
    d_k = D // n_heads
    x = jnp.take(params["token_embed"], idx, axis=0) + params["pos_embed"][:T][None]
    L = params["wqkv"].shape[0]
    for l in range(L):
        qkv = x @ params["wqkv"][l] + params["bqkv"][l]
        q, k, v = jnp.split(qkv, 3, axis=-1)

        def heads(t):
            return t.reshape(B, T, n_heads, d_k).transpose(0, 2, 1, 3)

        Q, K, Vv = heads(q), heads(k), heads(v)
        s = jnp.einsum('bhqd,bhkd->bhqk', Q, K) / math.sqrt(d_k)
        p = jax.nn.softmax(s, axis=-1)
        o = jnp.einsum('bhqk,bhkd->bhqd', p, Vv).transpose(0, 2, 1, 3).reshape(B, T, D)
        attn = o @ params["wo"][l] + params["bo"][l]
        x = _ln_ref(x + attn, params["ln1_w"][l], params["ln1_b"][l])
        ff = x @ params["w1"][l] + params["b1"][l]
        ff = 0.5 * ff * (1.0 + jax.lax.erf(ff / math.sqrt(2.0)))
        ff = ff @ params["w2"][l] + params["b2"][l]
        x = _ln_ref(x + ff, params["ln2_w"][l], params["ln2_b"][l])
    x = _ln_ref(x, params["ln_f_w"], params["ln_f_b"])
    return x @ params["head"]


# ----------------------------------- main --------------------------------------

if __name__ == "__main__":
    vocab_size = 64
    d_model = 32
    n_heads = 4
    num_layers = 2
    ff_hidden = 64
    max_seq_len = 16
    B, T = 2, 8

    key = jax.random.PRNGKey(0)
    pkey, dkey = jax.random.split(key)
    params = init_params(pkey, vocab_size, d_model, n_heads, num_layers,
                         ff_hidden, max_seq_len)
    idx = jax.random.randint(dkey, (B, T), 0, vocab_size, dtype=jnp.int32)

    # num_batch_blocks=1: whole batch in one block (best for single-TC v5e/v6e).
    # On v7x set num_batch_blocks=2 to give both TensorCores work.
    logits = tiny_gpt_forward(idx, params, n_heads, num_batch_blocks=1)
    jax.block_until_ready(logits)

    assert logits.shape == (B, T, vocab_size), logits.shape
    assert bool(jnp.all(jnp.isfinite(logits)))

    ref = tiny_gpt_reference(idx, params, n_heads)
    assert bool(jnp.allclose(logits, ref, atol=2e-2, rtol=2e-2)), (
        float(jnp.max(jnp.abs(logits - ref))))

    print("KERNEL_OK")
</pallas_src>

<mosaic_0001>
module attributes {stable_mosaic.version = 11 : i64} {
  func.func @_fused_kernel(%arg0: i32, %arg1: i32, %arg2: memref<16x32xf32, #tpu.memory_space<vmem>>, %arg3: memref<1x32x96xf32, #tpu.memory_space<vmem>>, %arg4: memref<1x1x96xf32, #tpu.memory_space<vmem>>, %arg5: memref<1x32x32xf32, #tpu.memory_space<vmem>>, %arg6: memref<1x1x32xf32, #tpu.memory_space<vmem>>, %arg7: memref<1x1x32xf32, #tpu.memory_space<vmem>>, %arg8: memref<1x1x32xf32, #tpu.memory_space<vmem>>, %arg9: memref<1x32x64xf32, #tpu.memory_space<vmem>>, %arg10: memref<1x1x64xf32, #tpu.memory_space<vmem>>, %arg11: memref<1x64x32xf32, #tpu.memory_space<vmem>>, %arg12: memref<1x1x32xf32, #tpu.memory_space<vmem>>, %arg13: memref<1x1x32xf32, #tpu.memory_space<vmem>>, %arg14: memref<1x1x32xf32, #tpu.memory_space<vmem>>, %arg15: memref<1x32xf32, #tpu.memory_space<vmem>>, %arg16: memref<1x32xf32, #tpu.memory_space<vmem>>, %arg17: memref<32x128xf32, #tpu.memory_space<vmem>>, %arg18: memref<16x128xf32, #tpu.memory_space<vmem>>, %arg19: memref<16x32xf32, #tpu.memory_space<vmem>>) attributes {dimension_semantics = [#tpu.dimension_semantics<parallel>, #tpu.dimension_semantics<arbitrary>], iteration_bounds = array<i64: 1, 2>, scalar_prefetch = 0 : i64, scratch_operands = 1 : i64, tpu.core_type = #tpu.core_type<tc>, window_params = [{transform_indices = @transform_0, window_bounds = array<i64: 16, 32>}, {transform_indices = @transform_1, window_bounds = array<i64: 1, 32, 96>}, {transform_indices = @transform_2, window_bounds = array<i64: 1, 1, 96>}, {transform_indices = @transform_3, window_bounds = array<i64: 1, 32, 32>}, {transform_indices = @transform_4, window_bounds = array<i64: 1, 1, 32>}, {transform_indices = @transform_5, window_bounds = array<i64: 1, 1, 32>}, {transform_indices = @transform_6, window_bounds = array<i64: 1, 1, 32>}, {transform_indices = @transform_7, window_bounds = array<i64: 1, 32, 64>}, {transform_indices = @transform_8, window_bounds = array<i64: 1, 1, 64>}, {transform_indices = @transform_9, window_bounds = array<i64: 1, 64, 32>}, {transform_indices = @transform_10, window_bounds = array<i64: 1, 1, 32>}, {transform_indices = @transform_11, window_bounds = array<i64: 1, 1, 32>}, {transform_indices = @transform_12, window_bounds = array<i64: 1, 1, 32>}, {pipeline_mode = #tpu.pipeline_mode<synchronous>, transform_indices = @transform_13, window_bounds = array<i64: 1, 32>}, {pipeline_mode = #tpu.pipeline_mode<synchronous>, transform_indices = @transform_14, window_bounds = array<i64: 1, 32>}, {pipeline_mode = #tpu.pipeline_mode<synchronous>, transform_indices = @transform_15, window_bounds = array<i64: 32, 128>}, {transform_indices = @transform_16, window_bounds = array<i64: 16, 128>}]} {
    %c0_i32 = arith.constant 0 : i32
    %0 = arith.cmpi eq, %arg1, %c0_i32 : i32
    %1 = arith.extui %0 : i1 to i32
    %c0_i32_0 = arith.constant 0 : i32
    %2 = arith.cmpi ne, %1, %c0_i32_0 : i32
    scf.if %2 {
      %c0_77 = arith.constant 0 : index
      %c0_78 = arith.constant 0 : index
      %166 = vector.load %arg2[%c0_77, %c0_78] : memref<16x32xf32, #tpu.memory_space<vmem>>, vector<16x32xf32>
      %c0_79 = arith.constant 0 : index
      %c0_80 = arith.constant 0 : index
      %167 = vector.load %arg19[%c0_79, %c0_80] : memref<16x32xf32, #tpu.memory_space<vmem>>, vector<16x32xf32>
      tpu.vector_store %arg19[%c0_79, %c0_80], %166 {strides = array<i32>} : memref<16x32xf32, #tpu.memory_space<vmem>>, vector<16x32xf32>,
    } else {
    }
    %c0 = arith.constant 0 : index
    %c0_1 = arith.constant 0 : index
    %3 = vector.load %arg19[%c0, %c0_1] : memref<16x32xf32, #tpu.memory_space<vmem>>, vector<16x32xf32>
    %c0_2 = arith.constant 0 : index
    %c0_3 = arith.constant 0 : index
    %c0_4 = arith.constant 0 : index
    %4 = vector.load %arg3[%c0_2, %c0_3, %c0_4] : memref<1x32x96xf32, #tpu.memory_space<vmem>>, vector<1x32x96xf32>
    %5 = vector.shape_cast %4 : vector<1x32x96xf32> to vector<32x96xf32>
    %cst = arith.constant dense<0.000000e+00> : vector<16x96xf32>
    %6 = tpu.matmul %3, %5, %cst {dimension_numbers = #tpu.dot_dimension_numbers<[1], [0], [0], [1], [0, 0, 1, 1], [], []>} : vector<16x32xf32>, vector<32x96xf32>, vector<16x96xf32> -> vector<16x96xf32>
    %c0_5 = arith.constant 0 : index
    %c0_6 = arith.constant 0 : index
    %c0_7 = arith.constant 0 : index
    %7 = vector.load %arg4[%c0_5, %c0_6, %c0_7] : memref<1x1x96xf32, #tpu.memory_space<vmem>>, vector<1x1x96xf32>
    %8 = vector.shape_cast %7 : vector<1x1x96xf32> to vector<1x96xf32>
    %9 = vector.broadcast %8 : vector<1x96xf32> to vector<16x96xf32>
    %10 = arith.addf %6, %9 : vector<16x96xf32>
    %11 = vector.extract_strided_slice %10 {offsets = [0, 0], sizes = [16, 32], strides = [1, 1]} : vector<16x96xf32> to vector<16x32xf32>
    %12 = vector.shape_cast %11 : vector<16x32xf32> to vector<2x8x32xf32>
    %13 = vector.extract_strided_slice %10 {offsets = [0, 32], sizes = [16, 32], strides = [1, 1]} : vector<16x96xf32> to vector<16x32xf32>
    %14 = vector.shape_cast %13 : vector<16x32xf32> to vector<2x8x32xf32>
    %15 = vector.extract_strided_slice %10 {offsets = [0, 64], sizes = [16, 32], strides = [1, 1]} : vector<16x96xf32> to vector<16x32xf32>
    %16 = vector.shape_cast %15 : vector<16x32xf32> to vector<2x8x32xf32>
    %17 = vector.extract_strided_slice %12 {offsets = [0, 0, 0], sizes = [2, 8, 8], strides = [1, 1, 1]} : vector<2x8x32xf32> to vector<2x8x8xf32>
    %18 = vector.extract_strided_slice %14 {offsets = [0, 0, 0], sizes = [2, 8, 8], strides = [1, 1, 1]} : vector<2x8x32xf32> to vector<2x8x8xf32>
    %19 = vector.extract_strided_slice %16 {offsets = [0, 0, 0], sizes = [2, 8, 8], strides = [1, 1, 1]} : vector<2x8x32xf32> to vector<2x8x8xf32>
    "tpu.trace_start"() <{level = 10 : i32, message = "bqd,bkd->bqk"}> : () -> ()
    %cst_8 = arith.constant dense<0.000000e+00> : vector<2x8x8xf32>
    %20 = tpu.matmul %17, %18, %cst_8 {dimension_numbers = #tpu.dot_dimension_numbers<[2], [2], [1], [1], [0, 0, 0, 1, 1, 1], [0], [0]>} : vector<2x8x8xf32>, vector<2x8x8xf32>, vector<2x8x8xf32> -> vector<2x8x8xf32>
    "tpu.trace_stop"() : () -> ()
    %cst_9 = arith.constant 0.353553385 : f32
    %21 = vector.broadcast %cst_9 : f32 to vector<2x8x8xf32>
    %22 = arith.mulf %20, %21 : vector<2x8x8xf32>
    %cst_10 = arith.constant dense<0xFF800000> : vector<2x8xf32>
    %23 = vector.multi_reduction <maximumf>, %22, %cst_10 [2] : vector<2x8x8xf32> to vector<2x8xf32>
    %24 = vector.shape_cast %23 : vector<2x8xf32> to vector<2x8x1xf32>
    %25 = vector.broadcast %24 : vector<2x8x1xf32> to vector<2x8x8xf32>
    %26 = arith.subf %22, %25 : vector<2x8x8xf32>
    %27 = math.exp %26 : vector<2x8x8xf32>
    %cst_11 = arith.constant dense<0.000000e+00> : vector<2x8xf32>
    %28 = vector.multi_reduction <add>, %27, %cst_11 [2] : vector<2x8x8xf32> to vector<2x8xf32>
    %29 = vector.shape_cast %28 : vector<2x8xf32> to vector<2x8x1xf32>
    %30 = vector.broadcast %29 : vector<2x8x1xf32> to vector<2x8x8xf32>
    %31 = arith.divf %27, %30 : vector<2x8x8xf32>
    "tpu.trace_start"() <{level = 10 : i32, message = "bqk,bkd->bqd"}> : () -> ()
    %cst_12 = arith.constant dense<0.000000e+00> : vector<2x8x8xf32>
    %32 = tpu.matmul %31, %19, %cst_12 {dimension_numbers = #tpu.dot_dimension_numbers<[2], [1], [1], [2], [0, 0, 0, 1, 1, 2], [0], [0]>} : vector<2x8x8xf32>, vector<2x8x8xf32>, vector<2x8x8xf32> -> vector<2x8x8xf32>
    "tpu.trace_stop"() : () -> ()
    %33 = vector.extract_strided_slice %12 {offsets = [0, 0, 8], sizes = [2, 8, 8], strides = [1, 1, 1]} : vector<2x8x32xf32> to vector<2x8x8xf32>
    %34 = vector.extract_strided_slice %14 {offsets = [0, 0, 8], sizes = [2, 8, 8], strides = [1, 1, 1]} : vector<2x8x32xf32> to vector<2x8x8xf32>
    %35 = vector.extract_strided_slice %16 {offsets = [0, 0, 8], sizes = [2, 8, 8], strides = [1, 1, 1]} : vector<2x8x32xf32> to vector<2x8x8xf32>
    "tpu.trace_start"() <{level = 10 : i32, message = "bqd,bkd->bqk"}> : () -> ()
    %cst_13 = arith.constant dense<0.000000e+00> : vector<2x8x8xf32>
    %36 = tpu.matmul %33, %34, %cst_13 {dimension_numbers = #tpu.dot_dimension_numbers<[2], [2], [1], [1], [0, 0, 0, 1, 1, 1], [0], [0]>} : vector<2x8x8xf32>, vector<2x8x8xf32>, vector<2x8x8xf32> -> vector<2x8x8xf32>
    "tpu.trace_stop"() : () -> ()
    %cst_14 = arith.constant 0.353553385 : f32
    %37 = vector.broadcast %cst_14 : f32 to vector<2x8x8xf32>
    %38 = arith.mulf %36, %37 : vector<2x8x8xf32>
    %cst_15 = arith.constant dense<0xFF800000> : vector<2x8xf32>
    %39 = vector.multi_reduction <maximumf>, %38, %cst_15 [2] : vector<2x8x8xf32> to vector<2x8xf32>
    %40 = vector.shape_cast %39 : vector<2x8xf32> to vector<2x8x1xf32>
    %41 = vector.broadcast %40 : vector<2x8x1xf32> to vector<2x8x8xf32>
    %42 = arith.subf %38, %41 : vector<2x8x8xf32>
    %43 = math.exp %42 : vector<2x8x8xf32>
    %cst_16 = arith.constant dense<0.000000e+00> : vector<2x8xf32>
    %44 = vector.multi_reduction <add>, %43, %cst_16 [2] : vector<2x8x8xf32> to vector<2x8xf32>
    %45 = vector.shape_cast %44 : vector<2x8xf32> to vector<2x8x1xf32>
    %46 = vector.broadcast %45 : vector<2x8x1xf32> to vector<2x8x8xf32>
    %47 = arith.divf %43, %46 : vector<2x8x8xf32>
    "tpu.trace_start"() <{level = 10 : i32, message = "bqk,bkd->bqd"}> : () -> ()
    %cst_17 = arith.constant dense<0.000000e+00> : vector<2x8x8xf32>
    %48 = tpu.matmul %47, %35, %cst_17 {dimension_numbers = #tpu.dot_dimension_numbers<[2], [1], [1], [2], [0, 0, 0, 1, 1, 2], [0], [0]>} : vector<2x8x8xf32>, vector<2x8x8xf32>, vector<2x8x8xf32> -> vector<2x8x8xf32>
    "tpu.trace_stop"() : () -> ()
    %49 = vector.extract_strided_slice %12 {offsets = [0, 0, 16], sizes = [2, 8, 8], strides = [1, 1, 1]} : vector<2x8x32xf32> to vector<2x8x8xf32>
    %50 = vector.extract_strided_slice %14 {offsets = [0, 0, 16], sizes = [2, 8, 8], strides = [1, 1, 1]} : vector<2x8x32xf32> to vector<2x8x8xf32>
    %51 = vector.extract_strided_slice %16 {offsets = [0, 0, 16], sizes = [2, 8, 8], strides = [1, 1, 1]} : vector<2x8x32xf32> to vector<2x8x8xf32>
    "tpu.trace_start"() <{level = 10 : i32, message = "bqd,bkd->bqk"}> : () -> ()
    %cst_18 = arith.constant dense<0.000000e+00> : vector<2x8x8xf32>
    %52 = tpu.matmul %49, %50, %cst_18 {dimension_numbers = #tpu.dot_dimension_numbers<[2], [2], [1], [1], [0, 0, 0, 1, 1, 1], [0], [0]>} : vector<2x8x8xf32>, vector<2x8x8xf32>, vector<2x8x8xf32> -> vector<2x8x8xf32>
    "tpu.trace_stop"() : () -> ()
    %cst_19 = arith.constant 0.353553385 : f32
    %53 = vector.broadcast %cst_19 : f32 to vector<2x8x8xf32>
    %54 = arith.mulf %52, %53 : vector<2x8x8xf32>
    %cst_20 = arith.constant dense<0xFF800000> : vector<2x8xf32>
    %55 = vector.multi_reduction <maximumf>, %54, %cst_20 [2] : vector<2x8x8xf32> to vector<2x8xf32>
    %56 = vector.shape_cast %55 : vector<2x8xf32> to vector<2x8x1xf32>
    %57 = vector.broadcast %56 : vector<2x8x1xf32> to vector<2x8x8xf32>
    %58 = arith.subf %54, %57 : vector<2x8x8xf32>
    %59 = math.exp %58 : vector<2x8x8xf32>
    %cst_21 = arith.constant dense<0.000000e+00> : vector<2x8xf32>
    %60 = vector.multi_reduction <add>, %59, %cst_21 [2] : vector<2x8x8xf32> to vector<2x8xf32>
    %61 = vector.shape_cast %60 : vector<2x8xf32> to vector<2x8x1xf32>
    %62 = vector.broadcast %61 : vector<2x8x1xf32> to vector<2x8x8xf32>
    %63 = arith.divf %59, %62 : vector<2x8x8xf32>
    "tpu.trace_start"() <{level = 10 : i32, message = "bqk,bkd->bqd"}> : () -> ()
    %cst_22 = arith.constant dense<0.000000e+00> : vector<2x8x8xf32>
    %64 = tpu.matmul %63, %51, %cst_22 {dimension_numbers = #tpu.dot_dimension_numbers<[2], [1], [1], [2], [0, 0, 0, 1, 1, 2], [0], [0]>} : vector<2x8x8xf32>, vector<2x8x8xf32>, vector<2x8x8xf32> -> vector<2x8x8xf32>
    "tpu.trace_stop"() : () -> ()
    %65 = vector.extract_strided_slice %12 {offsets = [0, 0, 24], sizes = [2, 8, 8], strides = [1, 1, 1]} : vector<2x8x32xf32> to vector<2x8x8xf32>
    %66 = vector.extract_strided_slice %14 {offsets = [0, 0, 24], sizes = [2, 8, 8], strides = [1, 1, 1]} : vector<2x8x32xf32> to vector<2x8x8xf32>
    %67 = vector.extract_strided_slice %16 {offsets = [0, 0, 24], sizes = [2, 8, 8], strides = [1, 1, 1]} : vector<2x8x32xf32> to vector<2x8x8xf32>
    "tpu.trace_start"() <{level = 10 : i32, message = "bqd,bkd->bqk"}> : () -> ()
    %cst_23 = arith.constant dense<0.000000e+00> : vector<2x8x8xf32>
    %68 = tpu.matmul %65, %66, %cst_23 {dimension_numbers = #tpu.dot_dimension_numbers<[2], [2], [1], [1], [0, 0, 0, 1, 1, 1], [0], [0]>} : vector<2x8x8xf32>, vector<2x8x8xf32>, vector<2x8x8xf32> -> vector<2x8x8xf32>
    "tpu.trace_stop"() : () -> ()
    %cst_24 = arith.constant 0.353553385 : f32
    %69 = vector.broadcast %cst_24 : f32 to vector<2x8x8xf32>
    %70 = arith.mulf %68, %69 : vector<2x8x8xf32>
    %cst_25 = arith.constant dense<0xFF800000> : vector<2x8xf32>
    %71 = vector.multi_reduction <maximumf>, %70, %cst_25 [2] : vector<2x8x8xf32> to vector<2x8xf32>
    %72 = vector.shape_cast %71 : vector<2x8xf32> to vector<2x8x1xf32>
    %73 = vector.broadcast %72 : vector<2x8x1xf32> to vector<2x8x8xf32>
    %74 = arith.subf %70, %73 : vector<2x8x8xf32>
    %75 = math.exp %74 : vector<2x8x8xf32>
    %cst_26 = arith.constant dense<0.000000e+00> : vector<2x8xf32>
    %76 = vector.multi_reduction <add>, %75, %cst_26 [2] : vector<2x8x8xf32> to vector<2x8xf32>
    %77 = vector.shape_cast %76 : vector<2x8xf32> to vector<2x8x1xf32>
    %78 = vector.broadcast %77 : vector<2x8x1xf32> to vector<2x8x8xf32>
    %79 = arith.divf %75, %78 : vector<2x8x8xf32>
    "tpu.trace_start"() <{level = 10 : i32, message = "bqk,bkd->bqd"}> : () -> ()
    %cst_27 = arith.constant dense<0.000000e+00> : vector<2x8x8xf32>
    %80 = tpu.matmul %79, %67, %cst_27 {dimension_numbers = #tpu.dot_dimension_numbers<[2], [1], [1], [2], [0, 0, 0, 1, 1, 2], [0], [0]>} : vector<2x8x8xf32>, vector<2x8x8xf32>, vector<2x8x8xf32> -> vector<2x8x8xf32>
    "tpu.trace_stop"() : () -> ()
    %81 = tpu.concatenate %32, %48, %64, %80 in 2 : vector<2x8x8xf32>, vector<2x8x8xf32>, vector<2x8x8xf32>, vector<2x8x8xf32> -> vector<2x8x32xf32>
    %82 = vector.shape_cast %81 : vector<2x8x32xf32> to vector<16x32xf32>
    %c0_28 = arith.constant 0 : index
    %c0_29 = arith.constant 0 : index
    %c0_30 = arith.constant 0 : index
    %83 = vector.load %arg5[%c0_28, %c0_29, %c0_30] : memref<1x32x32xf32, #tpu.memory_space<vmem>>, vector<1x32x32xf32>
    %84 = vector.shape_cast %83 : vector<1x32x32xf32> to vector<32x32xf32>
    %cst_31 = arith.constant dense<0.000000e+00> : vector<16x32xf32>
    %85 = tpu.matmul %82, %84, %cst_31 {dimension_numbers = #tpu.dot_dimension_numbers<[1], [0], [0], [1], [0, 0, 1, 1], [], []>} : vector<16x32xf32>, vector<32x32xf32>, vector<16x32xf32> -> vector<16x32xf32>
    %c0_32 = arith.constant 0 : index
    %c0_33 = arith.constant 0 : index
    %c0_34 = arith.constant 0 : index
    %86 = vector.load %arg6[%c0_32, %c0_33, %c0_34] : memref<1x1x32xf32, #tpu.memory_space<vmem>>, vector<1x1x32xf32>
    %87 = vector.shape_cast %86 : vector<1x1x32xf32> to vector<1x32xf32>
    %88 = vector.broadcast %87 : vector<1x32xf32> to vector<16x32xf32>
    %89 = arith.addf %85, %88 : vector<16x32xf32>
    %90 = arith.addf %3, %89 : vector<16x32xf32>
    %c0_35 = arith.constant 0 : index
    %c0_36 = arith.constant 0 : index
    %c0_37 = arith.constant 0 : index
    %91 = vector.load %arg7[%c0_35, %c0_36, %c0_37] : memref<1x1x32xf32, #tpu.memory_space<vmem>>, vector<1x1x32xf32>
    %92 = vector.shape_cast %91 : vector<1x1x32xf32> to vector<1x32xf32>
    %c0_38 = arith.constant 0 : index
    %c0_39 = arith.constant 0 : index
    %c0_40 = arith.constant 0 : index
    %93 = vector.load %arg8[%c0_38, %c0_39, %c0_40] : memref<1x1x32xf32, #tpu.memory_space<vmem>>, vector<1x1x32xf32>
    %94 = vector.shape_cast %93 : vector<1x1x32xf32> to vector<1x32xf32>
    %cst_41 = arith.constant dense<0.000000e+00> : vector<16xf32>
    %95 = vector.multi_reduction <add>, %90, %cst_41 [1] : vector<16x32xf32> to vector<16xf32>
    %96 = vector.shape_cast %95 : vector<16xf32> to vector<16x1xf32>
    %cst_42 = arith.constant 3.200000e+01 : f32
    %97 = vector.broadcast %cst_42 : f32 to vector<16x1xf32>
    %98 = arith.divf %96, %97 : vector<16x1xf32>
    %99 = vector.broadcast %98 : vector<16x1xf32> to vector<16x32xf32>
    %100 = arith.subf %90, %99 : vector<16x32xf32>
    %101 = arith.mulf %100, %100 : vector<16x32xf32>
    %cst_43 = arith.constant dense<0.000000e+00> : vector<16xf32>
    %102 = vector.multi_reduction <add>, %101, %cst_43 [1] : vector<16x32xf32> to vector<16xf32>
    %103 = vector.shape_cast %102 : vector<16xf32> to vector<16x1xf32>
    %cst_44 = arith.constant 3.200000e+01 : f32
    %104 = vector.broadcast %cst_44 : f32 to vector<16x1xf32>
    %105 = arith.divf %103, %104 : vector<16x1xf32>
    %cst_45 = arith.constant 9.99999974E-6 : f32
    %106 = vector.broadcast %cst_45 : f32 to vector<16x1xf32>
    %107 = arith.addf %105, %106 : vector<16x1xf32>
    %108 = math.rsqrt %107 : vector<16x1xf32>
    %109 = vector.broadcast %108 : vector<16x1xf32> to vector<16x32xf32>
    %110 = arith.mulf %100, %109 : vector<16x32xf32>
    %111 = vector.broadcast %92 : vector<1x32xf32> to vector<16x32xf32>
    %112 = arith.mulf %110, %111 : vector<16x32xf32>
    %113 = vector.broadcast %94 : vector<1x32xf32> to vector<16x32xf32>
    %114 = arith.addf %112, %113 : vector<16x32xf32>
    %c0_46 = arith.constant 0 : index
    %c0_47 = arith.constant 0 : index
    %c0_48 = arith.constant 0 : index
    %115 = vector.load %arg9[%c0_46, %c0_47, %c0_48] : memref<1x32x64xf32, #tpu.memory_space<vmem>>, vector<1x32x64xf32>
    %116 = vector.shape_cast %115 : vector<1x32x64xf32> to vector<32x64xf32>
    %cst_49 = arith.constant dense<0.000000e+00> : vector<16x64xf32>
    %117 = tpu.matmul %114, %116, %cst_49 {dimension_numbers = #tpu.dot_dimension_numbers<[1], [0], [0], [1], [0, 0, 1, 1], [], []>} : vector<16x32xf32>, vector<32x64xf32>, vector<16x64xf32> -> vector<16x64xf32>
    %c0_50 = arith.constant 0 : index
    %c0_51 = arith.constant 0 : index
    %c0_52 = arith.constant 0 : index
    %118 = vector.load %arg10[%c0_50, %c0_51, %c0_52] : memref<1x1x64xf32, #tpu.memory_space<vmem>>, vector<1x1x64xf32>
    %119 = vector.shape_cast %118 : vector<1x1x64xf32> to vector<1x64xf32>
    %120 = vector.broadcast %119 : vector<1x64xf32> to vector<16x64xf32>
    %121 = arith.addf %117, %120 : vector<16x64xf32>
    %cst_53 = arith.constant 5.000000e-01 : f32
    %122 = vector.broadcast %cst_53 : f32 to vector<16x64xf32>
    %123 = arith.mulf %122, %121 : vector<16x64xf32>
    %cst_54 = arith.constant 1.41421354 : f32
    %124 = vector.broadcast %cst_54 : f32 to vector<16x64xf32>
    %125 = arith.divf %121, %124 : vector<16x64xf32>
    %126 = math.erf %125 : vector<16x64xf32>
    %cst_55 = arith.constant 1.000000e+00 : f32
    %127 = vector.broadcast %cst_55 : f32 to vector<16x64xf32>
    %128 = arith.addf %127, %126 : vector<16x64xf32>
    %129 = arith.mulf %123, %128 : vector<16x64xf32>
    %c0_56 = arith.constant 0 : index
    %c0_57 = arith.constant 0 : index
    %c0_58 = arith.constant 0 : index
    %130 = vector.load %arg11[%c0_56, %c0_57, %c0_58] : memref<1x64x32xf32, #tpu.memory_space<vmem>>, vector<1x64x32xf32>
    %131 = vector.shape_cast %130 : vector<1x64x32xf32> to vector<64x32xf32>
    %cst_59 = arith.constant dense<0.000000e+00> : vector<16x32xf32>
    %132 = tpu.matmul %129, %131, %cst_59 {dimension_numbers = #tpu.dot_dimension_numbers<[1], [0], [0], [1], [0, 0, 1, 1], [], []>} : vector<16x64xf32>, vector<64x32xf32>, vector<16x32xf32> -> vector<16x32xf32>
    %c0_60 = arith.constant 0 : index
    %c0_61 = arith.constant 0 : index
    %c0_62 = arith.constant 0 : index
    %133 = vector.load %arg12[%c0_60, %c0_61, %c0_62] : memref<1x1x32xf32, #tpu.memory_space<vmem>>, vector<1x1x32xf32>
    %134 = vector.shape_cast %133 : vector<1x1x32xf32> to vector<1x32xf32>
    %135 = vector.broadcast %134 : vector<1x32xf32> to vector<16x32xf32>
    %136 = arith.addf %132, %135 : vector<16x32xf32>
    %137 = arith.addf %114, %136 : vector<16x32xf32>
    %c0_63 = arith.constant 0 : index
    %c0_64 = arith.constant 0 : index
    %c0_65 = arith.constant 0 : index
    %138 = vector.load %arg13[%c0_63, %c0_64, %c0_65] : memref<1x1x32xf32, #tpu.memory_space<vmem>>, vector<1x1x32xf32>
    %139 = vector.shape_cast %138 : vector<1x1x32xf32> to vector<1x32xf32>
    %c0_66 = arith.constant 0 : index
    %c0_67 = arith.constant 0 : index
    %c0_68 = arith.constant 0 : index
    %140 = vector.load %arg14[%c0_66, %c0_67, %c0_68] : memref<1x1x32xf32, #tpu.memory_space<vmem>>, vector<1x1x32xf32>
    %141 = vector.shape_cast %140 : vector<1x1x32xf32> to vector<1x32xf32>
    %cst_69 = arith.constant dense<0.000000e+00> : vector<16xf32>
    %142 = vector.multi_reduction <add>, %137, %cst_69 [1] : vector<16x32xf32> to vector<16xf32>
    %143 = vector.shape_cast %142 : vector<16xf32> to vector<16x1xf32>
    %cst_70 = arith.constant 3.200000e+01 : f32
    %144 = vector.broadcast %cst_70 : f32 to vector<16x1xf32>
    %145 = arith.divf %143, %144 : vector<16x1xf32>
    %146 = vector.broadcast %145 : vector<16x1xf32> to vector<16x32xf32>
    %147 = arith.subf %137, %146 : vector<16x32xf32>
    %148 = arith.mulf %147, %147 : vector<16x32xf32>
    %cst_71 = arith.constant dense<0.000000e+00> : vector<16xf32>
    %149 = vector.multi_reduction <add>, %148, %cst_71 [1] : vector<16x32xf32> to vector<16xf32>
    %150 = vector.shape_cast %149 : vector<16xf32> to vector<16x1xf32>
    %cst_72 = arith.constant 3.200000e+01 : f32
    %151 = vector.broadcast %cst_72 : f32 to vector<16x1xf32>
    %152 = arith.divf %150, %151 : vector<16x1xf32>
    %cst_73 = arith.constant 9.99999974E-6 : f32
    %153 = vector.broadcast %cst_73 : f32 to vector<16x1xf32>
    %154 = arith.addf %152, %153 : vector<16x1xf32>
    %155 = math.rsqrt %154 : vector<16x1xf32>
    %156 = vector.broadcast %155 : vector<16x1xf32> to vector<16x32xf32>
    %157 = arith.mulf %147, %156 : vector<16x32xf32>
    %158 = vector.broadcast %139 : vector<1x32xf32> to vector<16x32xf32>
    %159 = arith.mulf %157, %158 : vector<16x32xf32>
    %160 = vector.broadcast %141 : vector<1x32xf32> to vector<16x32xf32>
    %161 = arith.addf %159, %160 : vector<16x32xf32>
    %c0_74 = arith.constant 0 : index
    %c0_75 = arith.constant 0 : index
    %162 = vector.load %arg19[%c0_74, %c0_75] : memref<16x32xf32, #tpu.memory_space<vmem>>, vector<16x32xf32>
    tpu.vector_store %arg19[%c0_74, %c0_75], %161 {strides = array<i32>} : memref<16x32xf32, #tpu.memory_space<vmem>>, vector<16x32xf32>,
    %c1_i32 = arith.constant 1 : i32
    %163 = arith.cmpi eq, %arg1, %c1_i32 : i32
    %164 = arith.extui %163 : i1 to i32
    %c0_i32_76 = arith.constant 0 : i32
    %165 = arith.cmpi ne, %164, %c0_i32_76 : i32
    scf.if %165 {
      %c0_77 = arith.constant 0 : index
      %c0_78 = arith.constant 0 : index
      %166 = vector.load %arg15[%c0_77, %c0_78] : memref<1x32xf32, #tpu.memory_space<vmem>>, vector<1x32xf32>
      %c0_79 = arith.constant 0 : index
      %c0_80 = arith.constant 0 : index
      %167 = vector.load %arg16[%c0_79, %c0_80] : memref<1x32xf32, #tpu.memory_space<vmem>>, vector<1x32xf32>
      %cst_81 = arith.constant dense<0.000000e+00> : vector<16xf32>
      %168 = vector.multi_reduction <add>, %161, %cst_81 [1] : vector<16x32xf32> to vector<16xf32>
      %169 = vector.shape_cast %168 : vector<16xf32> to vector<16x1xf32>
      %cst_82 = arith.constant 3.200000e+01 : f32
      %170 = vector.broadcast %cst_82 : f32 to vector<16x1xf32>
      %171 = arith.divf %169, %170 : vector<16x1xf32>
      %172 = vector.broadcast %171 : vector<16x1xf32> to vector<16x32xf32>
      %173 = arith.subf %161, %172 : vector<16x32xf32>
      %174 = arith.mulf %173, %173 : vector<16x32xf32>
      %cst_83 = arith.constant dense<0.000000e+00> : vector<16xf32>
      %175 = vector.multi_reduction <add>, %174, %cst_83 [1] : vector<16x32xf32> to vector<16xf32>
      %176 = vector.shape_cast %175 : vector<16xf32> to vector<16x1xf32>
      %cst_84 = arith.constant 3.200000e+01 : f32
      %177 = vector.broadcast %cst_84 : f32 to vector<16x1xf32>
      %178 = arith.divf %176, %177 : vector<16x1xf32>
      %cst_85 = arith.constant 9.99999974E-6 : f32
      %179 = vector.broadcast %cst_85 : f32 to vector<16x1xf32>
      %180 = arith.addf %178, %179 : vector<16x1xf32>
      %181 = math.rsqrt %180 : vector<16x1xf32>
      %182 = vector.broadcast %181 : vector<16x1xf32> to vector<16x32xf32>
      %183 = arith.mulf %173, %182 : vector<16x32xf32>
      %184 = vector.broadcast %166 : vector<1x32xf32> to vector<16x32xf32>
      %185 = arith.mulf %183, %184 : vector<16x32xf32>
      %186 = vector.broadcast %167 : vector<1x32xf32> to vector<16x32xf32>
      %187 = arith.addf %185, %186 : vector<16x32xf32>
      %c0_86 = arith.constant 0 : index
      %c0_87 = arith.constant 0 : index
      %188 = vector.load %arg17[%c0_86, %c0_87] : memref<32x128xf32, #tpu.memory_space<vmem>>, vector<32x128xf32>
      %cst_88 = arith.constant dense<0.000000e+00> : vector<16x128xf32>
      %189 = tpu.matmul %187, %188, %cst_88 {dimension_numbers = #tpu.dot_dimension_numbers<[1], [0], [0], [1], [0, 0, 1, 1], [], []>} : vector<16x32xf32>, vector<32x128xf32>, vector<16x128xf32> -> vector<16x128xf32>
      %c0_89 = arith.constant 0 : index
      %c0_90 = arith.constant 0 : index
      %190 = vector.load %arg18[%c0_89, %c0_90] : memref<16x128xf32, #tpu.memory_space<vmem>>, vector<16x128xf32>
      tpu.vector_store %arg18[%c0_89, %c0_90], %189 {strides = array<i32>} : memref<16x128xf32, #tpu.memory_space<vmem>>, vector<16x128xf32>,
    } else {
    }
    return
  }
  func.func @transform_0(%arg0: i32, %arg1: i32) -> (i32, i32) {
    %c0_i32 = arith.constant 0 : i32
    %c0_i32_0 = arith.constant 0 : i32
    return %arg0, %c0_i32 : i32, i32
  }
  func.func @transform_1(%arg0: i32, %arg1: i32) -> (i32, i32, i32) {
    %c0_i32 = arith.constant 0 : i32
    %c0_i32_0 = arith.constant 0 : i32
    %c0_i32_1 = arith.constant 0 : i32
    return %arg1, %c0_i32, %c0_i32_0 : i32, i32, i32
  }
  func.func @transform_2(%arg0: i32, %arg1: i32) -> (i32, i32, i32) {
    %c0_i32 = arith.constant 0 : i32
    %c0_i32_0 = arith.constant 0 : i32
    %c0_i32_1 = arith.constant 0 : i32
    return %arg1, %c0_i32, %c0_i32_0 : i32, i32, i32
  }
  func.func @transform_3(%arg0: i32, %arg1: i32) -> (i32, i32, i32) {
    %c0_i32 = arith.constant 0 : i32
    %c0_i32_0 = arith.constant 0 : i32
    %c0_i32_1 = arith.constant 0 : i32
    return %arg1, %c0_i32, %c0_i32_0 : i32, i32, i32
  }
  func.func @transform_4(%arg0: i32, %arg1: i32) -> (i32, i32, i32) {
    %c0_i32 = arith.constant 0 : i32
    %c0_i32_0 = arith.constant 0 : i32
    %c0_i32_1 = arith.constant 0 : i32
    return %arg1, %c0_i32, %c0_i32_0 : i32, i32, i32
  }
  func.func @transform_5(%arg0: i32, %arg1: i32) -> (i32, i32, i32) {
    %c0_i32 = arith.constant 0 : i32
    %c0_i32_0 = arith.constant 0 : i32
    %c0_i32_1 = arith.constant 0 : i32
    return %arg1, %c0_i32, %c0_i32_0 : i32, i32, i32
  }
  func.func @transform_6(%arg0: i32, %arg1: i32) -> (i32, i32, i32) {
    %c0_i32 = arith.constant 0 : i32
    %c0_i32_0 = arith.constant 0 : i32
    %c0_i32_1 = arith.constant 0 : i32
    return %arg1, %c0_i32, %c0_i32_0 : i32, i32, i32
  }
  func.func @transform_7(%arg0: i32, %arg1: i32) -> (i32, i32, i32) {
    %c0_i32 = arith.constant 0 : i32
    %c0_i32_0 = arith.constant 0 : i32
    %c0_i32_1 = arith.constant 0 : i32
    return %arg1, %c0_i32, %c0_i32_0 : i32, i32, i32
  }
  func.func @transform_8(%arg0: i32, %arg1: i32) -> (i32, i32, i32) {
    %c0_i32 = arith.constant 0 : i32
    %c0_i32_0 = arith.constant 0 : i32
    %c0_i32_1 = arith.constant 0 : i32
    return %arg1, %c0_i32, %c0_i32_0 : i32, i32, i32
  }
  func.func @transform_9(%arg0: i32, %arg1: i32) -> (i32, i32, i32) {
    %c0_i32 = arith.constant 0 : i32
    %c0_i32_0 = arith.constant 0 : i32
    %c0_i32_1 = arith.constant 0 : i32
    return %arg1, %c0_i32, %c0_i32_0 : i32, i32, i32
  }
  func.func @transform_10(%arg0: i32, %arg1: i32) -> (i32, i32, i32) {
    %c0_i32 = arith.constant 0 : i32
    %c0_i32_0 = arith.constant 0 : i32
    %c0_i32_1 = arith.constant 0 : i32
    return %arg1, %c0_i32, %c0_i32_0 : i32, i32, i32
  }
  func.func @transform_11(%arg0: i32, %arg1: i32) -> (i32, i32, i32) {
    %c0_i32 = arith.constant 0 : i32
    %c0_i32_0 = arith.constant 0 : i32
    %c0_i32_1 = arith.constant 0 : i32
    return %arg1, %c0_i32, %c0_i32_0 : i32, i32, i32
  }
  func.func @transform_12(%arg0: i32, %arg1: i32) -> (i32, i32, i32) {
    %c0_i32 = arith.constant 0 : i32
    %c0_i32_0 = arith.constant 0 : i32
    %c0_i32_1 = arith.constant 0 : i32
    return %arg1, %c0_i32, %c0_i32_0 : i32, i32, i32
  }
  func.func @transform_13(%arg0: i32, %arg1: i32) -> (i32, i32) {
    %c0_i32 = arith.constant 0 : i32
    %c0_i32_0 = arith.constant 0 : i32
    %c0_i32_1 = arith.constant 0 : i32
    return %c0_i32, %c0_i32_0 : i32, i32
  }
  func.func @transform_14(%arg0: i32, %arg1: i32) -> (i32, i32) {
    %c0_i32 = arith.constant 0 : i32
    %c0_i32_0 = arith.constant 0 : i32
    %c0_i32_1 = arith.constant 0 : i32
    return %c0_i32, %c0_i32_0 : i32, i32
  }
  func.func @transform_15(%arg0: i32, %arg1: i32) -> (i32, i32) {
    %c0_i32 = arith.constant 0 : i32
    %c0_i32_0 = arith.constant 0 : i32
    %c0_i32_1 = arith.constant 0 : i32
    return %c0_i32, %c0_i32_0 : i32, i32
  }
  func.func @transform_16(%arg0: i32, %arg1: i32) -> (i32, i32) {
    %c0_i32 = arith.constant 0 : i32
    %c0_i32_0 = arith.constant 0 : i32
    return %arg0, %c0_i32 : i32, i32
  }
}

</mosaic_0001>

<llo_original>
// kernel: tpu_custom_call.1
$region0: #{tpu_custom_call.1}
  #allocation0 [shape = 'u32[]', space=smem, size = 0x4, offset = 0x4, fixed_abs, tag = 'smem constant byte address 0x4 - core index']
  #allocation1 [shape = 'u32[144,128]{1,0:T(1,128)}', space=vmem, size = 0x12000, scoped, tag = 'internal scratch']
  #allocation2 [shape = 'f32[16,32]{1,0:T(8,128)}', space=vmem, size = 0x2000, scoped, tag = 'scratch operand']
  %s0 = inlined_call_operand.hbm [shape: f32[16,32], index: 0, kind: input, shape index: {}]
  %s1 = inlined_call_operand.vmem [shape: f32[2,32,96], index: 1, kind: input, shape index: {}]
  %s2 = inlined_call_operand.vmem [shape: f32[2,1,96], index: 2, kind: input, shape index: {}]
  %s3 = inlined_call_operand.vmem [shape: f32[2,32,32], index: 3, kind: input, shape index: {}]
  %s4 = inlined_call_operand.vmem [shape: f32[2,1,32], index: 4, kind: input, shape index: {}]
  %s5 = inlined_call_operand.vmem [shape: f32[2,1,32], index: 5, kind: input, shape index: {}]
  %s6 = inlined_call_operand.vmem [shape: f32[2,1,32], index: 6, kind: input, shape index: {}]
  %s7 = inlined_call_operand.vmem [shape: f32[2,32,64], index: 7, kind: input, shape index: {}]
  %s8 = inlined_call_operand.vmem [shape: f32[2,1,64], index: 8, kind: input, shape index: {}]
  %s9 = inlined_call_operand.vmem [shape: f32[2,64,32], index: 9, kind: input, shape index: {}]
  %s10 = inlined_call_operand.vmem [shape: f32[2,1,32], index: 10, kind: input, shape index: {}]
  %s11 = inlined_call_operand.vmem [shape: f32[2,1,32], index: 11, kind: input, shape index: {}]
  %s12 = inlined_call_operand.vmem [shape: f32[2,1,32], index: 12, kind: input, shape index: {}]
  %s13 = inlined_call_operand.vmem [shape: f32[1,32], index: 13, kind: input, shape index: {}]
  %s14 = inlined_call_operand.vmem [shape: f32[1,32], index: 14, kind: input, shape index: {}]
  %s15 = inlined_call_operand.hbm [shape: f32[32,128], index: 15, kind: input, shape index: {}]
  %s16 = inlined_call_operand.hbm [shape: f32[16,128], index: 16, kind: output, shape index: {}]
  %s17 = sld [smem:[#allocation0]]
  $region113: #{tpu_custom_call.1} parent=0
    _
  %s19 = ssub.s32 1, %s17
  %s20 = scalar_select 0, %s19, %s17
  $region1: #{tpu_custom_call.1} parent=0
    #allocation3 [shape = 'u8[8192]{0}', space=vmem, size = 0x2000, scoped, tag = 'input window, operand 0, single buffered']
    #allocation4 [shape = 's32[2]{0}', space=sflag, size = 0x8, scoped, tag = 'scoped memory for tpu_custom_call.1']
    #allocation5 [shape = 's32[2]{0}', space=sflag, size = 0x8, scoped, tag = 'scoped memory for tpu_custom_call.1']
    #allocation6 [shape = 'u8[16384]{0}', space=vmem, size = 0x4000, scoped, tag = 'input window, operand 15, single buffered']
    #allocation7 [shape = 's32[1]{0}', space=sflag, size = 0x4, scoped, tag = 'scoped memory for tpu_custom_call.1']
    #allocation8 [shape = 'u8[8192]{0}', space=vmem, size = 0x2000, scoped, tag = 'output window, operand 0, single buffered']
    %21 = vsyncpa [#allocation4], 0
    %22 = vsyncpa [#allocation7], 0
    %23 = vsyncpa [#allocation5], 0
    loop: start=0, step=1, limit=4
    $region2: #{tpu_custom_call.1} parent=1 // loop_pre_header
      _
    $region3: #{tpu_custom_call.1} parent=1 // loop_header
      %s25 = sphi 0, %s29
      %p26 = scmp.ge.s32.totalorder %s25, 4
      %s32 = sphi 0, %s44
      %s33 = sphi 0, %s40
      %s34 = sphi 0, %s32
      %s35 = sphi 0, %s33
      %s36 = sphi 0, %s34
      %s37 = sphi 0, %s35
      %s47 = sphi 0, %s49
      %s50 = sphi 0, %s47
      %s51 = sphi 0, %s50
      %s67 = sphi 0, %s51
      %s73 = sphi 0, %s75
      %s76 = sphi 0, %s73
      %s77 = sphi 0, %s76
      %s93 = sphi 0, %s77
      %s99 = sphi 0, %s101
      %s102 = sphi 0, %s99
      %s103 = sphi 0, %s102
      %s119 = sphi 0, %s103
      %s125 = sphi 0, %s127
      %s128 = sphi 0, %s125
      %s129 = sphi 0, %s128
      %s145 = sphi 0, %s129
      %s151 = sphi 0, %s153
      %s154 = sphi 0, %s151
      %s155 = sphi 0, %s154
      %s171 = sphi 0, %s155
      %s177 = sphi 0, %s179
      %s180 = sphi 0, %s177
      %s181 = sphi 0, %s180
      %s197 = sphi 0, %s181
      %s203 = sphi 0, %s205
      %s206 = sphi 0, %s203
      %s207 = sphi 0, %s206
      %s223 = sphi 0, %s207
      %s229 = sphi 0, %s231
      %s232 = sphi 0, %s229
      %s233 = sphi 0, %s232
      %s249 = sphi 0, %s233
      %s255 = sphi 0, %s257
      %s258 = sphi 0, %s255
      %s259 = sphi 0, %s258
      %s275 = sphi 0, %s259
      %s281 = sphi 0, %s283
      %s284 = sphi 0, %s281
      %s285 = sphi 0, %s284
      %s301 = sphi 0, %s285
      %s307 = sphi 0, %s309
      %s310 = sphi 0, %s307
      %s311 = sphi 0, %s310
      %s327 = sphi 0, %s311
      %s333 = sphi 0, %s335
      %s336 = sphi 0, %s333
      %s337 = sphi 0, %s336
      %s353 = sphi 0, %s337
      %s359 = sphi 0, %s361
      %s362 = sphi 0, %s359
      %s363 = sphi 0, %s362
      %s379 = sphi 0, %s363
      %s383 = sphi 0, %s383
      %s385 = sphi 0, %s383
      %s386 = sphi 0, %s385
      %s400 = sphi 0, %s386
      %s404 = sphi 0, %s404
      %s406 = sphi 0, %s404
      %s407 = sphi 0, %s406
      %s421 = sphi 0, %s407
      %s425 = sphi 0, %s425
      %s427 = sphi 0, %s425
      %s428 = sphi 0, %s427
      %s442 = sphi 0, %s428
      %s448 = sphi 0, %s450
      %s451 = sphi 0, %s448
      %s452 = sphi 0, %s451
      %s468 = sphi 0, %s452
    $region4: #{tpu_custom_call.1} parent=1 // loop_header_branch
      %28 = sbr.rel (%p26) target = $region8
    $region5: #{tpu_custom_call.1} parent=1 // loop_body
      %s30 = ssub.s32 %s25, 1
      %s31 = ssub.s32 %s25, 2
      %s38 = sadd.s32 1, %s33
      %p39 = scmp.ge.s32.totalorder %s38, 2
      %s40 = scalar_select %p39, 0, %s38
      %s41 = sadd.s32 1, %s32
      %s42 = scalar_select %p39, %s41, %s32
      %p43 = scmp.ge.s32.totalorder %s42, 1
      %s44 = scalar_select %p43, 0, %s42
      %s45 = ssub.s32 %s32, %s44
      %p46 = scmp.eq.s32.totalorder %s45, 0
      %s48 = sadd.s32 %s47, 1
      %s49 = scalar_select %p46, %s47, %s48
      %p52 = pneg %p46
      %p53 = scmp.eq.s32.totalorder %s25, 1
      %p54 = por %p52, %p53
      %p55 = scmp.ne.s32.totalorder %s47, %s50
      %p56 = scmp.eq.s32.totalorder %s25, 0
      %p57 = por %p55, %p56
      %p58 = scmp.ne.s32.totalorder %s47, %s50
      %p59 = scmp.eq.s32.totalorder %s30, 1
      %p60 = por %p58, %p59
      %p61 = scmp.ne.s32.totalorder %s50, %s51
      %p62 = scmp.eq.s32.totalorder %s30, 0
      %p63 = por %p61, %p62
      %p64 = scmp.ne.s32.totalorder %s50, %s51
      %p65 = scmp.eq.s32.totalorder %s31, 1
      %p66 = por %p64, %p65
      %p68 = scmp.ne.s32.totalorder %s51, %s67
      %p69 = scmp.eq.s32.totalorder %s31, 0
      %p70 = por %p68, %p69
      %s71 = ssub.s32 %s33, %s40
      %p72 = scmp.eq.s32.totalorder %s71, 0
      %s74 = sadd.s32 %s73, 1
      %s75 = scalar_select %p72, %s73, %s74
      %p78 = pneg %p72
      %p79 = scmp.eq.s32.totalorder %s25, 1
      %p80 = por %p78, %p79
      %p81 = scmp.ne.s32.totalorder %s73, %s76
      %p82 = scmp.eq.s32.totalorder %s25, 0
      %p83 = por %p81, %p82
      %p84 = scmp.ne.s32.totalorder %s73, %s76
      %p85 = scmp.eq.s32.totalorder %s30, 1
      %p86 = por %p84, %p85
      %p87 = scmp.ne.s32.totalorder %s76, %s77
      %p88 = scmp.eq.s32.totalorder %s30, 0
      %p89 = por %p87, %p88
      %p90 = scmp.ne.s32.totalorder %s76, %s77
      %p91 = scmp.eq.s32.totalorder %s31, 1
      %p92 = por %p90, %p91
      %p94 = scmp.ne.s32.totalorder %s77, %s93
      %p95 = scmp.eq.s32.totalorder %s31, 0
      %p96 = por %p94, %p95
      %s97 = ssub.s32 %s33, %s40
      %p98 = scmp.eq.s32.totalorder %s97, 0
      %s100 = sadd.s32 %s99, 1
      %s101 = scalar_select %p98, %s99, %s100
      %p104 = pneg %p98
      %p105 = scmp.eq.s32.totalorder %s25, 1
      %p106 = por %p104, %p105
      %p107 = scmp.ne.s32.totalorder %s99, %s102
      %p108 = scmp.eq.s32.totalorder %s25, 0
      %p109 = por %p107, %p108
      %p110 = scmp.ne.s32.totalorder %s99, %s102
      %p111 = scmp.eq.s32.totalorder %s30, 1
      %p112 = por %p110, %p111
      %p113 = scmp.ne.s32.totalorder %s102, %s103
      %p114 = scmp.eq.s32.totalorder %s30, 0
      %p115 = por %p113, %p114
      %p116 = scmp.ne.s32.totalorder %s102, %s103
      %p117 = scmp.eq.s32.totalorder %s31, 1
      %p118 = por %p116, %p117
      %p120 = scmp.ne.s32.totalorder %s103, %s119
      %p121 = scmp.eq.s32.totalorder %s31, 0
      %p122 = por %p120, %p121
      %s123 = ssub.s32 %s33, %s40
      %p124 = scmp.eq.s32.totalorder %s123, 0
      %s126 = sadd.s32 %s125, 1
      %s127 = scalar_select %p124, %s125, %s126
      %p130 = pneg %p124
      %p131 = scmp.eq.s32.totalorder %s25, 1
      %p132 = por %p130, %p131
      %p133 = scmp.ne.s32.totalorder %s125, %s128
      %p134 = scmp.eq.s32.totalorder %s25, 0
      %p135 = por %p133, %p134
      %p136 = scmp.ne.s32.totalorder %s125, %s128
      %p137 = scmp.eq.s32.totalorder %s30, 1
      %p138 = por %p136, %p137
      %p139 = scmp.ne.s32.totalorder %s128, %s129
      %p140 = scmp.eq.s32.totalorder %s30, 0
      %p141 = por %p139, %p140
      %p142 = scmp.ne.s32.totalorder %s128, %s129
      %p143 = scmp.eq.s32.totalorder %s31, 1
      %p144 = por %p142, %p143
      %p146 = scmp.ne.s32.totalorder %s129, %s145
      %p147 = scmp.eq.s32.totalorder %s31, 0
      %p148 = por %p146, %p147
      %s149 = ssub.s32 %s33, %s40
      %p150 = scmp.eq.s32.totalorder %s149, 0
      %s152 = sadd.s32 %s151, 1
      %s153 = scalar_select %p150, %s151, %s152
      %p156 = pneg %p150
      %p157 = scmp.eq.s32.totalorder %s25, 1
      %p158 = por %p156, %p157
      %p159 = scmp.ne.s32.totalorder %s151, %s154
      %p160 = scmp.eq.s32.totalorder %s25, 0
      %p161 = por %p159, %p160
      %p162 = scmp.ne.s32.totalorder %s151, %s154
      %p163 = scmp.eq.s32.totalorder %s30, 1
      %p164 = por %p162, %p163
      %p165 = scmp.ne.s32.totalorder %s154, %s155
      %p166 = scmp.eq.s32.totalorder %s30, 0
      %p167 = por %p165, %p166
      %p168 = scmp.ne.s32.totalorder %s154, %s155
      %p169 = scmp.eq.s32.totalorder %s31, 1
      %p170 = por %p168, %p169
      %p172 = scmp.ne.s32.totalorder %s155, %s171
      %p173 = scmp.eq.s32.totalorder %s31, 0
      %p174 = por %p172, %p173
      %s175 = ssub.s32 %s33, %s40
      %p176 = scmp.eq.s32.totalorder %s175, 0
      %s178 = sadd.s32 %s177, 1
      %s179 = scalar_select %p176, %s177, %s178
      %p182 = pneg %p176
      %p183 = scmp.eq.s32.totalorder %s25, 1
      %p184 = por %p182, %p183
      %p185 = scmp.ne.s32.totalorder %s177, %s180
      %p186 = scmp.eq.s32.totalorder %s25, 0
      %p187 = por %p185, %p186
      %p188 = scmp.ne.s32.totalorder %s177, %s180
      %p189 = scmp.eq.s32.totalorder %s30, 1
      %p190 = por %p188, %p189
      %p191 = scmp.ne.s32.totalorder %s180, %s181
      %p192 = scmp.eq.s32.totalorder %s30, 0
      %p193 = por %p191, %p192
      %p194 = scmp.ne.s32.totalorder %s180, %s181
      %p195 = scmp.eq.s32.totalorder %s31, 1
      %p196 = por %p194, %p195
      %p198 = scmp.ne.s32.totalorder %s181, %s197
      %p199 = scmp.eq.s32.totalorder %s31, 0
      %p200 = por %p198, %p199
      %s201 = ssub.s32 %s33, %s40
      %p202 = scmp.eq.s32.totalorder %s201, 0
      %s204 = sadd.s32 %s203, 1
      %s205 = scalar_select %p202, %s203, %s204
      %p208 = pneg %p202
      %p209 = scmp.eq.s32.totalorder %s25, 1
      %p210 = por %p208, %p209
      %p211 = scmp.ne.s32.totalorder %s203, %s206
      %p212 = scmp.eq.s32.totalorder %s25, 0
      %p213 = por %p211, %p212
      %p214 = scmp.ne.s32.totalorder %s203, %s206
      %p215 = scmp.eq.s32.totalorder %s30, 1
      %p216 = por %p214, %p215
      %p217 = scmp.ne.s32.totalorder %s206, %s207
      %p218 = scmp.eq.s32.totalorder %s30, 0
      %p219 = por %p217, %p218
      %p220 = scmp.ne.s32.totalorder %s206, %s207
      %p221 = scmp.eq.s32.totalorder %s31, 1
      %p222 = por %p220, %p221
      %p224 = scmp.ne.s32.totalorder %s207, %s223
      %p225 = scmp.eq.s32.totalorder %s31, 0
      %p226 = por %p224, %p225
      %s227 = ssub.s32 %s33, %s40
      %p228 = scmp.eq.s32.totalorder %s227, 0
      %s230 = sadd.s32 %s229, 1
      %s231 = scalar_select %p228, %s229, %s230
      %p234 = pneg %p228
      %p235 = scmp.eq.s32.totalorder %s25, 1
      %p236 = por %p234, %p235
      %p237 = scmp.ne.s32.totalorder %s229, %s232
      %p238 = scmp.eq.s32.totalorder %s25, 0
      %p239 = por %p237, %p238
      %p240 = scmp.ne.s32.totalorder %s229, %s232
      %p241 = scmp.eq.s32.totalorder %s30, 1
      %p242 = por %p240, %p241
      %p243 = scmp.ne.s32.totalorder %s232, %s233
      %p244 = scmp.eq.s32.totalorder %s30, 0
      %p245 = por %p243, %p244
      %p246 = scmp.ne.s32.totalorder %s232, %s233
      %p247 = scmp.eq.s32.totalorder %s31, 1
      %p248 = por %p246, %p247
      %p250 = scmp.ne.s32.totalorder %s233, %s249
      %p251 = scmp.eq.s32.totalorder %s31, 0
      %p252 = por %p250, %p251
      %s253 = ssub.s32 %s33, %s40
      %p254 = scmp.eq.s32.totalorder %s253, 0
      %s256 = sadd.s32 %s255, 1
      %s257 = scalar_select %p254, %s255, %s256
      %p260 = pneg %p254
      %p261 = scmp.eq.s32.totalorder %s25, 1
      %p262 = por %p260, %p261
      %p263 = scmp.ne.s32.totalorder %s255, %s258
      %p264 = scmp.eq.s32.totalorder %s25, 0
      %p265 = por %p263, %p264
      %p266 = scmp.ne.s32.totalorder %s255, %s258
      %p267 = scmp.eq.s32.totalorder %s30, 1
      %p268 = por %p266, %p267
      %p269 = scmp.ne.s32.totalorder %s258, %s259
      %p270 = scmp.eq.s32.totalorder %s30, 0
      %p271 = por %p269, %p270
      %p272 = scmp.ne.s32.totalorder %s258, %s259
      %p273 = scmp.eq.s32.totalorder %s31, 1
      %p274 = por %p272, %p273
      %p276 = scmp.ne.s32.totalorder %s259, %s275
      %p277 = scmp.eq.s32.totalorder %s31, 0
      %p278 = por %p276, %p277
      %s279 = ssub.s32 %s33, %s40
      %p280 = scmp.eq.s32.totalorder %s279, 0
      %s282 = sadd.s32 %s281, 1
      %s283 = scalar_select %p280, %s281, %s282
      %p286 = pneg %p280
      %p287 = scmp.eq.s32.totalorder %s25, 1
      %p288 = por %p286, %p287
      %p289 = scmp.ne.s32.totalorder %s281, %s284
      %p290 = scmp.eq.s32.totalorder %s25, 0
      %p291 = por %p289, %p290
      %p292 = scmp.ne.s32.totalorder %s281, %s284
      %p293 = scmp.eq.s32.totalorder %s30, 1
      %p294 = por %p292, %p293
      %p295 = scmp.ne.s32.totalorder %s284, %s285
      %p296 = scmp.eq.s32.totalorder %s30, 0
      %p297 = por %p295, %p296
      %p298 = scmp.ne.s32.totalorder %s284, %s285
      %p299 = scmp.eq.s32.totalorder %s31, 1
      %p300 = por %p298, %p299
      %p302 = scmp.ne.s32.totalorder %s285, %s301
      %p303 = scmp.eq.s32.totalorder %s31, 0
      %p304 = por %p302, %p303
      %s305 = ssub.s32 %s33, %s40
      %p306 = scmp.eq.s32.totalorder %s305, 0
      %s308 = sadd.s32 %s307, 1
      %s309 = scalar_select %p306, %s307, %s308
      %p312 = pneg %p306
      %p313 = scmp.eq.s32.totalorder %s25, 1
      %p314 = por %p312, %p313
      %p315 = scmp.ne.s32.totalorder %s307, %s310
      %p316 = scmp.eq.s32.totalorder %s25, 0
      %p317 = por %p315, %p316
      %p318 = scmp.ne.s32.totalorder %s307, %s310
      %p319 = scmp.eq.s32.totalorder %s30, 1
      %p320 = por %p318, %p319
      %p321 = scmp.ne.s32.totalorder %s310, %s311
      %p322 = scmp.eq.s32.totalorder %s30, 0
      %p323 = por %p321, %p322
      %p324 = scmp.ne.s32.totalorder %s310, %s311
      %p325 = scmp.eq.s32.totalorder %s31, 1
      %p326 = por %p324, %p325
      %p328 = scmp.ne.s32.totalorder %s311, %s327
      %p329 = scmp.eq.s32.totalorder %s31, 0
      %p330 = por %p328, %p329
      %s331 = ssub.s32 %s33, %s40
      %p332 = scmp.eq.s32.totalorder %s331, 0
      %s334 = sadd.s32 %s333, 1
      %s335 = scalar_select %p332, %s333, %s334
      %p338 = pneg %p332
      %p339 = scmp.eq.s32.totalorder %s25, 1
      %p340 = por %p338, %p339
      %p341 = scmp.ne.s32.totalorder %s333, %s336
      %p342 = scmp.eq.s32.totalorder %s25, 0
      %p343 = por %p341, %p342
      %p344 = scmp.ne.s32.totalorder %s333, %s336
      %p345 = scmp.eq.s32.totalorder %s30, 1
      %p346 = por %p344, %p345
      %p347 = scmp.ne.s32.totalorder %s336, %s337
      %p348 = scmp.eq.s32.totalorder %s30, 0
      %p349 = por %p347, %p348
      %p350 = scmp.ne.s32.totalorder %s336, %s337
      %p351 = scmp.eq.s32.totalorder %s31, 1
      %p352 = por %p350, %p351
      %p354 = scmp.ne.s32.totalorder %s337, %s353
      %p355 = scmp.eq.s32.totalorder %s31, 0
      %p356 = por %p354, %p355
      %s357 = ssub.s32 %s33, %s40
      %p358 = scmp.eq.s32.totalorder %s357, 0
      %s360 = sadd.s32 %s359, 1
      %s361 = scalar_select %p358, %s359, %s360
      %p364 = pneg %p358
      %p365 = scmp.eq.s32.totalorder %s25, 1
      %p366 = por %p364, %p365
      %p367 = scmp.ne.s32.totalorder %s359, %s362
      %p368 = scmp.eq.s32.totalorder %s25, 0
      %p369 = por %p367, %p368
      %p370 = scmp.ne.s32.totalorder %s359, %s362
      %p371 = scmp.eq.s32.totalorder %s30, 1
      %p372 = por %p370, %p371
      %p373 = scmp.ne.s32.totalorder %s362, %s363
      %p374 = scmp.eq.s32.totalorder %s30, 0
      %p375 = por %p373, %p374
      %p376 = scmp.ne.s32.totalorder %s362, %s363
      %p377 = scmp.eq.s32.totalorder %s31, 1
      %p378 = por %p376, %p377
      %p380 = scmp.ne.s32.totalorder %s363, %s379
      %p381 = scmp.eq.s32.totalorder %s31, 0
      %p382 = por %p380, %p381
      %s384 = sadd.s32 %s383, 1
      %p387 = scmp.eq.s32.totalorder %s25, 1
      %p388 = scmp.ne.s32.totalorder %s383, %s385
      %p389 = scmp.eq.s32.totalorder %s25, 0
      %p390 = por %p388, %p389
      %p391 = scmp.ne.s32.totalorder %s383, %s385
      %p392 = scmp.eq.s32.totalorder %s30, 1
      %p393 = por %p391, %p392
      %p394 = scmp.ne.s32.totalorder %s385, %s386
      %p395 = scmp.eq.s32.totalorder %s30, 0
      %p396 = por %p394, %p395
      %p397 = scmp.ne.s32.totalorder %s385, %s386
      %p398 = scmp.eq.s32.totalorder %s31, 1
      %p399 = por %p397, %p398
      %p401 = scmp.ne.s32.totalorder %s386, %s400
      %p402 = scmp.eq.s32.totalorder %s31, 0
      %p403 = por %p401, %p402
      %s405 = sadd.s32 %s404, 1
      %p408 = scmp.eq.s32.totalorder %s25, 1
      %p409 = scmp.ne.s32.totalorder %s404, %s406
      %p410 = scmp.eq.s32.totalorder %s25, 0
      %p411 = por %p409, %p410
      %p412 = scmp.ne.s32.totalorder %s404, %s406
      %p413 = scmp.eq.s32.totalorder %s30, 1
      %p414 = por %p412, %p413
      %p415 = scmp.ne.s32.totalorder %s406, %s407
      %p416 = scmp.eq.s32.totalorder %s30, 0
      %p417 = por %p415, %p416
      %p418 = scmp.ne.s32.totalorder %s406, %s407
      %p419 = scmp.eq.s32.totalorder %s31, 1
      %p420 = por %p418, %p419
      %p422 = scmp.ne.s32.totalorder %s407, %s421
      %p423 = scmp.eq.s32.totalorder %s31, 0
      %p424 = por %p422, %p423
      %s426 = sadd.s32 %s425, 1
      %p429 = scmp.eq.s32.totalorder %s25, 1
      %p430 = scmp.ne.s32.totalorder %s425, %s427
      %p431 = scmp.eq.s32.totalorder %s25, 0
      %p432 = por %p430, %p431
      %p433 = scmp.ne.s32.totalorder %s425, %s427
      %p434 = scmp.eq.s32.totalorder %s30, 1
      %p435 = por %p433, %p434
      %p436 = scmp.ne.s32.totalorder %s427, %s428
      %p437 = scmp.eq.s32.totalorder %s30, 0
      %p438 = por %p436, %p437
      %p439 = scmp.ne.s32.totalorder %s427, %s428
      %p440 = scmp.eq.s32.totalorder %s31, 1
      %p441 = por %p439, %p440
      %p443 = scmp.ne.s32.totalorder %s428, %s442
      %p444 = scmp.eq.s32.totalorder %s31, 0
      %p445 = por %p443, %p444
      %s446 = ssub.s32 %s32, %s44
      %p447 = scmp.eq.s32.totalorder %s446, 0
      %s449 = sadd.s32 %s448, 1
      %s450 = scalar_select %p447, %s448, %s449
      %p453 = pneg %p447
      %p454 = scmp.eq.s32.totalorder %s25, 1
      %p455 = por %p453, %p454
      %p456 = scmp.ne.s32.totalorder %s448, %s451
      %p457 = scmp.eq.s32.totalorder %s25, 0
      %p458 = por %p456, %p457
      %p459 = scmp.ne.s32.totalorder %s448, %s451
      %p460 = scmp.eq.s32.totalorder %s30, 1
      %p461 = por %p459, %p460
      %p462 = scmp.ne.s32.totalorder %s451, %s452
      %p463 = scmp.eq.s32.totalorder %s30, 0
      %p464 = por %p462, %p463
      %p465 = scmp.ne.s32.totalorder %s451, %s452
      %p466 = scmp.eq.s32.totalorder %s31, 1
      %p467 = por %p465, %p466
      %p469 = scmp.ne.s32.totalorder %s452, %s468
      %p470 = scmp.eq.s32.totalorder %s31, 0
      %p471 = por %p469, %p470
      %p472 = scmp.le.s32.totalorder 1, %s25
      %p473 = scmp.lt.s32.totalorder %s25, 3
      %p474 = pnand %p472, %p473
      %p475 = pneg %p474
      // Predicated region
      $region9: #{tpu_custom_call.1} parent=5 // pred_check
        _
      $region10: #{tpu_custom_call.1} parent=5 // pred_check_branch
        %477 = sbr.rel (%p474) target = $region12
      $region11: #{tpu_custom_call.1} parent=5 // pred_region
        %s478 = ssub.s32 %s25, 1
        // Predicated region
        $region13: #{tpu_custom_call.1} parent=11 // pred_check
          %p479 = pneg %p63
        $region14: #{tpu_custom_call.1} parent=11 // pred_check_branch
          %481 = sbr.rel (%p479) target = $region16
        $region15: #{tpu_custom_call.1} parent=11 // pred_region
          %s482 = smul.u32 2, %s34
          %s484 = ssub.s32 256, 256
          %485 = vsyncadd [#allocation4], %s484
          %s486 = smul.addr %s482, 128
          %s487 = scalar_lea.hbm %s0, %s486
          %s488 = sshll.u32 [#allocation3], 4
          %s489 = int_to_ptr.vmem [resolvable:$true] %s488
          %494 = dma.hbm_to_vmem [thread:$0]  %s487, 256, %s489, [#allocation4], 128, 128, 8
        $region16: #{tpu_custom_call.1} parent=11 // pred_fallthru
          _
        // Predicated region
        $region17: #{tpu_custom_call.1} parent=11 // pred_check
          %p495 = pneg %p396
        $region18: #{tpu_custom_call.1} parent=11 // pred_check_branch
          %497 = sbr.rel (%p495) target = $region20
        $region19: #{tpu_custom_call.1} parent=11 // pred_region
          _
        $region20: #{tpu_custom_call.1} parent=11 // pred_fallthru
          _
        // Predicated region
        $region21: #{tpu_custom_call.1} parent=11 // pred_check
          %p498 = pneg %p417
        $region22: #{tpu_custom_call.1} parent=11 // pred_check_branch
          %500 = sbr.rel (%p498) target = $region24
        $region23: #{tpu_custom_call.1} parent=11 // pred_region
          _
        $region24: #{tpu_custom_call.1} parent=11 // pred_fallthru
          _
        // Predicated region
        $region25: #{tpu_custom_call.1} parent=11 // pred_check
          %p501 = pneg %p438
        $region26: #{tpu_custom_call.1} parent=11 // pred_check_branch
          %503 = sbr.rel (%p501) target = $region28
        $region27: #{tpu_custom_call.1} parent=11 // pred_region
          %s505 = ssub.s32 512, 512
          %506 = vsyncadd [#allocation7], %s505
          %s507 = sshll.u32 [#allocation6], 4
          %s508 = int_to_ptr.vmem [resolvable:$true] %s507
          %513 = dma.hbm_to_vmem [thread:$0]  %s15, 512, %s508, [#allocation7], 128, 128, 8
        $region28: #{tpu_custom_call.1} parent=11 // pred_fallthru
          _
      $region12: #{tpu_custom_call.1} parent=5 // pred_fallthru
        _
      %p514 = scmp.lt.s32.totalorder %s25, 2
      // Predicated region
      $region29: #{tpu_custom_call.1} parent=5 // pred_check
        %p515 = pneg %p514
      $region30: #{tpu_custom_call.1} parent=5 // pred_check_branch
        %517 = sbr.rel (%p515) target = $region32
      $region31: #{tpu_custom_call.1} parent=5 // pred_region
        // Predicated region
        $region33: #{tpu_custom_call.1} parent=31 // pred_check
          %p518 = pneg %p83
        $region34: #{tpu_custom_call.1} parent=31 // pred_check_branch
          %520 = sbr.rel (%p518) target = $region36
        $region35: #{tpu_custom_call.1} parent=31 // pred_region
          %p521 = scmp.lt.s32.totalorder %s33, 1
          %s522 = scalar_select %p521, %s33, 1
          %s523 = smul.addr %s522, 4
          %s524 = smul.addr %s523, 8
          %s525 = scalar_lea.vmem %s1, %s524
        $region36: #{tpu_custom_call.1} parent=31 // pred_fallthru
          _
        // Predicated region
        $region37: #{tpu_custom_call.1} parent=31 // pred_check
          %p526 = pneg %p109
        $region38: #{tpu_custom_call.1} parent=31 // pred_check_branch
          %528 = sbr.rel (%p526) target = $region40
        $region39: #{tpu_custom_call.1} parent=31 // pred_region
          %p529 = scmp.lt.s32.totalorder %s33, 1
          %s530 = scalar_select %p529, %s33, 1
          %s531 = scalar_lea.vmem %s2, %s530
        $region40: #{tpu_custom_call.1} parent=31 // pred_fallthru
          _
        // Predicated region
        $region41: #{tpu_custom_call.1} parent=31 // pred_check
          %p532 = pneg %p135
        $region42: #{tpu_custom_call.1} parent=31 // pred_check_branch
          %534 = sbr.rel (%p532) target = $region44
        $region43: #{tpu_custom_call.1} parent=31 // pred_region
          %p535 = scmp.lt.s32.totalorder %s33, 1
          %s536 = scalar_select %p535, %s33, 1
          %s537 = smul.addr %s536, 4
          %s538 = smul.addr %s537, 8
          %s539 = scalar_lea.vmem %s3, %s538
        $region44: #{tpu_custom_call.1} parent=31 // pred_fallthru
          _
        // Predicated region
        $region45: #{tpu_custom_call.1} parent=31 // pred_check
          %p540 = pneg %p161
        $region46: #{tpu_custom_call.1} parent=31 // pred_check_branch
          %542 = sbr.rel (%p540) target = $region48
        $region47: #{tpu_custom_call.1} parent=31 // pred_region
          %p543 = scmp.lt.s32.totalorder %s33, 1
          %s544 = scalar_select %p543, %s33, 1
          %s545 = scalar_lea.vmem %s4, %s544
        $region48: #{tpu_custom_call.1} parent=31 // pred_fallthru
          _
        // Predicated region
        $region49: #{tpu_custom_call.1} parent=31 // pred_check
          %p546 = pneg %p187
        $region50: #{tpu_custom_call.1} parent=31 // pred_check_branch
          %548 = sbr.rel (%p546) target = $region52
        $region51: #{tpu_custom_call.1} parent=31 // pred_region
          %p549 = scmp.lt.s32.totalorder %s33, 1
          %s550 = scalar_select %p549, %s33, 1
          %s551 = scalar_lea.vmem %s5, %s550
        $region52: #{tpu_custom_call.1} parent=31 // pred_fallthru
          _
        // Predicated region
        $region53: #{tpu_custom_call.1} parent=31 // pred_check
          %p552 = pneg %p213
        $region54: #{tpu_custom_call.1} parent=31 // pred_check_branch
          %554 = sbr.rel (%p552) target = $region56
        $region55: #{tpu_custom_call.1} parent=31 // pred_region
          %p555 = scmp.lt.s32.totalorder %s33, 1
          %s556 = scalar_select %p555, %s33, 1
          %s557 = scalar_lea.vmem %s6, %s556
        $region56: #{tpu_custom_call.1} parent=31 // pred_fallthru
          _
        // Predicated region
        $region57: #{tpu_custom_call.1} parent=31 // pred_check
          %p558 = pneg %p239
        $region58: #{tpu_custom_call.1} parent=31 // pred_check_branch
          %560 = sbr.rel (%p558) target = $region60
        $region59: #{tpu_custom_call.1} parent=31 // pred_region
          %p561 = scmp.lt.s32.totalorder %s33, 1
          %s562 = scalar_select %p561, %s33, 1
          %s563 = smul.addr %s562, 4
          %s564 = smul.addr %s563, 8
          %s565 = scalar_lea.vmem %s7, %s564
        $region60: #{tpu_custom_call.1} parent=31 // pred_fallthru
          _
        // Predicated region
        $region61: #{tpu_custom_call.1} parent=31 // pred_check
          %p566 = pneg %p265
        $region62: #{tpu_custom_call.1} parent=31 // pred_check_branch
          %568 = sbr.rel (%p566) target = $region64
        $region63: #{tpu_custom_call.1} parent=31 // pred_region
          %p569 = scmp.lt.s32.totalorder %s33, 1
          %s570 = scalar_select %p569, %s33, 1
          %s571 = scalar_lea.vmem %s8, %s570
        $region64: #{tpu_custom_call.1} parent=31 // pred_fallthru
          _
        // Predicated region
        $region65: #{tpu_custom_call.1} parent=31 // pred_check
          %p572 = pneg %p291
        $region66: #{tpu_custom_call.1} parent=31 // pred_check_branch
          %574 = sbr.rel (%p572) target = $region68
        $region67: #{tpu_custom_call.1} parent=31 // pred_region
          %p575 = scmp.lt.s32.totalorder %s33, 1
          %s576 = scalar_select %p575, %s33, 1
          %s577 = smul.addr %s576, 8
          %s578 = smul.addr %s577, 8
          %s579 = scalar_lea.vmem %s9, %s578
        $region68: #{tpu_custom_call.1} parent=31 // pred_fallthru
          _
        // Predicated region
        $region69: #{tpu_custom_call.1} parent=31 // pred_check
          %p580 = pneg %p317
        $region70: #{tpu_custom_call.1} parent=31 // pred_check_branch
          %582 = sbr.rel (%p580) target = $region72
        $region71: #{tpu_custom_call.1} parent=31 // pred_region
          %p583 = scmp.lt.s32.totalorder %s33, 1
          %s584 = scalar_select %p583, %s33, 1
          %s585 = scalar_lea.vmem %s10, %s584
        $region72: #{tpu_custom_call.1} parent=31 // pred_fallthru
          _
        // Predicated region
        $region73: #{tpu_custom_call.1} parent=31 // pred_check
          %p586 = pneg %p343
        $region74: #{tpu_custom_call.1} parent=31 // pred_check_branch
          %588 = sbr.rel (%p586) target = $region76
        $region75: #{tpu_custom_call.1} parent=31 // pred_region
          %p589 = scmp.lt.s32.totalorder %s33, 1
          %s590 = scalar_select %p589, %s33, 1
          %s591 = scalar_lea.vmem %s11, %s590
        $region76: #{tpu_custom_call.1} parent=31 // pred_fallthru
          _
        // Predicated region
        $region77: #{tpu_custom_call.1} parent=31 // pred_check
          %p592 = pneg %p369
        $region78: #{tpu_custom_call.1} parent=31 // pred_check_branch
          %594 = sbr.rel (%p592) target = $region80
        $region79: #{tpu_custom_call.1} parent=31 // pred_region
          %p595 = scmp.lt.s32.totalorder %s33, 1
          %s596 = scalar_select %p595, %s33, 1
          %s597 = scalar_lea.vmem %s12, %s596
        $region80: #{tpu_custom_call.1} parent=31 // pred_fallthru
          _
      $region32: #{tpu_custom_call.1} parent=5 // pred_fallthru
        _
      %p598 = scmp.le.s32.totalorder 1, %s25
      %p599 = scmp.lt.s32.totalorder %s25, 3
      %p600 = pnand %p598, %p599
      %p601 = pneg %p600
      // Predicated region
      $region81: #{tpu_custom_call.1} parent=5 // pred_check
        _
      $region82: #{tpu_custom_call.1} parent=5 // pred_check_branch
        %603 = sbr.rel (%p600) target = $region84
      $region83: #{tpu_custom_call.1} parent=5 // pred_region
        %s604 = ssub.s32 %s25, 1
        // Predicated region
        $region85: #{tpu_custom_call.1} parent=83 // pred_check
          %p605 = pneg %p63
        $region86: #{tpu_custom_call.1} parent=83 // pred_check_branch
          %607 = sbr.rel (%p605) target = $region88
        $region87: #{tpu_custom_call.1} parent=83 // pred_region
          %608 = dma.done [#allocation4], 256
        $region88: #{tpu_custom_call.1} parent=83 // pred_fallthru
          _
        // Predicated region
        $region89: #{tpu_custom_call.1} parent=83 // pred_check
          %p609 = pneg %p438
        $region90: #{tpu_custom_call.1} parent=83 // pred_check_branch
          %611 = sbr.rel (%p609) target = $region92
        $region91: #{tpu_custom_call.1} parent=83 // pred_region
          %612 = dma.done [#allocation7], 512
        $region92: #{tpu_custom_call.1} parent=83 // pred_fallthru
          _
        %p613 = pneg %p63
        %p614 = pneg %p60
        %p615 = scmp.lt.s32.totalorder %s35, 1
        %s616 = scalar_select %p615, %s35, 1
        %s617 = smul.addr %s616, 4
        %s618 = smul.addr %s617, 8
        %s619 = scalar_lea.vmem %s1, %s618
        %p620 = pneg %p89
        %p621 = pneg %p86
        %p622 = scmp.lt.s32.totalorder %s35, 1
        %s623 = scalar_select %p622, %s35, 1
        %s624 = scalar_lea.vmem %s2, %s623
        %p625 = pneg %p115
        %p626 = pneg %p112
        %p627 = scmp.lt.s32.totalorder %s35, 1
        %s628 = scalar_select %p627, %s35, 1
        %s629 = smul.addr %s628, 4
        %s630 = smul.addr %s629, 8
        %s631 = scalar_lea.vmem %s3, %s630
        %p632 = pneg %p141
        %p633 = pneg %p138
        %p634 = scmp.lt.s32.totalorder %s35, 1
        %s635 = scalar_select %p634, %s35, 1
        %s636 = scalar_lea.vmem %s4, %s635
        %p637 = pneg %p167
        %p638 = pneg %p164
        %p639 = scmp.lt.s32.totalorder %s35, 1
        %s640 = scalar_select %p639, %s35, 1
        %s641 = scalar_lea.vmem %s5, %s640
        %p642 = pneg %p193
        %p643 = pneg %p190
        %p644 = scmp.lt.s32.totalorder %s35, 1
        %s645 = scalar_select %p644, %s35, 1
        %s646 = scalar_lea.vmem %s6, %s645
        %p647 = pneg %p219
        %p648 = pneg %p216
        %p649 = scmp.lt.s32.totalorder %s35, 1
        %s650 = scalar_select %p649, %s35, 1
        %s651 = smul.addr %s650, 4
        %s652 = smul.addr %s651, 8
        %s653 = scalar_lea.vmem %s7, %s652
        %p654 = pneg %p245
        %p655 = pneg %p242
        %p656 = scmp.lt.s32.totalorder %s35, 1
        %s657 = scalar_select %p656, %s35, 1
        %s658 = scalar_lea.vmem %s8, %s657
        %p659 = pneg %p271
        %p660 = pneg %p268
        %p661 = scmp.lt.s32.totalorder %s35, 1
        %s662 = scalar_select %p661, %s35, 1
        %s663 = smul.addr %s662, 8
        %s664 = smul.addr %s663, 8
        %s665 = scalar_lea.vmem %s9, %s664
        %p666 = pneg %p297
        %p667 = pneg %p294
        %p668 = scmp.lt.s32.totalorder %s35, 1
        %s669 = scalar_select %p668, %s35, 1
        %s670 = scalar_lea.vmem %s10, %s669
        %p671 = pneg %p323
        %p672 = pneg %p320
        %p673 = scmp.lt.s32.totalorder %s35, 1
        %s674 = scalar_select %p673, %s35, 1
        %s675 = scalar_lea.vmem %s11, %s674
        %p676 = pneg %p349
        %p677 = pneg %p346
        %p678 = scmp.lt.s32.totalorder %s35, 1
        %s679 = scalar_select %p678, %s35, 1
        %s680 = scalar_lea.vmem %s12, %s679
        %p681 = pneg %p375
        %p682 = pneg %p372
        %p683 = pneg %p396
        %p684 = pneg %p393
        %p685 = pneg %p417
        %p686 = pneg %p414
        %p687 = pneg %p438
        %p688 = pneg %p435
        %p689 = pneg %p464
        %p690 = pneg %p461
        %s691 = smul.u32 2, %s34
        %p692 = scmp.lt.s32.totalorder %s35, 1
        %s693 = scalar_select %p692, %s35, 1
        %s694 = smul.addr %s693, 4
        %s695 = smul.addr %s694, 8
        %s696 = scalar_lea.vmem %s1, %s695
        %p697 = scmp.lt.s32.totalorder %s35, 1
        %s698 = scalar_select %p697, %s35, 1
        %s699 = scalar_lea.vmem %s2, %s698
        %p700 = scmp.lt.s32.totalorder %s35, 1
        %s701 = scalar_select %p700, %s35, 1
        %s702 = smul.addr %s701, 4
        %s703 = smul.addr %s702, 8
        %s704 = scalar_lea.vmem %s3, %s703
        %p705 = scmp.lt.s32.totalorder %s35, 1
        %s706 = scalar_select %p705, %s35, 1
        %s707 = scalar_lea.vmem %s4, %s706
        %p708 = scmp.lt.s32.totalorder %s35, 1
        %s709 = scalar_select %p708, %s35, 1
        %s710 = scalar_lea.vmem %s5, %s709
        %p711 = scmp.lt.s32.totalorder %s35, 1
        %s712 = scalar_select %p711, %s35, 1
        %s713 = scalar_lea.vmem %s6, %s712
        %p714 = scmp.lt.s32.totalorder %s35, 1
        %s715 = scalar_select %p714, %s35, 1
        %s716 = smul.addr %s715, 4
        %s717 = smul.addr %s716, 8
        %s718 = scalar_lea.vmem %s7, %s717
        %p719 = scmp.lt.s32.totalorder %s35, 1
        %s720 = scalar_select %p719, %s35, 1
        %s721 = scalar_lea.vmem %s8, %s720
        %p722 = scmp.lt.s32.totalorder %s35, 1
        %s723 = scalar_select %p722, %s35, 1
        %s724 = smul.addr %s723, 8
        %s725 = smul.addr %s724, 8
        %s726 = scalar_lea.vmem %s9, %s725
        %p727 = scmp.lt.s32.totalorder %s35, 1
        %s728 = scalar_select %p727, %s35, 1
        %s729 = scalar_lea.vmem %s10, %s728
        %p730 = scmp.lt.s32.totalorder %s35, 1
        %s731 = scalar_select %p730, %s35, 1
        %s732 = scalar_lea.vmem %s11, %s731
        %p733 = scmp.lt.s32.totalorder %s35, 1
        %s734 = scalar_select %p733, %s35, 1
        %s735 = scalar_lea.vmem %s12, %s734
        %s736 = smul.u32 2, %s34
        %p737 = scmp.eq.s32.totalorder %s35, 0
        // Predicated region
        $region93: #{tpu_custom_call.1} parent=83 // pred_check
          %p738 = pneg %p737
        $region94: #{tpu_custom_call.1} parent=83 // pred_check_branch
          %740 = sbr.rel (%p738) target = $region96
        $region95: #{tpu_custom_call.1} parent=83 // pred_region
          %v741 = vld [vmem:[#allocation3] sm:$0xff]
          %v742 = vld [vmem:[#allocation3 + $0x8] sm:$0xff]
          %vm743 = vcmask 261120
          %744 = vst.msk [vmem:[#allocation2] sm:$0xff] %vm743, %v741
          %745 = vst.msk [vmem:[#allocation2 + $0x8] sm:$0xff] %vm743, %v742
        $region96: #{tpu_custom_call.1} parent=83 // pred_fallthru
          _
        %v746 = vld [vmem:[#allocation2] sm:$0xff]
        %v747 = vld [vmem:[#allocation2 + $0x8] sm:$0xff]
        %v748 = vld [vmem:[%s696] sm:$0xff]
        %v749 = vld [vmem:[%s696 + $0x8] sm:$0xff]
        %v750 = vld [vmem:[%s696 + $0x10] sm:$0xff]
        %v751 = vld [vmem:[%s696 + $0x18] sm:$0xff]
        %v752 = vld [vmem:[%s699] sm:$0x1]
        %v754 = vlaneseq
        %v755 = vshrl.u32 %v754, 7
        %v756 = vsub.s32 0, %v755
        %v757 = vrot.slane %v752, %v756
        %vm759 = vcmask 261120
        %v761 = vsel %vm759, %v746, 0
        %v764 = vsel %vm759, %v747, 0
        %766 = vmatprep.subr.mxu0 0.0
        %767 = vmatpush1.msra.mxu0 0.0
        %768 = vmatprep.subr.mxu0 0.0
        %769 = vmatpush1.msra.mxu0 0.0
        %770 = vmatprep.subr.mxu0 0.0
        %771 = vmatpush1.msra.mxu0 0.0
        %772 = vmatprep.subr.mxu0 0.0
        %773 = vmatpush1.msra.mxu0 0.0
        %774 = vmatprep.subr.mxu0 0.0
        %775 = vmatpush1.msra.mxu0 0.0
        %776 = vmatprep.subr.mxu0 0.0
        %777 = vmatpush1.msra.mxu0 0.0
        %778 = vmatprep.subr.mxu0 0.0
        %779 = vmatpush1.msra.mxu0 0.0
        %780 = vmatprep.subr.mxu0 0.0
        %781 = vmatpush1.msra.mxu0 0.0
        %782 = vmatprep.subr.mxu0 0.0
        %783 = vmatpush1.msra.mxu0 0.0
        %784 = vmatprep.subr.mxu0 0.0
        %785 = vmatpush1.msra.mxu0 0.0
        %786 = vmatprep.subr.mxu0 0.0
        %787 = vmatpush1.msra.mxu0 0.0
        %788 = vmatprep.subr.mxu0 0.0
        %789 = vmatpush1.msra.mxu0 0.0
        %790 = vmatprep.subr.mxu0 0.0
        %791 = vmatpush1.msra.mxu0 %v751
        %792 = vmatprep.subr.mxu0 0.0
        %793 = vmatpush1.msra.mxu0 %v750
        %794 = vmatprep.subr.mxu0 0.0
        %795 = vmatpush1.msra.mxu0 %v749
        %796 = vmatprep.subr.mxu0 0.0
        %797 = vmatpush1.msra.mxu0 %v748
        %798 = vmatprep.subr.mxu0 0.0
        %799 = vmatpush2.msra.mxu0 0.0
        %800 = vmatprep.subr.mxu0 0.0
        %801 = vmatpush2.msra.mxu0 0.0
        %802 = vmatprep.subr.mxu0 0.0
        %803 = vmatpush2.msra.mxu0 0.0
        %804 = vmatprep.subr.mxu0 0.0
        %805 = vmatpush2.msra.mxu0 0.0
        %806 = vmatprep.subr.mxu0 0.0
        %807 = vmatpush2.msra.mxu0 0.0
        %808 = vmatprep.subr.mxu0 0.0
        %809 = vmatpush2.msra.mxu0 0.0
        %810 = vmatprep.subr.mxu0 0.0
        %811 = vmatpush2.msra.mxu0 0.0
        %812 = vmatprep.subr.mxu0 0.0
        %813 = vmatpush2.msra.mxu0 0.0
        %814 = vmatprep.subr.mxu0 0.0
        %815 = vmatpush2.msra.mxu0 0.0
        %816 = vmatprep.subr.mxu0 0.0
        %817 = vmatpush2.msra.mxu0 0.0
        %818 = vmatprep.subr.mxu0 0.0
        %819 = vmatpush2.msra.mxu0 0.0
        %820 = vmatprep.subr.mxu0 0.0
        %821 = vmatpush2.msra.mxu0 0.0
        %822 = vmatprep.subr.mxu0 0.0
        %823 = vmatpush2.msra.mxu0 0.0
        %824 = vmatprep.subr.mxu0 0.0
        %825 = vmatpush2.msra.mxu0 0.0
        %826 = vmatprep.subr.mxu0 0.0
        %827 = vmatpush2.msra.mxu0 0.0
        %828 = vmatprep.subr.mxu0 0.0
        %829 = vmatpush2.msra.mxu0 0.0
        %830 = vmatprep.mubr.f32.mxu0 0.0
        %831 = vmatmul.mubr.f32.gmra.mxu0 %v761
        %v832 = vpop.f32.mrf.mxu0
        %v833 = vadd.f32 %v757, %v832
        %v834 = vpop.f32.mrf.mxu0
        %835 = vmatprep.mubr.f32.mxu0 0.0
        %836 = vmatmul.mubr.f32.gmra.mxu0 %v764
        %v837 = vpop.f32.mrf.mxu0
        %v838 = vadd.f32 %v757, %v837
        %v839 = vpop.f32.mrf.mxu0
        %840 = vdwg.mxu0
        %842 = vrot.lane.b32.xlu0 %v833, 96
        %v843 = vpop.permute.xlu0 %842
        %vm844 = vcmask 64512
        %v845 = vsel %vm844, %v833, 0
        %v847 = vsel %vm844, %v843, 0
        %849 = vmatprep.subr.mxu0 0.0
        %850 = vmatpush1.xpose.msra.mxu0 0.0
        %851 = vmatprep.subr.mxu0 0.0
        %852 = vmatpush1.xpose.msra.mxu0 0.0
        %853 = vmatprep.subr.mxu0 0.0
        %854 = vmatpush1.xpose.msra.mxu0 0.0
        %855 = vmatprep.subr.mxu0 0.0
        %856 = vmatpush1.xpose.msra.mxu0 0.0
        %857 = vmatprep.subr.mxu0 0.0
        %858 = vmatpush1.xpose.msra.mxu0 0.0
        %859 = vmatprep.subr.mxu0 0.0
        %860 = vmatpush1.xpose.msra.mxu0 0.0
        %861 = vmatprep.subr.mxu0 0.0
        %862 = vmatpush1.xpose.msra.mxu0 0.0
        %863 = vmatprep.subr.mxu0 0.0
        %864 = vmatpush1.xpose.msra.mxu0 0.0
        %865 = vmatprep.subr.mxu0 0.0
        %866 = vmatpush1.xpose.msra.mxu0 0.0
        %867 = vmatprep.subr.mxu0 0.0
        %868 = vmatpush1.xpose.msra.mxu0 0.0
        %869 = vmatprep.subr.mxu0 0.0
        %870 = vmatpush1.xpose.msra.mxu0 0.0
        %871 = vmatprep.subr.mxu0 0.0
        %872 = vmatpush1.xpose.msra.mxu0 0.0
        %873 = vmatprep.subr.mxu0 0.0
        %874 = vmatpush1.xpose.msra.mxu0 0.0
        %875 = vmatprep.subr.mxu0 0.0
        %876 = vmatpush1.xpose.msra.mxu0 0.0
        %877 = vmatprep.subr.mxu0 0.0
        %878 = vmatpush1.xpose.msra.mxu0 0.0
        %879 = vmatprep.subr.mxu0 0.0
        %880 = vmatpush1.xpose.msra.mxu0 %v847
        %881 = vmatprep.subr.mxu0 0.0
        %882 = vmatpush2.xpose.msra.mxu0 0.0
        %883 = vmatprep.subr.mxu0 0.0
        %884 = vmatpush2.xpose.msra.mxu0 0.0
        %885 = vmatprep.subr.mxu0 0.0
        %886 = vmatpush2.xpose.msra.mxu0 0.0
        %887 = vmatprep.subr.mxu0 0.0
        %888 = vmatpush2.xpose.msra.mxu0 0.0
        %889 = vmatprep.subr.mxu0 0.0
        %890 = vmatpush2.xpose.msra.mxu0 0.0
        %891 = vmatprep.subr.mxu0 0.0
        %892 = vmatpush2.xpose.msra.mxu0 0.0
        %893 = vmatprep.subr.mxu0 0.0
        %894 = vmatpush2.xpose.msra.mxu0 0.0
        %895 = vmatprep.subr.mxu0 0.0
        %896 = vmatpush2.xpose.msra.mxu0 0.0
        %897 = vmatprep.subr.mxu0 0.0
        %898 = vmatpush2.xpose.msra.mxu0 0.0
        %899 = vmatprep.subr.mxu0 0.0
        %900 = vmatpush2.xpose.msra.mxu0 0.0
        %901 = vmatprep.subr.mxu0 0.0
        %902 = vmatpush2.xpose.msra.mxu0 0.0
        %903 = vmatprep.subr.mxu0 0.0
        %904 = vmatpush2.xpose.msra.mxu0 0.0
        %905 = vmatprep.subr.mxu0 0.0
        %906 = vmatpush2.xpose.msra.mxu0 0.0
        %907 = vmatprep.subr.mxu0 0.0
        %908 = vmatpush2.xpose.msra.mxu0 0.0
        %909 = vmatprep.subr.mxu0 0.0
        %910 = vmatpush2.xpose.msra.mxu0 0.0
        %911 = vmatprep.subr.mxu0 0.0
        %912 = vmatpush2.xpose.msra.mxu0 0.0
        %913 = vmatprep.mubr.f32.mxu0 0.0
        %914 = vmatmul.mubr.f32.gmra.mxu0 %v845
        %v915 = vpop.f32.mrf.mxu0
        %v916 = vadd.f32 0.0, %v915
        %v917 = vpop.f32.mrf.mxu0
        %918 = vdwg.mxu0
        %920 = vrot.lane.b32.xlu0 %v838, 96
        %v921 = vpop.permute.xlu0 %920
        %v922 = vsel %vm844, %v838, 0
        %v924 = vsel %vm844, %v921, 0
        %926 = vmatprep.subr.mxu0 0.0
        %927 = vmatpush1.xpose.msra.mxu0 0.0
        %928 = vmatprep.subr.mxu0 0.0
        %929 = vmatpush1.xpose.msra.mxu0 0.0
        %930 = vmatprep.subr.mxu0 0.0
        %931 = vmatpush1.xpose.msra.mxu0 0.0
        %932 = vmatprep.subr.mxu0 0.0
        %933 = vmatpush1.xpose.msra.mxu0 0.0
        %934 = vmatprep.subr.mxu0 0.0
        %935 = vmatpush1.xpose.msra.mxu0 0.0
        %936 = vmatprep.subr.mxu0 0.0
        %937 = vmatpush1.xpose.msra.mxu0 0.0
        %938 = vmatprep.subr.mxu0 0.0
        %939 = vmatpush1.xpose.msra.mxu0 0.0
        %940 = vmatprep.subr.mxu0 0.0
        %941 = vmatpush1.xpose.msra.mxu0 0.0
        %942 = vmatprep.subr.mxu0 0.0
        %943 = vmatpush1.xpose.msra.mxu0 0.0
        %944 = vmatprep.subr.mxu0 0.0
        %945 = vmatpush1.xpose.msra.mxu0 0.0
        %946 = vmatprep.subr.mxu0 0.0
        %947 = vmatpush1.xpose.msra.mxu0 0.0
        %948 = vmatprep.subr.mxu0 0.0
        %949 = vmatpush1.xpose.msra.mxu0 0.0
        %950 = vmatprep.subr.mxu0 0.0
        %951 = vmatpush1.xpose.msra.mxu0 0.0
        %952 = vmatprep.subr.mxu0 0.0
        %953 = vmatpush1.xpose.msra.mxu0 0.0
        %954 = vmatprep.subr.mxu0 0.0
        %955 = vmatpush1.xpose.msra.mxu0 0.0
        %956 = vmatprep.subr.mxu0 0.0
        %957 = vmatpush1.xpose.msra.mxu0 %v924
        %958 = vmatprep.subr.mxu0 0.0
        %959 = vmatpush2.xpose.msra.mxu0 0.0
        %960 = vmatprep.subr.mxu0 0.0
        %961 = vmatpush2.xpose.msra.mxu0 0.0
        %962 = vmatprep.subr.mxu0 0.0
        %963 = vmatpush2.xpose.msra.mxu0 0.0
        %964 = vmatprep.subr.mxu0 0.0
        %965 = vmatpush2.xpose.msra.mxu0 0.0
        %966 = vmatprep.subr.mxu0 0.0
        %967 = vmatpush2.xpose.msra.mxu0 0.0
        %968 = vmatprep.subr.mxu0 0.0
        %969 = vmatpush2.xpose.msra.mxu0 0.0
        %970 = vmatprep.subr.mxu0 0.0
        %971 = vmatpush2.xpose.msra.mxu0 0.0
        %972 = vmatprep.subr.mxu0 0.0
        %973 = vmatpush2.xpose.msra.mxu0 0.0
        %974 = vmatprep.subr.mxu0 0.0
        %975 = vmatpush2.xpose.msra.mxu0 0.0
        %976 = vmatprep.subr.mxu0 0.0
        %977 = vmatpush2.xpose.msra.mxu0 0.0
        %978 = vmatprep.subr.mxu0 0.0
        %979 = vmatpush2.xpose.msra.mxu0 0.0
        %980 = vmatprep.subr.mxu0 0.0
        %981 = vmatpush2.xpose.msra.mxu0 0.0
        %982 = vmatprep.subr.mxu0 0.0
        %983 = vmatpush2.xpose.msra.mxu0 0.0
        %984 = vmatprep.subr.mxu0 0.0
        %985 = vmatpush2.xpose.msra.mxu0 0.0
        %986 = vmatprep.subr.mxu0 0.0
        %987 = vmatpush2.xpose.msra.mxu0 0.0
        %988 = vmatprep.subr.mxu0 0.0
        %989 = vmatpush2.xpose.msra.mxu0 0.0
        %990 = vmatprep.mubr.f32.mxu0 0.0
        %991 = vmatmul.mubr.f32.gmra.mxu0 %v922
        %v992 = vpop.f32.mrf.mxu0
        %v993 = vadd.f32 0.0, %v992
        %v994 = vpop.f32.mrf.mxu0
        %995 = vdwg.mxu0
        %v996 = vmul.f32 %v916, 0.35355338
        %v997 = vmul.f32 %v993, 0.35355338
        %v998 = vsel %vm844, %v996, -inf
        %999 = vmax.xlane.f32.xlu0 %v998
        %v1000 = vpop.xlane.xlu0 %999
        %v1001 = vsel %vm844, %v997, -inf
        %1002 = vmax.xlane.f32.xlu0 %v1001
        %v1003 = vpop.xlane.xlu0 %1002
        %v1004 = vsub.f32 %v996, %v1000
        %v1005 = vsub.f32 %v997, %v1003
        %v1006 = vmul.f32 %v1004, 1.442695
        %v1007 = vpow.pop %v1006
        %v1008 = vmul.f32 %v1005, 1.442695
        %v1009 = vpow.pop %v1008
        %v1010 = vsel %vm844, %v1007, 0.0
        %1011 = vadd.xlane.f32.xlu0 %v1010
        %v1012 = vpop.xlane.xlu0 %1011
        %v1013 = vsel %vm844, %v1009, 0.0
        %1014 = vadd.xlane.f32.xlu0 %v1013
        %v1015 = vpop.xlane.xlu0 %1014
        %v1016 = vrcp.pop %v1012
        %v1017 = vmul.f32 %v1007, %v1016
        %v1018 = vrcp.pop %v1015
        %v1019 = vmul.f32 %v1009, %v1018
        %1020 = vrot.lane.b32.xlu0 %v833, 64
        %v1021 = vpop.permute.xlu0 %1020
        %v1024 = vsel %vm844, %v1017, 0
        %1026 = vmatprep.subr.mxu0 0.0
        %1027 = vmatpush1.msra.mxu0 0.0
        %1028 = vmatprep.subr.mxu0 0.0
        %1029 = vmatpush1.msra.mxu0 0.0
        %1030 = vmatprep.subr.mxu0 0.0
        %1031 = vmatpush1.msra.mxu0 0.0
        %1032 = vmatprep.subr.mxu0 0.0
        %1033 = vmatpush1.msra.mxu0 0.0
        %1034 = vmatprep.subr.mxu0 0.0
        %1035 = vmatpush1.msra.mxu0 0.0
        %1036 = vmatprep.subr.mxu0 0.0
        %1037 = vmatpush1.msra.mxu0 0.0
        %1038 = vmatprep.subr.mxu0 0.0
        %1039 = vmatpush1.msra.mxu0 0.0
        %1040 = vmatprep.subr.mxu0 0.0
        %1041 = vmatpush1.msra.mxu0 0.0
        %1042 = vmatprep.subr.mxu0 0.0
        %1043 = vmatpush1.msra.mxu0 0.0
        %1044 = vmatprep.subr.mxu0 0.0
        %1045 = vmatpush1.msra.mxu0 0.0
        %1046 = vmatprep.subr.mxu0 0.0
        %1047 = vmatpush1.msra.mxu0 0.0
        %1048 = vmatprep.subr.mxu0 0.0
        %1049 = vmatpush1.msra.mxu0 0.0
        %1050 = vmatprep.subr.mxu0 0.0
        %1051 = vmatpush1.msra.mxu0 0.0
        %1052 = vmatprep.subr.mxu0 0.0
        %1053 = vmatpush1.msra.mxu0 0.0
        %1054 = vmatprep.subr.mxu0 0.0
        %1055 = vmatpush1.msra.mxu0 0.0
        %1056 = vmatprep.subr.mxu0 0.0
        %1057 = vmatpush1.msra.mxu0 %v1021
        %1058 = vmatprep.subr.mxu0 0.0
        %1059 = vmatpush2.msra.mxu0 0.0
        %1060 = vmatprep.subr.mxu0 0.0
        %1061 = vmatpush2.msra.mxu0 0.0
        %1062 = vmatprep.subr.mxu0 0.0
        %1063 = vmatpush2.msra.mxu0 0.0
        %1064 = vmatprep.subr.mxu0 0.0
        %1065 = vmatpush2.msra.mxu0 0.0
        %1066 = vmatprep.subr.mxu0 0.0
        %1067 = vmatpush2.msra.mxu0 0.0
        %1068 = vmatprep.subr.mxu0 0.0
        %1069 = vmatpush2.msra.mxu0 0.0
        %1070 = vmatprep.subr.mxu0 0.0
        %1071 = vmatpush2.msra.mxu0 0.0
        %1072 = vmatprep.subr.mxu0 0.0
        %1073 = vmatpush2.msra.mxu0 0.0
        %1074 = vmatprep.subr.mxu0 0.0
        %1075 = vmatpush2.msra.mxu0 0.0
        %1076 = vmatprep.subr.mxu0 0.0
        %1077 = vmatpush2.msra.mxu0 0.0
        %1078 = vmatprep.subr.mxu0 0.0
        %1079 = vmatpush2.msra.mxu0 0.0
        %1080 = vmatprep.subr.mxu0 0.0
        %1081 = vmatpush2.msra.mxu0 0.0
        %1082 = vmatprep.subr.mxu0 0.0
        %1083 = vmatpush2.msra.mxu0 0.0
        %1084 = vmatprep.subr.mxu0 0.0
        %1085 = vmatpush2.msra.mxu0 0.0
        %1086 = vmatprep.subr.mxu0 0.0
        %1087 = vmatpush2.msra.mxu0 0.0
        %1088 = vmatprep.subr.mxu0 0.0
        %1089 = vmatpush2.msra.mxu0 0.0
        %1090 = vmatprep.mubr.f32.mxu0 0.0
        %1091 = vmatmul.mubr.f32.gmra.mxu0 %v1024
        %v1092 = vpop.f32.mrf.mxu0
        %v1093 = vadd.f32 0.0, %v1092
        %v1094 = vpop.f32.mrf.mxu0
        %1095 = vdwg.mxu0
        %1096 = vrot.lane.b32.xlu0 %v838, 64
        %v1097 = vpop.permute.xlu0 %1096
        %v1100 = vsel %vm844, %v1019, 0
        %1102 = vmatprep.subr.mxu0 0.0
        %1103 = vmatpush1.msra.mxu0 0.0
        %1104 = vmatprep.subr.mxu0 0.0
        %1105 = vmatpush1.msra.mxu0 0.0
        %1106 = vmatprep.subr.mxu0 0.0
        %1107 = vmatpush1.msra.mxu0 0.0
        %1108 = vmatprep.subr.mxu0 0.0
        %1109 = vmatpush1.msra.mxu0 0.0
        %1110 = vmatprep.subr.mxu0 0.0
        %1111 = vmatpush1.msra.mxu0 0.0
        %1112 = vmatprep.subr.mxu0 0.0
        %1113 = vmatpush1.msra.mxu0 0.0
        %1114 = vmatprep.subr.mxu0 0.0
        %1115 = vmatpush1.msra.mxu0 0.0
        %1116 = vmatprep.subr.mxu0 0.0
        %1117 = vmatpush1.msra.mxu0 0.0
        %1118 = vmatprep.subr.mxu0 0.0
        %1119 = vmatpush1.msra.mxu0 0.0
        %1120 = vmatprep.subr.mxu0 0.0
        %1121 = vmatpush1.msra.mxu0 0.0
        %1122 = vmatprep.subr.mxu0 0.0
        %1123 = vmatpush1.msra.mxu0 0.0
        %1124 = vmatprep.subr.mxu0 0.0
        %1125 = vmatpush1.msra.mxu0 0.0
        %1126 = vmatprep.subr.mxu0 0.0
        %1127 = vmatpush1.msra.mxu0 0.0
        %1128 = vmatprep.subr.mxu0 0.0
        %1129 = vmatpush1.msra.mxu0 0.0
        %1130 = vmatprep.subr.mxu0 0.0
        %1131 = vmatpush1.msra.mxu0 0.0
        %1132 = vmatprep.subr.mxu0 0.0
        %1133 = vmatpush1.msra.mxu0 %v1097
        %1134 = vmatprep.subr.mxu0 0.0
        %1135 = vmatpush2.msra.mxu0 0.0
        %1136 = vmatprep.subr.mxu0 0.0
        %1137 = vmatpush2.msra.mxu0 0.0
        %1138 = vmatprep.subr.mxu0 0.0
        %1139 = vmatpush2.msra.mxu0 0.0
        %1140 = vmatprep.subr.mxu0 0.0
        %1141 = vmatpush2.msra.mxu0 0.0
        %1142 = vmatprep.subr.mxu0 0.0
        %1143 = vmatpush2.msra.mxu0 0.0
        %1144 = vmatprep.subr.mxu0 0.0
        %1145 = vmatpush2.msra.mxu0 0.0
        %1146 = vmatprep.subr.mxu0 0.0
        %1147 = vmatpush2.msra.mxu0 0.0
        %1148 = vmatprep.subr.mxu0 0.0
        %1149 = vmatpush2.msra.mxu0 0.0
        %1150 = vmatprep.subr.mxu0 0.0
        %1151 = vmatpush2.msra.mxu0 0.0
        %1152 = vmatprep.subr.mxu0 0.0
        %1153 = vmatpush2.msra.mxu0 0.0
        %1154 = vmatprep.subr.mxu0 0.0
        %1155 = vmatpush2.msra.mxu0 0.0
        %1156 = vmatprep.subr.mxu0 0.0
        %1157 = vmatpush2.msra.mxu0 0.0
        %1158 = vmatprep.subr.mxu0 0.0
        %1159 = vmatpush2.msra.mxu0 0.0
        %1160 = vmatprep.subr.mxu0 0.0
        %1161 = vmatpush2.msra.mxu0 0.0
        %1162 = vmatprep.subr.mxu0 0.0
        %1163 = vmatpush2.msra.mxu0 0.0
        %1164 = vmatprep.subr.mxu0 0.0
        %1165 = vmatpush2.msra.mxu0 0.0
        %1166 = vmatprep.mubr.f32.mxu0 0.0
        %1167 = vmatmul.mubr.f32.gmra.mxu0 %v1100
        %v1168 = vpop.f32.mrf.mxu0
        %v1169 = vadd.f32 0.0, %v1168
        %v1170 = vpop.f32.mrf.mxu0
        %1171 = vdwg.mxu0
        %1172 = vrot.lane.b32.xlu0 %v833, 120
        %v1173 = vpop.permute.xlu0 %1172
        %1174 = vrot.lane.b32.xlu0 %v833, 88
        %v1175 = vpop.permute.xlu0 %1174
        %v1176 = vsel %vm844, %v1173, 0
        %v1178 = vsel %vm844, %v1175, 0
        %1180 = vmatprep.subr.mxu0 0.0
        %1181 = vmatpush1.xpose.msra.mxu0 0.0
        %1182 = vmatprep.subr.mxu0 0.0
        %1183 = vmatpush1.xpose.msra.mxu0 0.0
        %1184 = vmatprep.subr.mxu0 0.0
        %1185 = vmatpush1.xpose.msra.mxu0 0.0
        %1186 = vmatprep.subr.mxu0 0.0
        %1187 = vmatpush1.xpose.msra.mxu0 0.0
        %1188 = vmatprep.subr.mxu0 0.0
        %1189 = vmatpush1.xpose.msra.mxu0 0.0
        %1190 = vmatprep.subr.mxu0 0.0
        %1191 = vmatpush1.xpose.msra.mxu0 0.0
        %1192 = vmatprep.subr.mxu0 0.0
        %1193 = vmatpush1.xpose.msra.mxu0 0.0
        %1194 = vmatprep.subr.mxu0 0.0
        %1195 = vmatpush1.xpose.msra.mxu0 0.0
        %1196 = vmatprep.subr.mxu0 0.0
        %1197 = vmatpush1.xpose.msra.mxu0 0.0
        %1198 = vmatprep.subr.mxu0 0.0
        %1199 = vmatpush1.xpose.msra.mxu0 0.0
        %1200 = vmatprep.subr.mxu0 0.0
        %1201 = vmatpush1.xpose.msra.mxu0 0.0
        %1202 = vmatprep.subr.mxu0 0.0
        %1203 = vmatpush1.xpose.msra.mxu0 0.0
        %1204 = vmatprep.subr.mxu0 0.0
        %1205 = vmatpush1.xpose.msra.mxu0 0.0
        %1206 = vmatprep.subr.mxu0 0.0
        %1207 = vmatpush1.xpose.msra.mxu0 0.0
        %1208 = vmatprep.subr.mxu0 0.0
        %1209 = vmatpush1.xpose.msra.mxu0 0.0
        %1210 = vmatprep.subr.mxu0 0.0
        %1211 = vmatpush1.xpose.msra.mxu0 %v1178
        %1212 = vmatprep.subr.mxu0 0.0
        %1213 = vmatpush2.xpose.msra.mxu0 0.0
        %1214 = vmatprep.subr.mxu0 0.0
        %1215 = vmatpush2.xpose.msra.mxu0 0.0
        %1216 = vmatprep.subr.mxu0 0.0
        %1217 = vmatpush2.xpose.msra.mxu0 0.0
        %1218 = vmatprep.subr.mxu0 0.0
        %1219 = vmatpush2.xpose.msra.mxu0 0.0
        %1220 = vmatprep.subr.mxu0 0.0
        %1221 = vmatpush2.xpose.msra.mxu0 0.0
        %1222 = vmatprep.subr.mxu0 0.0
        %1223 = vmatpush2.xpose.msra.mxu0 0.0
        %1224 = vmatprep.subr.mxu0 0.0
        %1225 = vmatpush2.xpose.msra.mxu0 0.0
        %1226 = vmatprep.subr.mxu0 0.0
        %1227 = vmatpush2.xpose.msra.mxu0 0.0
        %1228 = vmatprep.subr.mxu0 0.0
        %1229 = vmatpush2.xpose.msra.mxu0 0.0
        %1230 = vmatprep.subr.mxu0 0.0
        %1231 = vmatpush2.xpose.msra.mxu0 0.0
        %1232 = vmatprep.subr.mxu0 0.0
        %1233 = vmatpush2.xpose.msra.mxu0 0.0
        %1234 = vmatprep.subr.mxu0 0.0
        %1235 = vmatpush2.xpose.msra.mxu0 0.0
        %1236 = vmatprep.subr.mxu0 0.0
        %1237 = vmatpush2.xpose.msra.mxu0 0.0
        %1238 = vmatprep.subr.mxu0 0.0
        %1239 = vmatpush2.xpose.msra.mxu0 0.0
        %1240 = vmatprep.subr.mxu0 0.0
        %1241 = vmatpush2.xpose.msra.mxu0 0.0
        %1242 = vmatprep.subr.mxu0 0.0
        %1243 = vmatpush2.xpose.msra.mxu0 0.0
        %1244 = vmatprep.mubr.f32.mxu0 0.0
        %1245 = vmatmul.mubr.f32.gmra.mxu0 %v1176
        %v1246 = vpop.f32.mrf.mxu0
        %v1247 = vadd.f32 0.0, %v1246
        %v1248 = vpop.f32.mrf.mxu0
        %1249 = vdwg.mxu0
        %1250 = vrot.lane.b32.xlu0 %v838, 120
        %v1251 = vpop.permute.xlu0 %1250
        %1252 = vrot.lane.b32.xlu0 %v838, 88
        %v1253 = vpop.permute.xlu0 %1252
        %v1254 = vsel %vm844, %v1251, 0
        %v1256 = vsel %vm844, %v1253, 0
        %1258 = vmatprep.subr.mxu0 0.0
        %1259 = vmatpush1.xpose.msra.mxu0 0.0
        %1260 = vmatprep.subr.mxu0 0.0
        %1261 = vmatpush1.xpose.msra.mxu0 0.0
        %1262 = vmatprep.subr.mxu0 0.0
        %1263 = vmatpush1.xpose.msra.mxu0 0.0
        %1264 = vmatprep.subr.mxu0 0.0
        %1265 = vmatpush1.xpose.msra.mxu0 0.0
        %1266 = vmatprep.subr.mxu0 0.0
        %1267 = vmatpush1.xpose.msra.mxu0 0.0
        %1268 = vmatprep.subr.mxu0 0.0
        %1269 = vmatpush1.xpose.msra.mxu0 0.0
        %1270 = vmatprep.subr.mxu0 0.0
        %1271 = vmatpush1.xpose.msra.mxu0 0.0
        %1272 = vmatprep.subr.mxu0 0.0
        %1273 = vmatpush1.xpose.msra.mxu0 0.0
        %1274 = vmatprep.subr.mxu0 0.0
        %1275 = vmatpush1.xpose.msra.mxu0 0.0
        %1276 = vmatprep.subr.mxu0 0.0
        %1277 = vmatpush1.xpose.msra.mxu0 0.0
        %1278 = vmatprep.subr.mxu0 0.0
        %1279 = vmatpush1.xpose.msra.mxu0 0.0
        %1280 = vmatprep.subr.mxu0 0.0
        %1281 = vmatpush1.xpose.msra.mxu0 0.0
        %1282 = vmatprep.subr.mxu0 0.0
        %1283 = vmatpush1.xpose.msra.mxu0 0.0
        %1284 = vmatprep.subr.mxu0 0.0
        %1285 = vmatpush1.xpose.msra.mxu0 0.0
        %1286 = vmatprep.subr.mxu0 0.0
        %1287 = vmatpush1.xpose.msra.mxu0 0.0
        %1288 = vmatprep.subr.mxu0 0.0
        %1289 = vmatpush1.xpose.msra.mxu0 %v1256
        %1290 = vmatprep.subr.mxu0 0.0
        %1291 = vmatpush2.xpose.msra.mxu0 0.0
        %1292 = vmatprep.subr.mxu0 0.0
        %1293 = vmatpush2.xpose.msra.mxu0 0.0
        %1294 = vmatprep.subr.mxu0 0.0
        %1295 = vmatpush2.xpose.msra.mxu0 0.0
        %1296 = vmatprep.subr.mxu0 0.0
        %1297 = vmatpush2.xpose.msra.mxu0 0.0
        %1298 = vmatprep.subr.mxu0 0.0
        %1299 = vmatpush2.xpose.msra.mxu0 0.0
        %1300 = vmatprep.subr.mxu0 0.0
        %1301 = vmatpush2.xpose.msra.mxu0 0.0
        %1302 = vmatprep.subr.mxu0 0.0
        %1303 = vmatpush2.xpose.msra.mxu0 0.0
        %1304 = vmatprep.subr.mxu0 0.0
        %1305 = vmatpush2.xpose.msra.mxu0 0.0
        %1306 = vmatprep.subr.mxu0 0.0
        %1307 = vmatpush2.xpose.msra.mxu0 0.0
        %1308 = vmatprep.subr.mxu0 0.0
        %1309 = vmatpush2.xpose.msra.mxu0 0.0
        %1310 = vmatprep.subr.mxu0 0.0
        %1311 = vmatpush2.xpose.msra.mxu0 0.0
        %1312 = vmatprep.subr.mxu0 0.0
        %1313 = vmatpush2.xpose.msra.mxu0 0.0
        %1314 = vmatprep.subr.mxu0 0.0
        %1315 = vmatpush2.xpose.msra.mxu0 0.0
        %1316 = vmatprep.subr.mxu0 0.0
        %1317 = vmatpush2.xpose.msra.mxu0 0.0
        %1318 = vmatprep.subr.mxu0 0.0
        %1319 = vmatpush2.xpose.msra.mxu0 0.0
        %1320 = vmatprep.subr.mxu0 0.0
        %1321 = vmatpush2.xpose.msra.mxu0 0.0
        %1322 = vmatprep.mubr.f32.mxu0 0.0
        %1323 = vmatmul.mubr.f32.gmra.mxu0 %v1254
        %v1324 = vpop.f32.mrf.mxu0
        %v1325 = vadd.f32 0.0, %v1324
        %v1326 = vpop.f32.mrf.mxu0
        %1327 = vdwg.mxu0
        %v1328 = vmul.f32 %v1247, 0.35355338
        %v1329 = vmul.f32 %v1325, 0.35355338
        %v1330 = vsel %vm844, %v1328, -inf
        %1331 = vmax.xlane.f32.xlu0 %v1330
        %v1332 = vpop.xlane.xlu0 %1331
        %v1333 = vsel %vm844, %v1329, -inf
        %1334 = vmax.xlane.f32.xlu0 %v1333
        %v1335 = vpop.xlane.xlu0 %1334
        %v1336 = vsub.f32 %v1328, %v1332
        %v1337 = vsub.f32 %v1329, %v1335
        %v1338 = vmul.f32 %v1336, 1.442695
        %v1339 = vpow.pop %v1338
        %v1340 = vmul.f32 %v1337, 1.442695
        %v1341 = vpow.pop %v1340
        %v1342 = vsel %vm844, %v1339, 0.0
        %1343 = vadd.xlane.f32.xlu0 %v1342
        %v1344 = vpop.xlane.xlu0 %1343
        %v1345 = vsel %vm844, %v1341, 0.0
        %1346 = vadd.xlane.f32.xlu0 %v1345
        %v1347 = vpop.xlane.xlu0 %1346
        %v1348 = vrcp.pop %v1344
        %v1349 = vmul.f32 %v1339, %v1348
        %v1350 = vrcp.pop %v1347
        %v1351 = vmul.f32 %v1341, %v1350
        %1352 = vrot.lane.b32.xlu0 %v833, 56
        %v1353 = vpop.permute.xlu0 %1352
        %v1356 = vsel %vm844, %v1349, 0
        %1358 = vmatprep.subr.mxu0 0.0
        %1359 = vmatpush1.msra.mxu0 0.0
        %1360 = vmatprep.subr.mxu0 0.0
        %1361 = vmatpush1.msra.mxu0 0.0
        %1362 = vmatprep.subr.mxu0 0.0
        %1363 = vmatpush1.msra.mxu0 0.0
        %1364 = vmatprep.subr.mxu0 0.0
        %1365 = vmatpush1.msra.mxu0 0.0
        %1366 = vmatprep.subr.mxu0 0.0
        %1367 = vmatpush1.msra.mxu0 0.0
        %1368 = vmatprep.subr.mxu0 0.0
        %1369 = vmatpush1.msra.mxu0 0.0
        %1370 = vmatprep.subr.mxu0 0.0
        %1371 = vmatpush1.msra.mxu0 0.0
        %1372 = vmatprep.subr.mxu0 0.0
        %1373 = vmatpush1.msra.mxu0 0.0
        %1374 = vmatprep.subr.mxu0 0.0
        %1375 = vmatpush1.msra.mxu0 0.0
        %1376 = vmatprep.subr.mxu0 0.0
        %1377 = vmatpush1.msra.mxu0 0.0
        %1378 = vmatprep.subr.mxu0 0.0
        %1379 = vmatpush1.msra.mxu0 0.0
        %1380 = vmatprep.subr.mxu0 0.0
        %1381 = vmatpush1.msra.mxu0 0.0
        %1382 = vmatprep.subr.mxu0 0.0
        %1383 = vmatpush1.msra.mxu0 0.0
        %1384 = vmatprep.subr.mxu0 0.0
        %1385 = vmatpush1.msra.mxu0 0.0
        %1386 = vmatprep.subr.mxu0 0.0
        %1387 = vmatpush1.msra.mxu0 0.0
        %1388 = vmatprep.subr.mxu0 0.0
        %1389 = vmatpush1.msra.mxu0 %v1353
        %1390 = vmatprep.subr.mxu0 0.0
        %1391 = vmatpush2.msra.mxu0 0.0
        %1392 = vmatprep.subr.mxu0 0.0
        %1393 = vmatpush2.msra.mxu0 0.0
        %1394 = vmatprep.subr.mxu0 0.0
        %1395 = vmatpush2.msra.mxu0 0.0
        %1396 = vmatprep.subr.mxu0 0.0
        %1397 = vmatpush2.msra.mxu0 0.0
        %1398 = vmatprep.subr.mxu0 0.0
        %1399 = vmatpush2.msra.mxu0 0.0
        %1400 = vmatprep.subr.mxu0 0.0
        %1401 = vmatpush2.msra.mxu0 0.0
        %1402 = vmatprep.subr.mxu0 0.0
        %1403 = vmatpush2.msra.mxu0 0.0
        %1404 = vmatprep.subr.mxu0 0.0
        %1405 = vmatpush2.msra.mxu0 0.0
        %1406 = vmatprep.subr.mxu0 0.0
        %1407 = vmatpush2.msra.mxu0 0.0
        %1408 = vmatprep.subr.mxu0 0.0
        %1409 = vmatpush2.msra.mxu0 0.0
        %1410 = vmatprep.subr.mxu0 0.0
        %1411 = vmatpush2.msra.mxu0 0.0
        %1412 = vmatprep.subr.mxu0 0.0
        %1413 = vmatpush2.msra.mxu0 0.0
        %1414 = vmatprep.subr.mxu0 0.0
        %1415 = vmatpush2.msra.mxu0 0.0
        %1416 = vmatprep.subr.mxu0 0.0
        %1417 = vmatpush2.msra.mxu0 0.0
        %1418 = vmatprep.subr.mxu0 0.0
        %1419 = vmatpush2.msra.mxu0 0.0
        %1420 = vmatprep.subr.mxu0 0.0
        %1421 = vmatpush2.msra.mxu0 0.0
        %1422 = vmatprep.mubr.f32.mxu0 0.0
        %1423 = vmatmul.mubr.f32.gmra.mxu0 %v1356
        %v1424 = vpop.f32.mrf.mxu0
        %v1425 = vadd.f32 0.0, %v1424
        %v1426 = vpop.f32.mrf.mxu0
        %1427 = vdwg.mxu0
        %1428 = vrot.lane.b32.xlu0 %v838, 56
        %v1429 = vpop.permute.xlu0 %1428
        %v1432 = vsel %vm844, %v1351, 0
        %1434 = vmatprep.subr.mxu0 0.0
        %1435 = vmatpush1.msra.mxu0 0.0
        %1436 = vmatprep.subr.mxu0 0.0
        %1437 = vmatpush1.msra.mxu0 0.0
        %1438 = vmatprep.subr.mxu0 0.0
        %1439 = vmatpush1.msra.mxu0 0.0
        %1440 = vmatprep.subr.mxu0 0.0
        %1441 = vmatpush1.msra.mxu0 0.0
        %1442 = vmatprep.subr.mxu0 0.0
        %1443 = vmatpush1.msra.mxu0 0.0
        %1444 = vmatprep.subr.mxu0 0.0
        %1445 = vmatpush1.msra.mxu0 0.0
        %1446 = vmatprep.subr.mxu0 0.0
        %1447 = vmatpush1.msra.mxu0 0.0
        %1448 = vmatprep.subr.mxu0 0.0
        %1449 = vmatpush1.msra.mxu0 0.0
        %1450 = vmatprep.subr.mxu0 0.0
        %1451 = vmatpush1.msra.mxu0 0.0
        %1452 = vmatprep.subr.mxu0 0.0
        %1453 = vmatpush1.msra.mxu0 0.0
        %1454 = vmatprep.subr.mxu0 0.0
        %1455 = vmatpush1.msra.mxu0 0.0
        %1456 = vmatprep.subr.mxu0 0.0
        %1457 = vmatpush1.msra.mxu0 0.0
        %1458 = vmatprep.subr.mxu0 0.0
        %1459 = vmatpush1.msra.mxu0 0.0
        %1460 = vmatprep.subr.mxu0 0.0
        %1461 = vmatpush1.msra.mxu0 0.0
        %1462 = vmatprep.subr.mxu0 0.0
        %1463 = vmatpush1.msra.mxu0 0.0
        %1464 = vmatprep.subr.mxu0 0.0
        %1465 = vmatpush1.msra.mxu0 %v1429
        %1466 = vmatprep.subr.mxu0 0.0
        %1467 = vmatpush2.msra.mxu0 0.0
        %1468 = vmatprep.subr.mxu0 0.0
        %1469 = vmatpush2.msra.mxu0 0.0
        %1470 = vmatprep.subr.mxu0 0.0
        %1471 = vmatpush2.msra.mxu0 0.0
        %1472 = vmatprep.subr.mxu0 0.0
        %1473 = vmatpush2.msra.mxu0 0.0
        %1474 = vmatprep.subr.mxu0 0.0
        %1475 = vmatpush2.msra.mxu0 0.0
        %1476 = vmatprep.subr.mxu0 0.0
        %1477 = vmatpush2.msra.mxu0 0.0
        %1478 = vmatprep.subr.mxu0 0.0
        %1479 = vmatpush2.msra.mxu0 0.0
        %1480 = vmatprep.subr.mxu0 0.0
        %1481 = vmatpush2.msra.mxu0 0.0
        %1482 = vmatprep.subr.mxu0 0.0
        %1483 = vmatpush2.msra.mxu0 0.0
        %1484 = vmatprep.subr.mxu0 0.0
        %1485 = vmatpush2.msra.mxu0 0.0
        %1486 = vmatprep.subr.mxu0 0.0
        %1487 = vmatpush2.msra.mxu0 0.0
        %1488 = vmatprep.subr.mxu0 0.0
        %1489 = vmatpush2.msra.mxu0 0.0
        %1490 = vmatprep.subr.mxu0 0.0
        %1491 = vmatpush2.msra.mxu0 0.0
        %1492 = vmatprep.subr.mxu0 0.0
        %1493 = vmatpush2.msra.mxu0 0.0
        %1494 = vmatprep.subr.mxu0 0.0
        %1495 = vmatpush2.msra.mxu0 0.0
        %1496 = vmatprep.subr.mxu0 0.0
        %1497 = vmatpush2.msra.mxu0 0.0
        %1498 = vmatprep.mubr.f32.mxu0 0.0
        %1499 = vmatmul.mubr.f32.gmra.mxu0 %v1432
        %v1500 = vpop.f32.mrf.mxu0
        %v1501 = vadd.f32 0.0, %v1500
        %v1502 = vpop.f32.mrf.mxu0
        %1503 = vdwg.mxu0
        %1504 = vrot.lane.b32.xlu0 %v833, 112
        %v1505 = vpop.permute.xlu0 %1504
        %1506 = vrot.lane.b32.xlu0 %v833, 80
        %v1507 = vpop.permute.xlu0 %1506
        %v1508 = vsel %vm844, %v1505, 0
        %v1510 = vsel %vm844, %v1507, 0
        %1512 = vmatprep.subr.mxu0 0.0
        %1513 = vmatpush1.xpose.msra.mxu0 0.0
        %1514 = vmatprep.subr.mxu0 0.0
        %1515 = vmatpush1.xpose.msra.mxu0 0.0
        %1516 = vmatprep.subr.mxu0 0.0
        %1517 = vmatpush1.xpose.msra.mxu0 0.0
        %1518 = vmatprep.subr.mxu0 0.0
        %1519 = vmatpush1.xpose.msra.mxu0 0.0
        %1520 = vmatprep.subr.mxu0 0.0
        %1521 = vmatpush1.xpose.msra.mxu0 0.0
        %1522 = vmatprep.subr.mxu0 0.0
        %1523 = vmatpush1.xpose.msra.mxu0 0.0
        %1524 = vmatprep.subr.mxu0 0.0
        %1525 = vmatpush1.xpose.msra.mxu0 0.0
        %1526 = vmatprep.subr.mxu0 0.0
        %1527 = vmatpush1.xpose.msra.mxu0 0.0
        %1528 = vmatprep.subr.mxu0 0.0
        %1529 = vmatpush1.xpose.msra.mxu0 0.0
        %1530 = vmatprep.subr.mxu0 0.0
        %1531 = vmatpush1.xpose.msra.mxu0 0.0
        %1532 = vmatprep.subr.mxu0 0.0
        %1533 = vmatpush1.xpose.msra.mxu0 0.0
        %1534 = vmatprep.subr.mxu0 0.0
        %1535 = vmatpush1.xpose.msra.mxu0 0.0
        %1536 = vmatprep.subr.mxu0 0.0
        %1537 = vmatpush1.xpose.msra.mxu0 0.0
        %1538 = vmatprep.subr.mxu0 0.0
        %1539 = vmatpush1.xpose.msra.mxu0 0.0
        %1540 = vmatprep.subr.mxu0 0.0
        %1541 = vmatpush1.xpose.msra.mxu0 0.0
        %1542 = vmatprep.subr.mxu0 0.0
        %1543 = vmatpush1.xpose.msra.mxu0 %v1510
        %1544 = vmatprep.subr.mxu0 0.0
        %1545 = vmatpush2.xpose.msra.mxu0 0.0
        %1546 = vmatprep.subr.mxu0 0.0
        %1547 = vmatpush2.xpose.msra.mxu0 0.0
        %1548 = vmatprep.subr.mxu0 0.0
        %1549 = vmatpush2.xpose.msra.mxu0 0.0
        %1550 = vmatprep.subr.mxu0 0.0
        %1551 = vmatpush2.xpose.msra.mxu0 0.0
        %1552 = vmatprep.subr.mxu0 0.0
        %1553 = vmatpush2.xpose.msra.mxu0 0.0
        %1554 = vmatprep.subr.mxu0 0.0
        %1555 = vmatpush2.xpose.msra.mxu0 0.0
        %1556 = vmatprep.subr.mxu0 0.0
        %1557 = vmatpush2.xpose.msra.mxu0 0.0
        %1558 = vmatprep.subr.mxu0 0.0
        %1559 = vmatpush2.xpose.msra.mxu0 0.0
        %1560 = vmatprep.subr.mxu0 0.0
        %1561 = vmatpush2.xpose.msra.mxu0 0.0
        %1562 = vmatprep.subr.mxu0 0.0
        %1563 = vmatpush2.xpose.msra.mxu0 0.0
        %1564 = vmatprep.subr.mxu0 0.0
        %1565 = vmatpush2.xpose.msra.mxu0 0.0
        %1566 = vmatprep.subr.mxu0 0.0
        %1567 = vmatpush2.xpose.msra.mxu0 0.0
        %1568 = vmatprep.subr.mxu0 0.0
        %1569 = vmatpush2.xpose.msra.mxu0 0.0
        %1570 = vmatprep.subr.mxu0 0.0
        %1571 = vmatpush2.xpose.msra.mxu0 0.0
        %1572 = vmatprep.subr.mxu0 0.0
        %1573 = vmatpush2.xpose.msra.mxu0 0.0
        %1574 = vmatprep.subr.mxu0 0.0
        %1575 = vmatpush2.xpose.msra.mxu0 0.0
        %1576 = vmatprep.mubr.f32.mxu0 0.0
        %1577 = vmatmul.mubr.f32.gmra.mxu0 %v1508
        %v1578 = vpop.f32.mrf.mxu0
        %v1579 = vadd.f32 0.0, %v1578
        %v1580 = vpop.f32.mrf.mxu0
        %1581 = vdwg.mxu0
        %1582 = vrot.lane.b32.xlu0 %v838, 112
        %v1583 = vpop.permute.xlu0 %1582
        %1584 = vrot.lane.b32.xlu0 %v838, 80
        %v1585 = vpop.permute.xlu0 %1584
        %v1586 = vsel %vm844, %v1583, 0
        %v1588 = vsel %vm844, %v1585, 0
        %1590 = vmatprep.subr.mxu0 0.0
        %1591 = vmatpush1.xpose.msra.mxu0 0.0
        %1592 = vmatprep.subr.mxu0 0.0
        %1593 = vmatpush1.xpose.msra.mxu0 0.0
        %1594 = vmatprep.subr.mxu0 0.0
        %1595 = vmatpush1.xpose.msra.mxu0 0.0
        %1596 = vmatprep.subr.mxu0 0.0
        %1597 = vmatpush1.xpose.msra.mxu0 0.0
        %1598 = vmatprep.subr.mxu0 0.0
        %1599 = vmatpush1.xpose.msra.mxu0 0.0
        %1600 = vmatprep.subr.mxu0 0.0
        %1601 = vmatpush1.xpose.msra.mxu0 0.0
        %1602 = vmatprep.subr.mxu0 0.0
        %1603 = vmatpush1.xpose.msra.mxu0 0.0
        %1604 = vmatprep.subr.mxu0 0.0
        %1605 = vmatpush1.xpose.msra.mxu0 0.0
        %1606 = vmatprep.subr.mxu0 0.0
        %1607 = vmatpush1.xpose.msra.mxu0 0.0
        %1608 = vmatprep.subr.mxu0 0.0
        %1609 = vmatpush1.xpose.msra.mxu0 0.0
        %1610 = vmatprep.subr.mxu0 0.0
        %1611 = vmatpush1.xpose.msra.mxu0 0.0
        %1612 = vmatprep.subr.mxu0 0.0
        %1613 = vmatpush1.xpose.msra.mxu0 0.0
        %1614 = vmatprep.subr.mxu0 0.0
        %1615 = vmatpush1.xpose.msra.mxu0 0.0
        %1616 = vmatprep.subr.mxu0 0.0
        %1617 = vmatpush1.xpose.msra.mxu0 0.0
        %1618 = vmatprep.subr.mxu0 0.0
        %1619 = vmatpush1.xpose.msra.mxu0 0.0
        %1620 = vmatprep.subr.mxu0 0.0
        %1621 = vmatpush1.xpose.msra.mxu0 %v1588
        %1622 = vmatprep.subr.mxu0 0.0
        %1623 = vmatpush2.xpose.msra.mxu0 0.0
        %1624 = vmatprep.subr.mxu0 0.0
        %1625 = vmatpush2.xpose.msra.mxu0 0.0
        %1626 = vmatprep.subr.mxu0 0.0
        %1627 = vmatpush2.xpose.msra.mxu0 0.0
        %1628 = vmatprep.subr.mxu0 0.0
        %1629 = vmatpush2.xpose.msra.mxu0 0.0
        %1630 = vmatprep.subr.mxu0 0.0
        %1631 = vmatpush2.xpose.msra.mxu0 0.0
        %1632 = vmatprep.subr.mxu0 0.0
        %1633 = vmatpush2.xpose.msra.mxu0 0.0
        %1634 = vmatprep.subr.mxu0 0.0
        %1635 = vmatpush2.xpose.msra.mxu0 0.0
        %1636 = vmatprep.subr.mxu0 0.0
        %1637 = vmatpush2.xpose.msra.mxu0 0.0
        %1638 = vmatprep.subr.mxu0 0.0
        %1639 = vmatpush2.xpose.msra.mxu0 0.0
        %1640 = vmatprep.subr.mxu0 0.0
        %1641 = vmatpush2.xpose.msra.mxu0 0.0
        %1642 = vmatprep.subr.mxu0 0.0
        %1643 = vmatpush2.xpose.msra.mxu0 0.0
        %1644 = vmatprep.subr.mxu0 0.0
        %1645 = vmatpush2.xpose.msra.mxu0 0.0
        %1646 = vmatprep.subr.mxu0 0.0
        %1647 = vmatpush2.xpose.msra.mxu0 0.0
        %1648 = vmatprep.subr.mxu0 0.0
        %1649 = vmatpush2.xpose.msra.mxu0 0.0
        %1650 = vmatprep.subr.mxu0 0.0
        %1651 = vmatpush2.xpose.msra.mxu0 0.0
        %1652 = vmatprep.subr.mxu0 0.0
        %1653 = vmatpush2.xpose.msra.mxu0 0.0
        %1654 = vmatprep.mubr.f32.mxu0 0.0
        %1655 = vmatmul.mubr.f32.gmra.mxu0 %v1586
        %v1656 = vpop.f32.mrf.mxu0
        %v1657 = vadd.f32 0.0, %v1656
        %v1658 = vpop.f32.mrf.mxu0
        %1659 = vdwg.mxu0
        %v1660 = vmul.f32 %v1579, 0.35355338
        %v1661 = vmul.f32 %v1657, 0.35355338
        %v1662 = vsel %vm844, %v1660, -inf
        %1663 = vmax.xlane.f32.xlu0 %v1662
        %v1664 = vpop.xlane.xlu0 %1663
        %v1665 = vsel %vm844, %v1661, -inf
        %1666 = vmax.xlane.f32.xlu0 %v1665
        %v1667 = vpop.xlane.xlu0 %1666
        %v1668 = vsub.f32 %v1660, %v1664
        %v1669 = vsub.f32 %v1661, %v1667
        %v1670 = vmul.f32 %v1668, 1.442695
        %v1671 = vpow.pop %v1670
        %v1672 = vmul.f32 %v1669, 1.442695
        %v1673 = vpow.pop %v1672
        %v1674 = vsel %vm844, %v1671, 0.0
        %1675 = vadd.xlane.f32.xlu0 %v1674
        %v1676 = vpop.xlane.xlu0 %1675
        %v1677 = vsel %vm844, %v1673, 0.0
        %1678 = vadd.xlane.f32.xlu0 %v1677
        %v1679 = vpop.xlane.xlu0 %1678
        %v1680 = vrcp.pop %v1676
        %v1681 = vmul.f32 %v1671, %v1680
        %v1682 = vrcp.pop %v1679
        %v1683 = vmul.f32 %v1673, %v1682
        %1684 = vrot.lane.b32.xlu0 %v833, 48
        %v1685 = vpop.permute.xlu0 %1684
        %v1688 = vsel %vm844, %v1681, 0
        %1690 = vmatprep.subr.mxu0 0.0
        %1691 = vmatpush1.msra.mxu0 0.0
        %1692 = vmatprep.subr.mxu0 0.0
        %1693 = vmatpush1.msra.mxu0 0.0
        %1694 = vmatprep.subr.mxu0 0.0
        %1695 = vmatpush1.msra.mxu0 0.0
        %1696 = vmatprep.subr.mxu0 0.0
        %1697 = vmatpush1.msra.mxu0 0.0
        %1698 = vmatprep.subr.mxu0 0.0
        %1699 = vmatpush1.msra.mxu0 0.0
        %1700 = vmatprep.subr.mxu0 0.0
        %1701 = vmatpush1.msra.mxu0 0.0
        %1702 = vmatprep.subr.mxu0 0.0
        %1703 = vmatpush1.msra.mxu0 0.0
        %1704 = vmatprep.subr.mxu0 0.0
        %1705 = vmatpush1.msra.mxu0 0.0
        %1706 = vmatprep.subr.mxu0 0.0
        %1707 = vmatpush1.msra.mxu0 0.0
        %1708 = vmatprep.subr.mxu0 0.0
        %1709 = vmatpush1.msra.mxu0 0.0
        %1710 = vmatprep.subr.mxu0 0.0
        %1711 = vmatpush1.msra.mxu0 0.0
        %1712 = vmatprep.subr.mxu0 0.0
        %1713 = vmatpush1.msra.mxu0 0.0
        %1714 = vmatprep.subr.mxu0 0.0
        %1715 = vmatpush1.msra.mxu0 0.0
        %1716 = vmatprep.subr.mxu0 0.0
        %1717 = vmatpush1.msra.mxu0 0.0
        %1718 = vmatprep.subr.mxu0 0.0
        %1719 = vmatpush1.msra.mxu0 0.0
        %1720 = vmatprep.subr.mxu0 0.0
        %1721 = vmatpush1.msra.mxu0 %v1685
        %1722 = vmatprep.subr.mxu0 0.0
        %1723 = vmatpush2.msra.mxu0 0.0
        %1724 = vmatprep.subr.mxu0 0.0
        %1725 = vmatpush2.msra.mxu0 0.0
        %1726 = vmatprep.subr.mxu0 0.0
        %1727 = vmatpush2.msra.mxu0 0.0
        %1728 = vmatprep.subr.mxu0 0.0
        %1729 = vmatpush2.msra.mxu0 0.0
        %1730 = vmatprep.subr.mxu0 0.0
        %1731 = vmatpush2.msra.mxu0 0.0
        %1732 = vmatprep.subr.mxu0 0.0
        %1733 = vmatpush2.msra.mxu0 0.0
        %1734 = vmatprep.subr.mxu0 0.0
        %1735 = vmatpush2.msra.mxu0 0.0
        %1736 = vmatprep.subr.mxu0 0.0
        %1737 = vmatpush2.msra.mxu0 0.0
        %1738 = vmatprep.subr.mxu0 0.0
        %1739 = vmatpush2.msra.mxu0 0.0
        %1740 = vmatprep.subr.mxu0 0.0
        %1741 = vmatpush2.msra.mxu0 0.0
        %1742 = vmatprep.subr.mxu0 0.0
        %1743 = vmatpush2.msra.mxu0 0.0
        %1744 = vmatprep.subr.mxu0 0.0
        %1745 = vmatpush2.msra.mxu0 0.0
        %1746 = vmatprep.subr.mxu0 0.0
        %1747 = vmatpush2.msra.mxu0 0.0
        %1748 = vmatprep.subr.mxu0 0.0
        %1749 = vmatpush2.msra.mxu0 0.0
        %1750 = vmatprep.subr.mxu0 0.0
        %1751 = vmatpush2.msra.mxu0 0.0
        %1752 = vmatprep.subr.mxu0 0.0
        %1753 = vmatpush2.msra.mxu0 0.0
        %1754 = vmatprep.mubr.f32.mxu0 0.0
        %1755 = vmatmul.mubr.f32.gmra.mxu0 %v1688
        %v1756 = vpop.f32.mrf.mxu0
        %v1757 = vadd.f32 0.0, %v1756
        %v1758 = vpop.f32.mrf.mxu0
        %1759 = vdwg.mxu0
        %1760 = vrot.lane.b32.xlu0 %v838, 48
        %v1761 = vpop.permute.xlu0 %1760
        %v1764 = vsel %vm844, %v1683, 0
        %1766 = vmatprep.subr.mxu0 0.0
        %1767 = vmatpush1.msra.mxu0 0.0
        %1768 = vmatprep.subr.mxu0 0.0
        %1769 = vmatpush1.msra.mxu0 0.0
        %1770 = vmatprep.subr.mxu0 0.0
        %1771 = vmatpush1.msra.mxu0 0.0
        %1772 = vmatprep.subr.mxu0 0.0
        %1773 = vmatpush1.msra.mxu0 0.0
        %1774 = vmatprep.subr.mxu0 0.0
        %1775 = vmatpush1.msra.mxu0 0.0
        %1776 = vmatprep.subr.mxu0 0.0
        %1777 = vmatpush1.msra.mxu0 0.0
        %1778 = vmatprep.subr.mxu0 0.0
        %1779 = vmatpush1.msra.mxu0 0.0
        %1780 = vmatprep.subr.mxu0 0.0
        %1781 = vmatpush1.msra.mxu0 0.0
        %1782 = vmatprep.subr.mxu0 0.0
        %1783 = vmatpush1.msra.mxu0 0.0
        %1784 = vmatprep.subr.mxu0 0.0
        %1785 = vmatpush1.msra.mxu0 0.0
        %1786 = vmatprep.subr.mxu0 0.0
        %1787 = vmatpush1.msra.mxu0 0.0
        %1788 = vmatprep.subr.mxu0 0.0
        %1789 = vmatpush1.msra.mxu0 0.0
        %1790 = vmatprep.subr.mxu0 0.0
        %1791 = vmatpush1.msra.mxu0 0.0
        %1792 = vmatprep.subr.mxu0 0.0
        %1793 = vmatpush1.msra.mxu0 0.0
        %1794 = vmatprep.subr.mxu0 0.0
        %1795 = vmatpush1.msra.mxu0 0.0
        %1796 = vmatprep.subr.mxu0 0.0
        %1797 = vmatpush1.msra.mxu0 %v1761
        %1798 = vmatprep.subr.mxu0 0.0
        %1799 = vmatpush2.msra.mxu0 0.0
        %1800 = vmatprep.subr.mxu0 0.0
        %1801 = vmatpush2.msra.mxu0 0.0
        %1802 = vmatprep.subr.mxu0 0.0
        %1803 = vmatpush2.msra.mxu0 0.0
        %1804 = vmatprep.subr.mxu0 0.0
        %1805 = vmatpush2.msra.mxu0 0.0
        %1806 = vmatprep.subr.mxu0 0.0
        %1807 = vmatpush2.msra.mxu0 0.0
        %1808 = vmatprep.subr.mxu0 0.0
        %1809 = vmatpush2.msra.mxu0 0.0
        %1810 = vmatprep.subr.mxu0 0.0
        %1811 = vmatpush2.msra.mxu0 0.0
        %1812 = vmatprep.subr.mxu0 0.0
        %1813 = vmatpush2.msra.mxu0 0.0
        %1814 = vmatprep.subr.mxu0 0.0
        %1815 = vmatpush2.msra.mxu0 0.0
        %1816 = vmatprep.subr.mxu0 0.0
        %1817 = vmatpush2.msra.mxu0 0.0
        %1818 = vmatprep.subr.mxu0 0.0
        %1819 = vmatpush2.msra.mxu0 0.0
        %1820 = vmatprep.subr.mxu0 0.0
        %1821 = vmatpush2.msra.mxu0 0.0
        %1822 = vmatprep.subr.mxu0 0.0
        %1823 = vmatpush2.msra.mxu0 0.0
        %1824 = vmatprep.subr.mxu0 0.0
        %1825 = vmatpush2.msra.mxu0 0.0
        %1826 = vmatprep.subr.mxu0 0.0
        %1827 = vmatpush2.msra.mxu0 0.0
        %1828 = vmatprep.subr.mxu0 0.0
        %1829 = vmatpush2.msra.mxu0 0.0
        %1830 = vmatprep.mubr.f32.mxu0 0.0
        %1831 = vmatmul.mubr.f32.gmra.mxu0 %v1764
        %v1832 = vpop.f32.mrf.mxu0
        %v1833 = vadd.f32 0.0, %v1832
        %v1834 = vpop.f32.mrf.mxu0
        %1835 = vdwg.mxu0
        %1836 = vrot.lane.b32.xlu0 %v833, 104
        %v1837 = vpop.permute.xlu0 %1836
        %1838 = vrot.lane.b32.xlu0 %v833, 72
        %v1839 = vpop.permute.xlu0 %1838
        %v1840 = vsel %vm844, %v1837, 0
        %v1842 = vsel %vm844, %v1839, 0
        %1844 = vmatprep.subr.mxu0 0.0
        %1845 = vmatpush1.xpose.msra.mxu0 0.0
        %1846 = vmatprep.subr.mxu0 0.0
        %1847 = vmatpush1.xpose.msra.mxu0 0.0
        %1848 = vmatprep.subr.mxu0 0.0
        %1849 = vmatpush1.xpose.msra.mxu0 0.0
        %1850 = vmatprep.subr.mxu0 0.0
        %1851 = vmatpush1.xpose.msra.mxu0 0.0
        %1852 = vmatprep.subr.mxu0 0.0
        %1853 = vmatpush1.xpose.msra.mxu0 0.0
        %1854 = vmatprep.subr.mxu0 0.0
        %1855 = vmatpush1.xpose.msra.mxu0 0.0
        %1856 = vmatprep.subr.mxu0 0.0
        %1857 = vmatpush1.xpose.msra.mxu0 0.0
        %1858 = vmatprep.subr.mxu0 0.0
        %1859 = vmatpush1.xpose.msra.mxu0 0.0
        %1860 = vmatprep.subr.mxu0 0.0
        %1861 = vmatpush1.xpose.msra.mxu0 0.0
        %1862 = vmatprep.subr.mxu0 0.0
        %1863 = vmatpush1.xpose.msra.mxu0 0.0
        %1864 = vmatprep.subr.mxu0 0.0
        %1865 = vmatpush1.xpose.msra.mxu0 0.0
        %1866 = vmatprep.subr.mxu0 0.0
        %1867 = vmatpush1.xpose.msra.mxu0 0.0
        %1868 = vmatprep.subr.mxu0 0.0
        %1869 = vmatpush1.xpose.msra.mxu0 0.0
        %1870 = vmatprep.subr.mxu0 0.0
        %1871 = vmatpush1.xpose.msra.mxu0 0.0
        %1872 = vmatprep.subr.mxu0 0.0
        %1873 = vmatpush1.xpose.msra.mxu0 0.0
        %1874 = vmatprep.subr.mxu0 0.0
        %1875 = vmatpush1.xpose.msra.mxu0 %v1842
        %1876 = vmatprep.subr.mxu0 0.0
        %1877 = vmatpush2.xpose.msra.mxu0 0.0
        %1878 = vmatprep.subr.mxu0 0.0
        %1879 = vmatpush2.xpose.msra.mxu0 0.0
        %1880 = vmatprep.subr.mxu0 0.0
        %1881 = vmatpush2.xpose.msra.mxu0 0.0
        %1882 = vmatprep.subr.mxu0 0.0
        %1883 = vmatpush2.xpose.msra.mxu0 0.0
        %1884 = vmatprep.subr.mxu0 0.0
        %1885 = vmatpush2.xpose.msra.mxu0 0.0
        %1886 = vmatprep.subr.mxu0 0.0
        %1887 = vmatpush2.xpose.msra.mxu0 0.0
        %1888 = vmatprep.subr.mxu0 0.0
        %1889 = vmatpush2.xpose.msra.mxu0 0.0
        %1890 = vmatprep.subr.mxu0 0.0
        %1891 = vmatpush2.xpose.msra.mxu0 0.0
        %1892 = vmatprep.subr.mxu0 0.0
        %1893 = vmatpush2.xpose.msra.mxu0 0.0
        %1894 = vmatprep.subr.mxu0 0.0
        %1895 = vmatpush2.xpose.msra.mxu0 0.0
        %1896 = vmatprep.subr.mxu0 0.0
        %1897 = vmatpush2.xpose.msra.mxu0 0.0
        %1898 = vmatprep.subr.mxu0 0.0
        %1899 = vmatpush2.xpose.msra.mxu0 0.0
        %1900 = vmatprep.subr.mxu0 0.0
        %1901 = vmatpush2.xpose.msra.mxu0 0.0
        %1902 = vmatprep.subr.mxu0 0.0
        %1903 = vmatpush2.xpose.msra.mxu0 0.0
        %1904 = vmatprep.subr.mxu0 0.0
        %1905 = vmatpush2.xpose.msra.mxu0 0.0
        %1906 = vmatprep.subr.mxu0 0.0
        %1907 = vmatpush2.xpose.msra.mxu0 0.0
        %1908 = vmatprep.mubr.f32.mxu0 0.0
        %1909 = vmatmul.mubr.f32.gmra.mxu0 %v1840
        %v1910 = vpop.f32.mrf.mxu0
        %v1911 = vadd.f32 0.0, %v1910
        %v1912 = vpop.f32.mrf.mxu0
        %1913 = vdwg.mxu0
        %1914 = vrot.lane.b32.xlu0 %v838, 104
        %v1915 = vpop.permute.xlu0 %1914
        %1916 = vrot.lane.b32.xlu0 %v838, 72
        %v1917 = vpop.permute.xlu0 %1916
        %v1918 = vsel %vm844, %v1915, 0
        %v1920 = vsel %vm844, %v1917, 0
        %1922 = vmatprep.subr.mxu0 0.0
        %1923 = vmatpush1.xpose.msra.mxu0 0.0
        %1924 = vmatprep.subr.mxu0 0.0
        %1925 = vmatpush1.xpose.msra.mxu0 0.0
        %1926 = vmatprep.subr.mxu0 0.0
        %1927 = vmatpush1.xpose.msra.mxu0 0.0
        %1928 = vmatprep.subr.mxu0 0.0
        %1929 = vmatpush1.xpose.msra.mxu0 0.0
        %1930 = vmatprep.subr.mxu0 0.0
        %1931 = vmatpush1.xpose.msra.mxu0 0.0
        %1932 = vmatprep.subr.mxu0 0.0
        %1933 = vmatpush1.xpose.msra.mxu0 0.0
        %1934 = vmatprep.subr.mxu0 0.0
        %1935 = vmatpush1.xpose.msra.mxu0 0.0
        %1936 = vmatprep.subr.mxu0 0.0
        %1937 = vmatpush1.xpose.msra.mxu0 0.0
        %1938 = vmatprep.subr.mxu0 0.0
        %1939 = vmatpush1.xpose.msra.mxu0 0.0
        %1940 = vmatprep.subr.mxu0 0.0
        %1941 = vmatpush1.xpose.msra.mxu0 0.0
        %1942 = vmatprep.subr.mxu0 0.0
        %1943 = vmatpush1.xpose.msra.mxu0 0.0
        %1944 = vmatprep.subr.mxu0 0.0
        %1945 = vmatpush1.xpose.msra.mxu0 0.0
        %1946 = vmatprep.subr.mxu0 0.0
        %1947 = vmatpush1.xpose.msra.mxu0 0.0
        %1948 = vmatprep.subr.mxu0 0.0
        %1949 = vmatpush1.xpose.msra.mxu0 0.0
        %1950 = vmatprep.subr.mxu0 0.0
        %1951 = vmatpush1.xpose.msra.mxu0 0.0
        %1952 = vmatprep.subr.mxu0 0.0
        %1953 = vmatpush1.xpose.msra.mxu0 %v1920
        %1954 = vmatprep.subr.mxu0 0.0
        %1955 = vmatpush2.xpose.msra.mxu0 0.0
        %1956 = vmatprep.subr.mxu0 0.0
        %1957 = vmatpush2.xpose.msra.mxu0 0.0
        %1958 = vmatprep.subr.mxu0 0.0
        %1959 = vmatpush2.xpose.msra.mxu0 0.0
        %1960 = vmatprep.subr.mxu0 0.0
        %1961 = vmatpush2.xpose.msra.mxu0 0.0
        %1962 = vmatprep.subr.mxu0 0.0
        %1963 = vmatpush2.xpose.msra.mxu0 0.0
        %1964 = vmatprep.subr.mxu0 0.0
        %1965 = vmatpush2.xpose.msra.mxu0 0.0
        %1966 = vmatprep.subr.mxu0 0.0
        %1967 = vmatpush2.xpose.msra.mxu0 0.0
        %1968 = vmatprep.subr.mxu0 0.0
        %1969 = vmatpush2.xpose.msra.mxu0 0.0
        %1970 = vmatprep.subr.mxu0 0.0
        %1971 = vmatpush2.xpose.msra.mxu0 0.0
        %1972 = vmatprep.subr.mxu0 0.0
        %1973 = vmatpush2.xpose.msra.mxu0 0.0
        %1974 = vmatprep.subr.mxu0 0.0
        %1975 = vmatpush2.xpose.msra.mxu0 0.0
        %1976 = vmatprep.subr.mxu0 0.0
        %1977 = vmatpush2.xpose.msra.mxu0 0.0
        %1978 = vmatprep.subr.mxu0 0.0
        %1979 = vmatpush2.xpose.msra.mxu0 0.0
        %1980 = vmatprep.subr.mxu0 0.0
        %1981 = vmatpush2.xpose.msra.mxu0 0.0
        %1982 = vmatprep.subr.mxu0 0.0
        %1983 = vmatpush2.xpose.msra.mxu0 0.0
        %1984 = vmatprep.subr.mxu0 0.0
        %1985 = vmatpush2.xpose.msra.mxu0 0.0
        %1986 = vmatprep.mubr.f32.mxu0 0.0
        %1987 = vmatmul.mubr.f32.gmra.mxu0 %v1918
        %v1988 = vpop.f32.mrf.mxu0
        %v1989 = vadd.f32 0.0, %v1988
        %v1990 = vpop.f32.mrf.mxu0
        %1991 = vdwg.mxu0
        %v1992 = vmul.f32 %v1911, 0.35355338
        %v1993 = vmul.f32 %v1989, 0.35355338
        %v1994 = vsel %vm844, %v1992, -inf
        %1995 = vmax.xlane.f32.xlu0 %v1994
        %v1996 = vpop.xlane.xlu0 %1995
        %v1997 = vsel %vm844, %v1993, -inf
        %1998 = vmax.xlane.f32.xlu0 %v1997
        %v1999 = vpop.xlane.xlu0 %1998
        %v2000 = vsub.f32 %v1992, %v1996
        %v2001 = vsub.f32 %v1993, %v1999
        %v2002 = vmul.f32 %v2000, 1.442695
        %v2003 = vpow.pop %v2002
        %v2004 = vmul.f32 %v2001, 1.442695
        %v2005 = vpow.pop %v2004
        %v2006 = vsel %vm844, %v2003, 0.0
        %2007 = vadd.xlane.f32.xlu0 %v2006
        %v2008 = vpop.xlane.xlu0 %2007
        %v2009 = vsel %vm844, %v2005, 0.0
        %2010 = vadd.xlane.f32.xlu0 %v2009
        %v2011 = vpop.xlane.xlu0 %2010
        %v2012 = vrcp.pop %v2008
        %v2013 = vmul.f32 %v2003, %v2012
        %v2014 = vrcp.pop %v2011
        %v2015 = vmul.f32 %v2005, %v2014
        %2016 = vrot.lane.b32.xlu0 %v833, 40
        %v2017 = vpop.permute.xlu0 %2016
        %v2020 = vsel %vm844, %v2013, 0
        %2022 = vmatprep.subr.mxu0 0.0
        %2023 = vmatpush1.msra.mxu0 0.0
        %2024 = vmatprep.subr.mxu0 0.0
        %2025 = vmatpush1.msra.mxu0 0.0
        %2026 = vmatprep.subr.mxu0 0.0
        %2027 = vmatpush1.msra.mxu0 0.0
        %2028 = vmatprep.subr.mxu0 0.0
        %2029 = vmatpush1.msra.mxu0 0.0
        %2030 = vmatprep.subr.mxu0 0.0
        %2031 = vmatpush1.msra.mxu0 0.0
        %2032 = vmatprep.subr.mxu0 0.0
        %2033 = vmatpush1.msra.mxu0 0.0
        %2034 = vmatprep.subr.mxu0 0.0
        %2035 = vmatpush1.msra.mxu0 0.0
        %2036 = vmatprep.subr.mxu0 0.0
        %2037 = vmatpush1.msra.mxu0 0.0
        %2038 = vmatprep.subr.mxu0 0.0
        %2039 = vmatpush1.msra.mxu0 0.0
        %2040 = vmatprep.subr.mxu0 0.0
        %2041 = vmatpush1.msra.mxu0 0.0
        %2042 = vmatprep.subr.mxu0 0.0
        %2043 = vmatpush1.msra.mxu0 0.0
        %2044 = vmatprep.subr.mxu0 0.0
        %2045 = vmatpush1.msra.mxu0 0.0
        %2046 = vmatprep.subr.mxu0 0.0
        %2047 = vmatpush1.msra.mxu0 0.0
        %2048 = vmatprep.subr.mxu0 0.0
        %2049 = vmatpush1.msra.mxu0 0.0
        %2050 = vmatprep.subr.mxu0 0.0
        %2051 = vmatpush1.msra.mxu0 0.0
        %2052 = vmatprep.subr.mxu0 0.0
        %2053 = vmatpush1.msra.mxu0 %v2017
        %2054 = vmatprep.subr.mxu0 0.0
        %2055 = vmatpush2.msra.mxu0 0.0
        %2056 = vmatprep.subr.mxu0 0.0
        %2057 = vmatpush2.msra.mxu0 0.0
        %2058 = vmatprep.subr.mxu0 0.0
        %2059 = vmatpush2.msra.mxu0 0.0
        %2060 = vmatprep.subr.mxu0 0.0
        %2061 = vmatpush2.msra.mxu0 0.0
        %2062 = vmatprep.subr.mxu0 0.0
        %2063 = vmatpush2.msra.mxu0 0.0
        %2064 = vmatprep.subr.mxu0 0.0
        %2065 = vmatpush2.msra.mxu0 0.0
        %2066 = vmatprep.subr.mxu0 0.0
        %2067 = vmatpush2.msra.mxu0 0.0
        %2068 = vmatprep.subr.mxu0 0.0
        %2069 = vmatpush2.msra.mxu0 0.0
        %2070 = vmatprep.subr.mxu0 0.0
        %2071 = vmatpush2.msra.mxu0 0.0
        %2072 = vmatprep.subr.mxu0 0.0
        %2073 = vmatpush2.msra.mxu0 0.0
        %2074 = vmatprep.subr.mxu0 0.0
        %2075 = vmatpush2.msra.mxu0 0.0
        %2076 = vmatprep.subr.mxu0 0.0
        %2077 = vmatpush2.msra.mxu0 0.0
        %2078 = vmatprep.subr.mxu0 0.0
        %2079 = vmatpush2.msra.mxu0 0.0
        %2080 = vmatprep.subr.mxu0 0.0
        %2081 = vmatpush2.msra.mxu0 0.0
        %2082 = vmatprep.subr.mxu0 0.0
        %2083 = vmatpush2.msra.mxu0 0.0
        %2084 = vmatprep.subr.mxu0 0.0
        %2085 = vmatpush2.msra.mxu0 0.0
        %2086 = vmatprep.mubr.f32.mxu0 0.0
        %2087 = vmatmul.mubr.f32.gmra.mxu0 %v2020
        %v2088 = vpop.f32.mrf.mxu0
        %v2089 = vadd.f32 0.0, %v2088
        %v2090 = vpop.f32.mrf.mxu0
        %2091 = vdwg.mxu0
        %2092 = vrot.lane.b32.xlu0 %v838, 40
        %v2093 = vpop.permute.xlu0 %2092
        %v2096 = vsel %vm844, %v2015, 0
        %2098 = vmatprep.subr.mxu0 0.0
        %2099 = vmatpush1.msra.mxu0 0.0
        %2100 = vmatprep.subr.mxu0 0.0
        %2101 = vmatpush1.msra.mxu0 0.0
        %2102 = vmatprep.subr.mxu0 0.0
        %2103 = vmatpush1.msra.mxu0 0.0
        %2104 = vmatprep.subr.mxu0 0.0
        %2105 = vmatpush1.msra.mxu0 0.0
        %2106 = vmatprep.subr.mxu0 0.0
        %2107 = vmatpush1.msra.mxu0 0.0
        %2108 = vmatprep.subr.mxu0 0.0
        %2109 = vmatpush1.msra.mxu0 0.0
        %2110 = vmatprep.subr.mxu0 0.0
        %2111 = vmatpush1.msra.mxu0 0.0
        %2112 = vmatprep.subr.mxu0 0.0
        %2113 = vmatpush1.msra.mxu0 0.0
        %2114 = vmatprep.subr.mxu0 0.0
        %2115 = vmatpush1.msra.mxu0 0.0
        %2116 = vmatprep.subr.mxu0 0.0
        %2117 = vmatpush1.msra.mxu0 0.0
        %2118 = vmatprep.subr.mxu0 0.0
        %2119 = vmatpush1.msra.mxu0 0.0
        %2120 = vmatprep.subr.mxu0 0.0
        %2121 = vmatpush1.msra.mxu0 0.0
        %2122 = vmatprep.subr.mxu0 0.0
        %2123 = vmatpush1.msra.mxu0 0.0
        %2124 = vmatprep.subr.mxu0 0.0
        %2125 = vmatpush1.msra.mxu0 0.0
        %2126 = vmatprep.subr.mxu0 0.0
        %2127 = vmatpush1.msra.mxu0 0.0
        %2128 = vmatprep.subr.mxu0 0.0
        %2129 = vmatpush1.msra.mxu0 %v2093
        %2130 = vmatprep.subr.mxu0 0.0
        %2131 = vmatpush2.msra.mxu0 0.0
        %2132 = vmatprep.subr.mxu0 0.0
        %2133 = vmatpush2.msra.mxu0 0.0
        %2134 = vmatprep.subr.mxu0 0.0
        %2135 = vmatpush2.msra.mxu0 0.0
        %2136 = vmatprep.subr.mxu0 0.0
        %2137 = vmatpush2.msra.mxu0 0.0
        %2138 = vmatprep.subr.mxu0 0.0
        %2139 = vmatpush2.msra.mxu0 0.0
        %2140 = vmatprep.subr.mxu0 0.0
        %2141 = vmatpush2.msra.mxu0 0.0
        %2142 = vmatprep.subr.mxu0 0.0
        %2143 = vmatpush2.msra.mxu0 0.0
        %2144 = vmatprep.subr.mxu0 0.0
        %2145 = vmatpush2.msra.mxu0 0.0
        %2146 = vmatprep.subr.mxu0 0.0
        %2147 = vmatpush2.msra.mxu0 0.0
        %2148 = vmatprep.subr.mxu0 0.0
        %2149 = vmatpush2.msra.mxu0 0.0
        %2150 = vmatprep.subr.mxu0 0.0
        %2151 = vmatpush2.msra.mxu0 0.0
        %2152 = vmatprep.subr.mxu0 0.0
        %2153 = vmatpush2.msra.mxu0 0.0
        %2154 = vmatprep.subr.mxu0 0.0
        %2155 = vmatpush2.msra.mxu0 0.0
        %2156 = vmatprep.subr.mxu0 0.0
        %2157 = vmatpush2.msra.mxu0 0.0
        %2158 = vmatprep.subr.mxu0 0.0
        %2159 = vmatpush2.msra.mxu0 0.0
        %2160 = vmatprep.subr.mxu0 0.0
        %2161 = vmatpush2.msra.mxu0 0.0
        %2162 = vmatprep.mubr.f32.mxu0 0.0
        %2163 = vmatmul.mubr.f32.gmra.mxu0 %v2096
        %v2164 = vpop.f32.mrf.mxu0
        %v2165 = vadd.f32 0.0, %v2164
        %v2166 = vpop.f32.mrf.mxu0
        %2167 = vdwg.mxu0
        %2170 = vrot.lane.b32.xlu0 %v1425, 8
        %v2171 = vpop.permute.xlu0 %2170
        %2172 = vrot.lane.b32.xlu0 %v1501, 8
        %v2173 = vpop.permute.xlu0 %2172
        %2178 = vrot.lane.b32.xlu0 %v1757, 16
        %v2179 = vpop.permute.xlu0 %2178
        %2180 = vrot.lane.b32.xlu0 %v1833, 16
        %v2181 = vpop.permute.xlu0 %2180
        %2186 = vrot.lane.b32.xlu0 %v2089, 24
        %v2187 = vpop.permute.xlu0 %2186
        %2188 = vrot.lane.b32.xlu0 %v2165, 24
        %v2189 = vpop.permute.xlu0 %2188
        %v2192 = vsel %vm844, %v1093, %v2171
        %v2193 = vsel %vm844, %v1169, %v2173
        %vm2194 = vcmask 130048
        %v2195 = vsel %vm2194, %v2192, %v2179
        %v2196 = vsel %vm2194, %v2193, %v2181
        %vm2197 = vcmask 195584
        %v2198 = vsel %vm2197, %v2195, %v2187
        %v2199 = vsel %vm2197, %v2196, %v2189
        %v2200 = vld [vmem:[%s704] sm:$0xff]
        %v2201 = vld [vmem:[%s704 + $0x8] sm:$0xff]
        %v2202 = vld [vmem:[%s704 + $0x10] sm:$0xff]
        %v2203 = vld [vmem:[%s704 + $0x18] sm:$0xff]
        %v2204 = vld [vmem:[%s707] sm:$0x1]
        %v2206 = vlaneseq
        %v2207 = vshrl.u32 %v2206, 7
        %v2208 = vsub.s32 0, %v2207
        %v2209 = vrot.slane %v2204, %v2208
        %v2212 = vsel %vm759, %v2198, 0
        %v2215 = vsel %vm759, %v2199, 0
        %2217 = vmatprep.subr.mxu0 0.0
        %2218 = vmatpush1.msra.mxu0 0.0
        %2219 = vmatprep.subr.mxu0 0.0
        %2220 = vmatpush1.msra.mxu0 0.0
        %2221 = vmatprep.subr.mxu0 0.0
        %2222 = vmatpush1.msra.mxu0 0.0
        %2223 = vmatprep.subr.mxu0 0.0
        %2224 = vmatpush1.msra.mxu0 0.0
        %2225 = vmatprep.subr.mxu0 0.0
        %2226 = vmatpush1.msra.mxu0 0.0
        %2227 = vmatprep.subr.mxu0 0.0
        %2228 = vmatpush1.msra.mxu0 0.0
        %2229 = vmatprep.subr.mxu0 0.0
        %2230 = vmatpush1.msra.mxu0 0.0
        %2231 = vmatprep.subr.mxu0 0.0
        %2232 = vmatpush1.msra.mxu0 0.0
        %2233 = vmatprep.subr.mxu0 0.0
        %2234 = vmatpush1.msra.mxu0 0.0
        %2235 = vmatprep.subr.mxu0 0.0
        %2236 = vmatpush1.msra.mxu0 0.0
        %2237 = vmatprep.subr.mxu0 0.0
        %2238 = vmatpush1.msra.mxu0 0.0
        %2239 = vmatprep.subr.mxu0 0.0
        %2240 = vmatpush1.msra.mxu0 0.0
        %2241 = vmatprep.subr.mxu0 0.0
        %2242 = vmatpush1.msra.mxu0 %v2203
        %2243 = vmatprep.subr.mxu0 0.0
        %2244 = vmatpush1.msra.mxu0 %v2202
        %2245 = vmatprep.subr.mxu0 0.0
        %2246 = vmatpush1.msra.mxu0 %v2201
        %2247 = vmatprep.subr.mxu0 0.0
        %2248 = vmatpush1.msra.mxu0 %v2200
        %2249 = vmatprep.subr.mxu0 0.0
        %2250 = vmatpush2.msra.mxu0 0.0
        %2251 = vmatprep.subr.mxu0 0.0
        %2252 = vmatpush2.msra.mxu0 0.0
        %2253 = vmatprep.subr.mxu0 0.0
        %2254 = vmatpush2.msra.mxu0 0.0
        %2255 = vmatprep.subr.mxu0 0.0
        %2256 = vmatpush2.msra.mxu0 0.0
        %2257 = vmatprep.subr.mxu0 0.0
        %2258 = vmatpush2.msra.mxu0 0.0
        %2259 = vmatprep.subr.mxu0 0.0
        %2260 = vmatpush2.msra.mxu0 0.0
        %2261 = vmatprep.subr.mxu0 0.0
        %2262 = vmatpush2.msra.mxu0 0.0
        %2263 = vmatprep.subr.mxu0 0.0
        %2264 = vmatpush2.msra.mxu0 0.0
        %2265 = vmatprep.subr.mxu0 0.0
        %2266 = vmatpush2.msra.mxu0 0.0
        %2267 = vmatprep.subr.mxu0 0.0
        %2268 = vmatpush2.msra.mxu0 0.0
        %2269 = vmatprep.subr.mxu0 0.0
        %2270 = vmatpush2.msra.mxu0 0.0
        %2271 = vmatprep.subr.mxu0 0.0
        %2272 = vmatpush2.msra.mxu0 0.0
        %2273 = vmatprep.subr.mxu0 0.0
        %2274 = vmatpush2.msra.mxu0 0.0
        %2275 = vmatprep.subr.mxu0 0.0
        %2276 = vmatpush2.msra.mxu0 0.0
        %2277 = vmatprep.subr.mxu0 0.0
        %2278 = vmatpush2.msra.mxu0 0.0
        %2279 = vmatprep.subr.mxu0 0.0
        %2280 = vmatpush2.msra.mxu0 0.0
        %2281 = vmatprep.mubr.f32.mxu0 0.0
        %2282 = vmatmul.mubr.f32.gmra.mxu0 %v2212
        %v2283 = vpop.f32.mrf.mxu0
        %v2284 = vadd.f32 %v2209, %v2283
        %v2285 = vpop.f32.mrf.mxu0
        %2286 = vmatprep.mubr.f32.mxu0 0.0
        %2287 = vmatmul.mubr.f32.gmra.mxu0 %v2215
        %v2288 = vpop.f32.mrf.mxu0
        %v2289 = vadd.f32 %v2209, %v2288
        %v2290 = vpop.f32.mrf.mxu0
        %2291 = vdwg.mxu0
        %v2292 = vadd.f32 %v746, %v2284
        %v2293 = vadd.f32 %v747, %v2289
        %v2294 = vld [vmem:[%s710] sm:$0x1]
        %v2295 = vld [vmem:[%s713] sm:$0x1]
        %v2296 = vsel %vm759, %v2292, 0.0
        %2297 = vadd.xlane.f32.xlu0 %v2296
        %v2298 = vpop.xlane.xlu0 %2297
        %v2299 = vsel %vm759, %v2293, 0.0
        %2300 = vadd.xlane.f32.xlu0 %v2299
        %v2301 = vpop.xlane.xlu0 %2300
        %v2302 = vrcp.pop 32.0
        %v2303 = vmul.f32 %v2298, %v2302
        %v2304 = vmul.f32 %v2301, %v2302
        %v2305 = vsub.f32 %v2292, %v2303
        %v2306 = vsub.f32 %v2293, %v2304
        %v2307 = vmul.f32 %v2305, %v2305
        %v2308 = vmul.f32 %v2306, %v2306
        %v2309 = vsel %vm759, %v2307, 0.0
        %2310 = vadd.xlane.f32.xlu0 %v2309
        %v2311 = vpop.xlane.xlu0 %2310
        %v2312 = vsel %vm759, %v2308, 0.0
        %2313 = vadd.xlane.f32.xlu0 %v2312
        %v2314 = vpop.xlane.xlu0 %2313
        %v2315 = vmul.f32 %v2311, %v2302
        %v2316 = vmul.f32 %v2314, %v2302
        %v2317 = vadd.f32 %v2315, 1e-05
        %v2318 = vadd.f32 %v2316, 1e-05
        %v2319 = vrsqrt.pop %v2317
        %v2320 = vrsqrt.pop %v2318
        %v2321 = vmul.f32 %v2305, %v2319
        %v2322 = vmul.f32 %v2306, %v2320
        %v2324 = vlaneseq
        %v2325 = vshrl.u32 %v2324, 7
        %v2326 = vsub.s32 0, %v2325
        %v2327 = vrot.slane %v2294, %v2326
        %v2329 = vmul.f32 %v2321, %v2327
        %v2330 = vmul.f32 %v2322, %v2327
        %v2332 = vlaneseq
        %v2333 = vshrl.u32 %v2332, 7
        %v2334 = vsub.s32 0, %v2333
        %v2335 = vrot.slane %v2295, %v2334
        %v2337 = vadd.f32 %v2329, %v2335
        %v2338 = vadd.f32 %v2330, %v2335
        %v2339 = vld [vmem:[%s718] sm:$0xff]
        %v2340 = vld [vmem:[%s718 + $0x8] sm:$0xff]
        %v2341 = vld [vmem:[%s718 + $0x10] sm:$0xff]
        %v2342 = vld [vmem:[%s718 + $0x18] sm:$0xff]
        %v2343 = vld [vmem:[%s721] sm:$0x1]
        %v2345 = vlaneseq
        %v2346 = vshrl.u32 %v2345, 7
        %v2347 = vsub.s32 0, %v2346
        %v2348 = vrot.slane %v2343, %v2347
        %v2351 = vsel %vm759, %v2337, 0
        %v2354 = vsel %vm759, %v2338, 0
        %2356 = vmatprep.subr.mxu0 0.0
        %2357 = vmatpush1.msra.mxu0 0.0
        %2358 = vmatprep.subr.mxu0 0.0
        %2359 = vmatpush1.msra.mxu0 0.0
        %2360 = vmatprep.subr.mxu0 0.0
        %2361 = vmatpush1.msra.mxu0 0.0
        %2362 = vmatprep.subr.mxu0 0.0
        %2363 = vmatpush1.msra.mxu0 0.0
        %2364 = vmatprep.subr.mxu0 0.0
        %2365 = vmatpush1.msra.mxu0 0.0
        %2366 = vmatprep.subr.mxu0 0.0
        %2367 = vmatpush1.msra.mxu0 0.0
        %2368 = vmatprep.subr.mxu0 0.0
        %2369 = vmatpush1.msra.mxu0 0.0
        %2370 = vmatprep.subr.mxu0 0.0
        %2371 = vmatpush1.msra.mxu0 0.0
        %2372 = vmatprep.subr.mxu0 0.0
        %2373 = vmatpush1.msra.mxu0 0.0
        %2374 = vmatprep.subr.mxu0 0.0
        %2375 = vmatpush1.msra.mxu0 0.0
        %2376 = vmatprep.subr.mxu0 0.0
        %2377 = vmatpush1.msra.mxu0 0.0
        %2378 = vmatprep.subr.mxu0 0.0
        %2379 = vmatpush1.msra.mxu0 0.0
        %2380 = vmatprep.subr.mxu0 0.0
        %2381 = vmatpush1.msra.mxu0 %v2342
        %2382 = vmatprep.subr.mxu0 0.0
        %2383 = vmatpush1.msra.mxu0 %v2341
        %2384 = vmatprep.subr.mxu0 0.0
        %2385 = vmatpush1.msra.mxu0 %v2340
        %2386 = vmatprep.subr.mxu0 0.0
        %2387 = vmatpush1.msra.mxu0 %v2339
        %2388 = vmatprep.subr.mxu0 0.0
        %2389 = vmatpush2.msra.mxu0 0.0
        %2390 = vmatprep.subr.mxu0 0.0
        %2391 = vmatpush2.msra.mxu0 0.0
        %2392 = vmatprep.subr.mxu0 0.0
        %2393 = vmatpush2.msra.mxu0 0.0
        %2394 = vmatprep.subr.mxu0 0.0
        %2395 = vmatpush2.msra.mxu0 0.0
        %2396 = vmatprep.subr.mxu0 0.0
        %2397 = vmatpush2.msra.mxu0 0.0
        %2398 = vmatprep.subr.mxu0 0.0
        %2399 = vmatpush2.msra.mxu0 0.0
        %2400 = vmatprep.subr.mxu0 0.0
        %2401 = vmatpush2.msra.mxu0 0.0
        %2402 = vmatprep.subr.mxu0 0.0
        %2403 = vmatpush2.msra.mxu0 0.0
        %2404 = vmatprep.subr.mxu0 0.0
        %2405 = vmatpush2.msra.mxu0 0.0
        %2406 = vmatprep.subr.mxu0 0.0
        %2407 = vmatpush2.msra.mxu0 0.0
        %2408 = vmatprep.subr.mxu0 0.0
        %2409 = vmatpush2.msra.mxu0 0.0
        %2410 = vmatprep.subr.mxu0 0.0
        %2411 = vmatpush2.msra.mxu0 0.0
        %2412 = vmatprep.subr.mxu0 0.0
        %2413 = vmatpush2.msra.mxu0 0.0
        %2414 = vmatprep.subr.mxu0 0.0
        %2415 = vmatpush2.msra.mxu0 0.0
        %2416 = vmatprep.subr.mxu0 0.0
        %2417 = vmatpush2.msra.mxu0 0.0
        %2418 = vmatprep.subr.mxu0 0.0
        %2419 = vmatpush2.msra.mxu0 0.0
        %2420 = vmatprep.mubr.f32.mxu0 0.0
        %2421 = vmatmul.mubr.f32.gmra.mxu0 %v2351
        %v2422 = vpop.f32.mrf.mxu0
        %v2423 = vadd.f32 %v2348, %v2422
        %v2424 = vpop.f32.mrf.mxu0
        %2425 = vmatprep.mubr.f32.mxu0 0.0
        %2426 = vmatmul.mubr.f32.gmra.mxu0 %v2354
        %v2427 = vpop.f32.mrf.mxu0
        %v2428 = vadd.f32 %v2348, %v2427
        %v2429 = vpop.f32.mrf.mxu0
        %2430 = vdwg.mxu0
        %v2431 = vmul.f32 %v2423, 0.5
        %v2432 = vmul.f32 %v2428, 0.5
        %v2433 = vrcp.pop 1.4142135
        %v2434 = vmul.f32 %v2423, %v2433
        %v2435 = vmul.f32 %v2428, %v2433
        %v2436 = verf.f32.pop %v2434
        %v2437 = verf.f32.pop %v2435
        %v2438 = vadd.f32 %v2436, 1.0
        %v2439 = vadd.f32 %v2437, 1.0
        %v2440 = vmul.f32 %v2431, %v2438
        %v2441 = vmul.f32 %v2432, %v2439
        %v2442 = vld [vmem:[%s726] sm:$0xff]
        %v2443 = vld [vmem:[%s726 + $0x8] sm:$0xff]
        %v2444 = vld [vmem:[%s726 + $0x10] sm:$0xff]
        %v2445 = vld [vmem:[%s726 + $0x18] sm:$0xff]
        %v2446 = vld [vmem:[%s726 + $0x20] sm:$0xff]
        %v2447 = vld [vmem:[%s726 + $0x28] sm:$0xff]
        %v2448 = vld [vmem:[%s726 + $0x30] sm:$0xff]
        %v2449 = vld [vmem:[%s726 + $0x38] sm:$0xff]
        %v2450 = vld [vmem:[%s729] sm:$0x1]
        %v2452 = vlaneseq
        %v2453 = vshrl.u32 %v2452, 7
        %v2454 = vsub.s32 0, %v2453
        %v2455 = vrot.slane %v2450, %v2454
        %vm2457 = vcmask 523264
        %v2459 = vsel %vm2457, %v2440, 0
        %v2462 = vsel %vm2457, %v2441, 0
        %2464 = vmatprep.subr.mxu0 0.0
        %2465 = vmatpush1.msra.mxu0 0.0
        %2466 = vmatprep.subr.mxu0 0.0
        %2467 = vmatpush1.msra.mxu0 0.0
        %2468 = vmatprep.subr.mxu0 0.0
        %2469 = vmatpush1.msra.mxu0 0.0
        %2470 = vmatprep.subr.mxu0 0.0
        %2471 = vmatpush1.msra.mxu0 0.0
        %2472 = vmatprep.subr.mxu0 0.0
        %2473 = vmatpush1.msra.mxu0 0.0
        %2474 = vmatprep.subr.mxu0 0.0
        %2475 = vmatpush1.msra.mxu0 0.0
        %2476 = vmatprep.subr.mxu0 0.0
        %2477 = vmatpush1.msra.mxu0 0.0
        %2478 = vmatprep.subr.mxu0 0.0
        %2479 = vmatpush1.msra.mxu0 0.0
        %2480 = vmatprep.subr.mxu0 0.0
        %2481 = vmatpush1.msra.mxu0 %v2449
        %2482 = vmatprep.subr.mxu0 0.0
        %2483 = vmatpush1.msra.mxu0 %v2448
        %2484 = vmatprep.subr.mxu0 0.0
        %2485 = vmatpush1.msra.mxu0 %v2447
        %2486 = vmatprep.subr.mxu0 0.0
        %2487 = vmatpush1.msra.mxu0 %v2446
        %2488 = vmatprep.subr.mxu0 0.0
        %2489 = vmatpush1.msra.mxu0 %v2445
        %2490 = vmatprep.subr.mxu0 0.0
        %2491 = vmatpush1.msra.mxu0 %v2444
        %2492 = vmatprep.subr.mxu0 0.0
        %2493 = vmatpush1.msra.mxu0 %v2443
        %2494 = vmatprep.subr.mxu0 0.0
        %2495 = vmatpush1.msra.mxu0 %v2442
        %2496 = vmatprep.subr.mxu0 0.0
        %2497 = vmatpush2.msra.mxu0 0.0
        %2498 = vmatprep.subr.mxu0 0.0
        %2499 = vmatpush2.msra.mxu0 0.0
        %2500 = vmatprep.subr.mxu0 0.0
        %2501 = vmatpush2.msra.mxu0 0.0
        %2502 = vmatprep.subr.mxu0 0.0
        %2503 = vmatpush2.msra.mxu0 0.0
        %2504 = vmatprep.subr.mxu0 0.0
        %2505 = vmatpush2.msra.mxu0 0.0
        %2506 = vmatprep.subr.mxu0 0.0
        %2507 = vmatpush2.msra.mxu0 0.0
        %2508 = vmatprep.subr.mxu0 0.0
        %2509 = vmatpush2.msra.mxu0 0.0
        %2510 = vmatprep.subr.mxu0 0.0
        %2511 = vmatpush2.msra.mxu0 0.0
        %2512 = vmatprep.subr.mxu0 0.0
        %2513 = vmatpush2.msra.mxu0 0.0
        %2514 = vmatprep.subr.mxu0 0.0
        %2515 = vmatpush2.msra.mxu0 0.0
        %2516 = vmatprep.subr.mxu0 0.0
        %2517 = vmatpush2.msra.mxu0 0.0
        %2518 = vmatprep.subr.mxu0 0.0
        %2519 = vmatpush2.msra.mxu0 0.0
        %2520 = vmatprep.subr.mxu0 0.0
        %2521 = vmatpush2.msra.mxu0 0.0
        %2522 = vmatprep.subr.mxu0 0.0
        %2523 = vmatpush2.msra.mxu0 0.0
        %2524 = vmatprep.subr.mxu0 0.0
        %2525 = vmatpush2.msra.mxu0 0.0
        %2526 = vmatprep.subr.mxu0 0.0
        %2527 = vmatpush2.msra.mxu0 0.0
        %2528 = vmatprep.mubr.f32.mxu0 0.0
        %2529 = vmatmul.mubr.f32.gmra.mxu0 %v2459
        %v2530 = vpop.f32.mrf.mxu0
        %v2531 = vadd.f32 %v2455, %v2530
        %v2532 = vpop.f32.mrf.mxu0
        %2533 = vmatprep.mubr.f32.mxu0 0.0
        %2534 = vmatmul.mubr.f32.gmra.mxu0 %v2462
        %v2535 = vpop.f32.mrf.mxu0
        %v2536 = vadd.f32 %v2455, %v2535
        %v2537 = vpop.f32.mrf.mxu0
        %2538 = vdwg.mxu0
        %v2539 = vadd.f32 %v2337, %v2531
        %v2540 = vadd.f32 %v2338, %v2536
        %v2541 = vld [vmem:[%s732] sm:$0x1]
        %v2542 = vld [vmem:[%s735] sm:$0x1]
        %v2543 = vsel %vm759, %v2539, 0.0
        %2544 = vadd.xlane.f32.xlu0 %v2543
        %v2545 = vpop.xlane.xlu0 %2544
        %v2546 = vsel %vm759, %v2540, 0.0
        %2547 = vadd.xlane.f32.xlu0 %v2546
        %v2548 = vpop.xlane.xlu0 %2547
        %v2549 = vmul.f32 %v2545, %v2302
        %v2550 = vmul.f32 %v2548, %v2302
        %v2551 = vsub.f32 %v2539, %v2549
        %v2552 = vsub.f32 %v2540, %v2550
        %v2553 = vmul.f32 %v2551, %v2551
        %v2554 = vmul.f32 %v2552, %v2552
        %v2555 = vsel %vm759, %v2553, 0.0
        %2556 = vadd.xlane.f32.xlu0 %v2555
        %v2557 = vpop.xlane.xlu0 %2556
        %v2558 = vsel %vm759, %v2554, 0.0
        %2559 = vadd.xlane.f32.xlu0 %v2558
        %v2560 = vpop.xlane.xlu0 %2559
        %v2561 = vmul.f32 %v2557, %v2302
        %v2562 = vmul.f32 %v2560, %v2302
        %v2563 = vadd.f32 %v2561, 1e-05
        %v2564 = vadd.f32 %v2562, 1e-05
        %v2565 = vrsqrt.pop %v2563
        %v2566 = vrsqrt.pop %v2564
        %v2567 = vmul.f32 %v2551, %v2565
        %v2568 = vmul.f32 %v2552, %v2566
        %v2570 = vlaneseq
        %v2571 = vshrl.u32 %v2570, 7
        %v2572 = vsub.s32 0, %v2571
        %v2573 = vrot.slane %v2541, %v2572
        %v2575 = vmul.f32 %v2567, %v2573
        %v2576 = vmul.f32 %v2568, %v2573
        %v2578 = vlaneseq
        %v2579 = vshrl.u32 %v2578, 7
        %v2580 = vsub.s32 0, %v2579
        %v2581 = vrot.slane %v2542, %v2580
        %v2583 = vadd.f32 %v2575, %v2581
        %v2584 = vadd.f32 %v2576, %v2581
        %2585 = vst.msk [vmem:[#allocation2] sm:$0xff] %vm759, %v2583
        %2586 = vst.msk [vmem:[#allocation2 + $0x8] sm:$0xff] %vm759, %v2584
        %p2587 = scmp.eq.s32.totalorder %s35, 1
        // Predicated region
        $region97: #{tpu_custom_call.1} parent=83 // pred_check
          %p2588 = pneg %p2587
        $region98: #{tpu_custom_call.1} parent=83 // pred_check_branch
          %2590 = sbr.rel (%p2588) target = $region100
        $region99: #{tpu_custom_call.1} parent=83 // pred_region
          %v2591 = vld [vmem:[%s13] sm:$0x1]
          %v2592 = vld [vmem:[%s14] sm:$0x1]
          %v2593 = vsel %vm759, %v2583, 0.0
          %2594 = vadd.xlane.f32.xlu0 %v2593
          %v2595 = vpop.xlane.xlu0 %2594
          %v2596 = vsel %vm759, %v2584, 0.0
          %2597 = vadd.xlane.f32.xlu0 %v2596
          %v2598 = vpop.xlane.xlu0 %2597
          %v2599 = vmul.f32 %v2595, %v2302
          %v2600 = vmul.f32 %v2598, %v2302
          %v2601 = vsub.f32 %v2583, %v2599
          %v2602 = vsub.f32 %v2584, %v2600
          %v2603 = vmul.f32 %v2601, %v2601
          %v2604 = vmul.f32 %v2602, %v2602
          %v2605 = vsel %vm759, %v2603, 0.0
          %2606 = vadd.xlane.f32.xlu0 %v2605
          %v2607 = vpop.xlane.xlu0 %2606
          %v2608 = vsel %vm759, %v2604, 0.0
          %2609 = vadd.xlane.f32.xlu0 %v2608
          %v2610 = vpop.xlane.xlu0 %2609
          %v2611 = vmul.f32 %v2607, %v2302
          %v2612 = vmul.f32 %v2610, %v2302
          %v2613 = vadd.f32 %v2611, 1e-05
          %v2614 = vadd.f32 %v2612, 1e-05
          %v2615 = vrsqrt.pop %v2613
          %v2616 = vrsqrt.pop %v2614
          %v2617 = vmul.f32 %v2601, %v2615
          %v2618 = vmul.f32 %v2602, %v2616
          %v2620 = vlaneseq
          %v2621 = vshrl.u32 %v2620, 7
          %v2622 = vsub.s32 0, %v2621
          %v2623 = vrot.slane %v2591, %v2622
          %v2625 = vmul.f32 %v2617, %v2623
          %v2626 = vmul.f32 %v2618, %v2623
          %v2628 = vlaneseq
          %v2629 = vshrl.u32 %v2628, 7
          %v2630 = vsub.s32 0, %v2629
          %v2631 = vrot.slane %v2592, %v2630
          %v2633 = vadd.f32 %v2625, %v2631
          %v2634 = vadd.f32 %v2626, %v2631
          %v2635 = vld [vmem:[#allocation6] sm:$0xff]
          %v2636 = vld [vmem:[#allocation6 + $0x8] sm:$0xff]
          %v2637 = vld [vmem:[#allocation6 + $0x10] sm:$0xff]
          %v2638 = vld [vmem:[#allocation6 + $0x18] sm:$0xff]
          %v2640 = vsel %vm759, %v2633, 0
          %v2643 = vsel %vm759, %v2634, 0
          %2645 = vmatprep.subr.mxu0 0.0
          %2646 = vmatpush1.msra.mxu0 0.0
          %2647 = vmatprep.subr.mxu0 0.0
          %2648 = vmatpush1.msra.mxu0 0.0
          %2649 = vmatprep.subr.mxu0 0.0
          %2650 = vmatpush1.msra.mxu0 0.0
          %2651 = vmatprep.subr.mxu0 0.0
          %2652 = vmatpush1.msra.mxu0 0.0
          %2653 = vmatprep.subr.mxu0 0.0
          %2654 = vmatpush1.msra.mxu0 0.0
          %2655 = vmatprep.subr.mxu0 0.0
          %2656 = vmatpush1.msra.mxu0 0.0
          %2657 = vmatprep.subr.mxu0 0.0
          %2658 = vmatpush1.msra.mxu0 0.0
          %2659 = vmatprep.subr.mxu0 0.0
          %2660 = vmatpush1.msra.mxu0 0.0
          %2661 = vmatprep.subr.mxu0 0.0
          %2662 = vmatpush1.msra.mxu0 0.0
          %2663 = vmatprep.subr.mxu0 0.0
          %2664 = vmatpush1.msra.mxu0 0.0
          %2665 = vmatprep.subr.mxu0 0.0
          %2666 = vmatpush1.msra.mxu0 0.0
          %2667 = vmatprep.subr.mxu0 0.0
          %2668 = vmatpush1.msra.mxu0 0.0
          %2669 = vmatprep.subr.mxu0 0.0
          %2670 = vmatpush1.msra.mxu0 %v2638
          %2671 = vmatprep.subr.mxu0 0.0
          %2672 = vmatpush1.msra.mxu0 %v2637
          %2673 = vmatprep.subr.mxu0 0.0
          %2674 = vmatpush1.msra.mxu0 %v2636
          %2675 = vmatprep.subr.mxu0 0.0
          %2676 = vmatpush1.msra.mxu0 %v2635
          %2677 = vmatprep.subr.mxu0 0.0
          %2678 = vmatpush2.msra.mxu0 0.0
          %2679 = vmatprep.subr.mxu0 0.0
          %2680 = vmatpush2.msra.mxu0 0.0
          %2681 = vmatprep.subr.mxu0 0.0
          %2682 = vmatpush2.msra.mxu0 0.0
          %2683 = vmatprep.subr.mxu0 0.0
          %2684 = vmatpush2.msra.mxu0 0.0
          %2685 = vmatprep.subr.mxu0 0.0
          %2686 = vmatpush2.msra.mxu0 0.0
          %2687 = vmatprep.subr.mxu0 0.0
          %2688 = vmatpush2.msra.mxu0 0.0
          %2689 = vmatprep.subr.mxu0 0.0
          %2690 = vmatpush2.msra.mxu0 0.0
          %2691 = vmatprep.subr.mxu0 0.0
          %2692 = vmatpush2.msra.mxu0 0.0
          %2693 = vmatprep.subr.mxu0 0.0
          %2694 = vmatpush2.msra.mxu0 0.0
          %2695 = vmatprep.subr.mxu0 0.0
          %2696 = vmatpush2.msra.mxu0 0.0
          %2697 = vmatprep.subr.mxu0 0.0
          %2698 = vmatpush2.msra.mxu0 0.0
          %2699 = vmatprep.subr.mxu0 0.0
          %2700 = vmatpush2.msra.mxu0 0.0
          %2701 = vmatprep.subr.mxu0 0.0
          %2702 = vmatpush2.msra.mxu0 0.0
          %2703 = vmatprep.subr.mxu0 0.0
          %2704 = vmatpush2.msra.mxu0 0.0
          %2705 = vmatprep.subr.mxu0 0.0
          %2706 = vmatpush2.msra.mxu0 0.0
          %2707 = vmatprep.subr.mxu0 0.0
          %2708 = vmatpush2.msra.mxu0 0.0
          %2709 = vmatprep.mubr.f32.mxu0 0.0
          %2710 = vmatmul.mubr.f32.gmra.mxu0 %v2640
          %v2711 = vpop.f32.mrf.mxu0
          %v2712 = vadd.f32 0.0, %v2711
          %v2713 = vpop.f32.mrf.mxu0
          %2714 = vmatprep.mubr.f32.mxu0 0.0
          %2715 = vmatmul.mubr.f32.gmra.mxu0 %v2643
          %v2716 = vpop.f32.mrf.mxu0
          %v2717 = vadd.f32 0.0, %v2716
          %v2718 = vpop.f32.mrf.mxu0
          %2719 = vdwg.mxu0
          %2720 = vst [vmem:[#allocation8] sm:$0xff] %v2712
          %2721 = vst [vmem:[#allocation8 + $0x8] sm:$0xff] %v2717
        $region100: #{tpu_custom_call.1} parent=83 // pred_fallthru
          _
        // Predicated region
        $region101: #{tpu_custom_call.1} parent=83 // pred_check
          %p2722 = pneg %p461
        $region102: #{tpu_custom_call.1} parent=83 // pred_check_branch
          %2724 = sbr.rel (%p2722) target = $region104
        $region103: #{tpu_custom_call.1} parent=83 // pred_region
          %s2725 = smul.u32 2, %s34
          %s2727 = ssub.s32 256, 256
          %2728 = vsyncadd [#allocation5], %s2727
          %s2729 = smul.addr %s2725, 128
          %s2730 = scalar_lea.hbm %s16, %s2729
          %s2731 = sshll.u32 [#allocation8], 4
          %s2732 = int_to_ptr.vmem [resolvable:$true] %s2731
          %2737 = dma.vmem_to_hbm [thread:$0]  %s2732, 256, %s2730, [#allocation5], 128, 128, 8
        $region104: #{tpu_custom_call.1} parent=83 // pred_fallthru
          _
        // Predicated region
        $region105: #{tpu_custom_call.1} parent=83 // pred_check
          %p2738 = pneg %p461
        $region106: #{tpu_custom_call.1} parent=83 // pred_check_branch
          %2740 = sbr.rel (%p2738) target = $region108
        $region107: #{tpu_custom_call.1} parent=83 // pred_region
          %2741 = dma.done [#allocation5], 256
        $region108: #{tpu_custom_call.1} parent=83 // pred_fallthru
          _
      $region84: #{tpu_custom_call.1} parent=5 // pred_fallthru
        _
      %p2742 = scmp.le.s32.totalorder 2, %s25
      // Predicated region
      $region109: #{tpu_custom_call.1} parent=5 // pred_check
        %p2743 = pneg %p2742
      $region110: #{tpu_custom_call.1} parent=5 // pred_check_branch
        %2745 = sbr.rel (%p2743) target = $region112
      $region111: #{tpu_custom_call.1} parent=5 // pred_region
        %s2746 = ssub.s32 %s25, 2
      $region112: #{tpu_custom_call.1} parent=5 // pred_fallthru
        _
    $region6: #{tpu_custom_call.1} parent=1 // loop_footer
      %s29 = sadd.s32 1, %s25
    $region7: #{tpu_custom_call.1} parent=1 // loop_footer_branch
      %24 = sbr.rel target = $region3
    $region8: #{tpu_custom_call.1} parent=1 // loop_exit
      _
    %2747 = vsyncpa [#allocation4], 1
    %s2748 = scalar_lea.sflag [#allocation4], 1
    %2749 = vsyncpa %s2748, 1
    %2750 = vsyncpa [#allocation7], 1
    %2751 = vsyncpa [#allocation5], 1
    %s2752 = scalar_lea.sflag [#allocation5], 1
    %2753 = vsyncpa %s2752, 1

</llo_original>
